<compile_context>
chip_gen: v6e
topology: v6e:2x2x1
jax: 0.10.0
libtpu: 0.0.40
codegen_flags: <defaults>
</compile_context>

<pallas_src>
import functools

import jax
import jax.numpy as jnp
from jax.experimental import pallas as pl
from jax.experimental.pallas import tpu as pltpu


def _attention_kernel(x_ref, wqkv_ref, wproj_ref, bproj_ref, o_ref,
                      *, num_heads: int):
    # x_ref:     (1, C, N) f32   -- one batch element, channel-major
    # wqkv_ref:  (3C, C)  bf16   -- nn.Linear layout (out, in); Q rows pre-scaled
    # wproj_ref: (C, C)   bf16   -- nn.Linear layout (out, in)
    # bproj_ref: (C, 1)   f32
    # o_ref:     (1, C, N) f32
    _, C = wqkv_ref.shape
    N = x_ref.shape[-1]
    hd = C // num_heads

    x = x_ref[0].astype(jnp.bfloat16)                              # (C, N)

    # fused qkv projection: (3C, C) @ (C, N) -> (3C, N), f32 accumulation
    qkv = jnp.dot(wqkv_ref[...], x, preferred_element_type=jnp.float32)

    # head split along the sublane (feature) axis: (3C, N) -> 3 x (h, hd, N)
    q = qkv[0 * C:1 * C].reshape(num_heads, hd, N)
    k = qkv[1 * C:2 * C].reshape(num_heads, hd, N).astype(jnp.bfloat16)
    v = qkv[2 * C:3 * C].reshape(num_heads, hd, N).astype(jnp.bfloat16)

    # Q -> token-major so QK^T is a standard (h, Nq, hd) @ (h, hd, Nk) matmul.
    q_t = jnp.transpose(q, (0, 2, 1)).astype(jnp.bfloat16)         # (h, N, hd)

    # attention scores (scale already folded into the Q weight rows)
    s = jnp.einsum("hqd,hdk->hqk", q_t, k,
                   preferred_element_type=jnp.float32)             # (h, Nq, Nk)

    # softmax over keys, f32
    s = s - jnp.max(s, axis=-1, keepdims=True)
    p = jnp.exp(s)
    denom = jnp.sum(p, axis=-1, keepdims=True)
    p = p * pl.reciprocal(denom, approx=True)

    # attention-weighted values, head-batched, contracting the key axis:
    # ctx[h, d, q] = sum_k v[h, d, k] * p[h, q, k]
    ctx = jnp.einsum("hdk,hqk->hdq", v, p.astype(jnp.bfloat16),
                     preferred_element_type=jnp.float32)           # (h, hd, Nq)

    # concat heads == merge (h, hd) -> C on the sublane axis (free reshape)
    y = ctx.reshape(C, N).astype(jnp.bfloat16)

    # output projection + bias: (C, C) @ (C, N) + (C, 1)
    out = jnp.dot(wproj_ref[...], y, preferred_element_type=jnp.float32)
    out = out + bproj_ref[...]
    o_ref[0] = out.astype(o_ref.dtype)


def attention_pallas(x_nchw, w_qkv, w_proj, b_proj, *, num_heads):
    """Forward pass of the Attention module.

    x_nchw: (B, C, H, W) f32
    w_qkv:  (3C, C) f32 -- nn.Linear(dim, 3*dim).weight (qkv_bias=False)
    w_proj: (C, C)  f32 -- nn.Linear(dim, dim).weight
    b_proj: (C,)    f32 -- nn.Linear(dim, dim).bias
    returns (B, C, H, W) f32
    """
    B, C, H, W = x_nchw.shape
    N = H * W
    hd = C // num_heads
    scale = hd ** (-0.5)

    # NCHW -> (B, C, N): pure reshape, no transpose / extra HBM pass.
    x_bcn = x_nchw.reshape(B, C, N)

    # Fold the qk scale into the Q rows (first C output features) of the qkv
    # weight; cast MXU weights to bf16 once here (x is cast inside the kernel).
    w_qkv_bf = w_qkv.at[:C, :].multiply(scale).astype(jnp.bfloat16)
    w_proj_bf = w_proj.astype(jnp.bfloat16)
    b_proj_col = b_proj.reshape(C, 1).astype(jnp.float32)

    kernel = functools.partial(_attention_kernel, num_heads=num_heads)

    out_bcn = pl.pallas_call(
        kernel,
        out_shape=jax.ShapeDtypeStruct((B, C, N), jnp.float32),
        grid_spec=pltpu.PrefetchScalarGridSpec(
            num_scalar_prefetch=0,
            grid=(B,),
            in_specs=[
                pl.BlockSpec((1, C, N), lambda b: (b, 0, 0)),    # x (channel-major)
                pl.BlockSpec((3 * C, C), lambda b: (0, 0)),      # W_qkv (out, in)
                pl.BlockSpec((C, C), lambda b: (0, 0)),          # W_proj (out, in)
                pl.BlockSpec((C, 1), lambda b: (0, 0)),          # b_proj
            ],
            out_specs=pl.BlockSpec((1, C, N), lambda b: (b, 0, 0)),
        ),
        compiler_params=pltpu.CompilerParams(
            dimension_semantics=("parallel",),
            vmem_limit_bytes=32 * 1024 * 1024,
        ),
    )(x_bcn, w_qkv_bf, w_proj_bf, b_proj_col)

    # (B, C, N) -> NCHW: pure reshape again.
    return out_bcn.reshape(B, C, H, W)


def attention_reference(x_nchw, w_qkv, w_proj, b_proj, *, num_heads):
    """Pure-JAX f32 reference mirroring the PyTorch forward exactly."""
    B, C, H, W = x_nchw.shape
    N = H * W
    hd = C // num_heads
    scale = hd ** (-0.5)

    x = jnp.transpose(x_nchw.reshape(B, C, N), (0, 2, 1))        # (B, N, C)
    qkv = x @ w_qkv.T                                            # (B, N, 3C)
    qkv = qkv.reshape(B, N, 3, num_heads, hd).transpose(2, 0, 3, 1, 4)
    q, k, v = qkv[0], qkv[1], qkv[2]                             # (B, h, N, hd)
    attn = (q @ jnp.swapaxes(k, -2, -1)) * scale
    attn = jax.nn.softmax(attn, axis=-1)
    y = (attn @ v).transpose(0, 2, 1, 3).reshape(B, N, C)
    y = y @ w_proj.T + b_proj
    return jnp.transpose(y, (0, 2, 1)).reshape(B, C, H, W)


if __name__ == "__main__":
    # dim=C=32, num_heads=4 (head_dim=8), 16x16 spatial -> N=256 tokens.
    B, C, H, W = 2, 32, 16, 16
    num_heads = 4

    key = jax.random.PRNGKey(0)
    kx, kqkv, kproj, kb = jax.random.split(key, 4)

    x = jax.random.normal(kx, (B, C, H, W), dtype=jnp.float32)

    # parameters in PyTorch nn.Linear layout (out_features, in_features);
    # qkv_bias=False per module default.
    w_qkv = 0.05 * jax.random.normal(kqkv, (3 * C, C), dtype=jnp.float32)
    w_proj = 0.05 * jax.random.normal(kproj, (C, C), dtype=jnp.float32)
    b_proj = 0.05 * jax.random.normal(kb, (C,), dtype=jnp.float32)

    out = attention_pallas(x, w_qkv, w_proj, b_proj, num_heads=num_heads)
    out = jax.block_until_ready(out)

    ref = attention_reference(x, w_qkv, w_proj, b_proj, num_heads=num_heads)
    assert out.shape == (B, C, H, W)
    # bf16 MXU operands + approx reciprocal -> small numeric delta vs f32 ref.
    max_err = float(jnp.max(jnp.abs(out - ref)))
    assert jnp.allclose(out, ref, atol=5e-3, rtol=5e-3), (
        f"mismatch vs reference; max abs err = {max_err}")

    print("KERNEL_OK")
</pallas_src>

<mosaic_0001>
module attributes {stable_mosaic.version = 11 : i64} {
  func.func @_attention_kernel(%arg0: i32, %arg1: memref<1x32x256xf32, #tpu.memory_space<vmem>>, %arg2: memref<96x32xbf16, #tpu.memory_space<vmem>>, %arg3: memref<32x32xbf16, #tpu.memory_space<vmem>>, %arg4: memref<32x1xf32, #tpu.memory_space<vmem>>, %arg5: memref<1x32x256xf32, #tpu.memory_space<vmem>>) attributes {dimension_semantics = [#tpu.dimension_semantics<parallel>], iteration_bounds = array<i64: 2>, scalar_prefetch = 0 : i64, scratch_operands = 0 : i64, tpu.core_type = #tpu.core_type<tc>, window_params = [{transform_indices = @transform_0, window_bounds = array<i64: 1, 32, 256>}, {pipeline_mode = #tpu.pipeline_mode<synchronous>, transform_indices = @transform_1, window_bounds = array<i64: 96, 32>}, {pipeline_mode = #tpu.pipeline_mode<synchronous>, transform_indices = @transform_2, window_bounds = array<i64: 32, 32>}, {pipeline_mode = #tpu.pipeline_mode<synchronous>, transform_indices = @transform_3, window_bounds = array<i64: 32, 1>}, {transform_indices = @transform_4, window_bounds = array<i64: 1, 32, 256>}]} {
    %c0 = arith.constant 0 : index
    %c0_0 = arith.constant 0 : index
    %c0_1 = arith.constant 0 : index
    %0 = vector.load %arg1[%c0, %c0_0, %c0_1] : memref<1x32x256xf32, #tpu.memory_space<vmem>>, vector<1x32x256xf32>
    %1 = vector.shape_cast %0 : vector<1x32x256xf32> to vector<32x256xf32>
    %2 = arith.truncf %1 : vector<32x256xf32> to vector<32x256xbf16>
    %c0_2 = arith.constant 0 : index
    %c0_3 = arith.constant 0 : index
    %3 = vector.load %arg2[%c0_2, %c0_3] : memref<96x32xbf16, #tpu.memory_space<vmem>>, vector<96x32xbf16>
    %cst = arith.constant dense<0.000000e+00> : vector<96x256xf32>
    %4 = tpu.matmul %3, %2, %cst {dimension_numbers = #tpu.dot_dimension_numbers<[1], [0], [0], [1], [0, 0, 1, 1], [], []>} : vector<96x32xbf16>, vector<32x256xbf16>, vector<96x256xf32> -> vector<96x256xf32>
    %5 = vector.extract_strided_slice %4 {offsets = [0, 0], sizes = [32, 256], strides = [1, 1]} : vector<96x256xf32> to vector<32x256xf32>
    %6 = vector.shape_cast %5 : vector<32x256xf32> to vector<4x8x256xf32>
    %7 = vector.extract_strided_slice %4 {offsets = [32, 0], sizes = [32, 256], strides = [1, 1]} : vector<96x256xf32> to vector<32x256xf32>
    %8 = vector.shape_cast %7 : vector<32x256xf32> to vector<4x8x256xf32>
    %9 = arith.truncf %8 : vector<4x8x256xf32> to vector<4x8x256xbf16>
    %10 = vector.extract_strided_slice %4 {offsets = [64, 0], sizes = [32, 256], strides = [1, 1]} : vector<96x256xf32> to vector<32x256xf32>
    %11 = vector.shape_cast %10 : vector<32x256xf32> to vector<4x8x256xf32>
    %12 = arith.truncf %11 : vector<4x8x256xf32> to vector<4x8x256xbf16>
    %13 = tpu.transpose %6, [0, 2, 1] : vector<4x8x256xf32> -> vector<4x256x8xf32>
    %14 = arith.truncf %13 : vector<4x256x8xf32> to vector<4x256x8xbf16>
    "tpu.trace_start"() <{level = 10 : i32, message = "hqd,hdk->hqk"}> : () -> ()
    %cst_4 = arith.constant dense<0.000000e+00> : vector<4x256x256xf32>
    %15 = tpu.matmul %14, %9, %cst_4 {dimension_numbers = #tpu.dot_dimension_numbers<[2], [1], [1], [2], [0, 0, 0, 1, 1, 2], [0], [0]>} : vector<4x256x8xbf16>, vector<4x8x256xbf16>, vector<4x256x256xf32> -> vector<4x256x256xf32>
    "tpu.trace_stop"() : () -> ()
    %cst_5 = arith.constant dense<0xFF800000> : vector<4x256xf32>
    %16 = vector.multi_reduction <maximumf>, %15, %cst_5 [2] : vector<4x256x256xf32> to vector<4x256xf32>
    %17 = vector.shape_cast %16 : vector<4x256xf32> to vector<4x256x1xf32>
    %18 = vector.broadcast %17 : vector<4x256x1xf32> to vector<4x256x256xf32>
    %19 = arith.subf %15, %18 : vector<4x256x256xf32>
    %20 = math.exp %19 : vector<4x256x256xf32>
    %cst_6 = arith.constant dense<0.000000e+00> : vector<4x256xf32>
    %21 = vector.multi_reduction <add>, %20, %cst_6 [2] : vector<4x256x256xf32> to vector<4x256xf32>
    %22 = vector.shape_cast %21 : vector<4x256xf32> to vector<4x256x1xf32>
    %23 = tpu.reciprocal %22 {approx = true} : vector<4x256x1xf32> -> vector<4x256x1xf32>
    %24 = vector.broadcast %23 : vector<4x256x1xf32> to vector<4x256x256xf32>
    %25 = arith.mulf %20, %24 : vector<4x256x256xf32>
    %26 = arith.truncf %25 : vector<4x256x256xf32> to vector<4x256x256xbf16>
    "tpu.trace_start"() <{level = 10 : i32, message = "hdk,hqk->hdq"}> : () -> ()
    %cst_7 = arith.constant dense<0.000000e+00> : vector<4x8x256xf32>
    %27 = tpu.matmul %12, %26, %cst_7 {dimension_numbers = #tpu.dot_dimension_numbers<[2], [2], [1], [1], [0, 0, 0, 1, 1, 1], [0], [0]>} : vector<4x8x256xbf16>, vector<4x256x256xbf16>, vector<4x8x256xf32> -> vector<4x8x256xf32>
    "tpu.trace_stop"() : () -> ()
    %28 = vector.shape_cast %27 : vector<4x8x256xf32> to vector<32x256xf32>
    %29 = arith.truncf %28 : vector<32x256xf32> to vector<32x256xbf16>
    %c0_8 = arith.constant 0 : index
    %c0_9 = arith.constant 0 : index
    %30 = vector.load %arg3[%c0_8, %c0_9] : memref<32x32xbf16, #tpu.memory_space<vmem>>, vector<32x32xbf16>
    %cst_10 = arith.constant dense<0.000000e+00> : vector<32x256xf32>
    %31 = tpu.matmul %30, %29, %cst_10 {dimension_numbers = #tpu.dot_dimension_numbers<[1], [0], [0], [1], [0, 0, 1, 1], [], []>} : vector<32x32xbf16>, vector<32x256xbf16>, vector<32x256xf32> -> vector<32x256xf32>
    %c0_11 = arith.constant 0 : index
    %c0_12 = arith.constant 0 : index
    %32 = vector.load %arg4[%c0_11, %c0_12] : memref<32x1xf32, #tpu.memory_space<vmem>>, vector<32x1xf32>
    %33 = vector.broadcast %32 : vector<32x1xf32> to vector<32x256xf32>
    %34 = arith.addf %31, %33 : vector<32x256xf32>
    %c0_13 = arith.constant 0 : index
    %c0_14 = arith.constant 0 : index
    %c0_15 = arith.constant 0 : index
    %35 = vector.load %arg5[%c0_13, %c0_14, %c0_15] : memref<1x32x256xf32, #tpu.memory_space<vmem>>, vector<1x32x256xf32>
    %36 = vector.shape_cast %35 : vector<1x32x256xf32> to vector<32x256xf32>
    %37 = vector.shape_cast %34 : vector<32x256xf32> to vector<1x32x256xf32>
    tpu.vector_store %arg5[%c0_13, %c0_14, %c0_15], %37 {strides = array<i32>} : memref<1x32x256xf32, #tpu.memory_space<vmem>>, vector<1x32x256xf32>,
    return
  }
  func.func @transform_0(%arg0: i32) -> (i32, i32, i32) {
    %c0_i32 = arith.constant 0 : i32
    %c0_i32_0 = arith.constant 0 : i32
    %c0_i32_1 = arith.constant 0 : i32
    return %arg0, %c0_i32, %c0_i32_0 : i32, i32, i32
  }
  func.func @transform_1(%arg0: i32) -> (i32, i32) {
    %c0_i32 = arith.constant 0 : i32
    %c0_i32_0 = arith.constant 0 : i32
    %c0_i32_1 = arith.constant 0 : i32
    return %c0_i32, %c0_i32_0 : i32, i32
  }
  func.func @transform_2(%arg0: i32) -> (i32, i32) {
    %c0_i32 = arith.constant 0 : i32
    %c0_i32_0 = arith.constant 0 : i32
    %c0_i32_1 = arith.constant 0 : i32
    return %c0_i32, %c0_i32_0 : i32, i32
  }
  func.func @transform_3(%arg0: i32) -> (i32, i32) {
    %c0_i32 = arith.constant 0 : i32
    %c0_i32_0 = arith.constant 0 : i32
    %c0_i32_1 = arith.constant 0 : i32
    return %c0_i32, %c0_i32_0 : i32, i32
  }
  func.func @transform_4(%arg0: i32) -> (i32, i32, i32) {
    %c0_i32 = arith.constant 0 : i32
    %c0_i32_0 = arith.constant 0 : i32
    %c0_i32_1 = arith.constant 0 : i32
    return %arg0, %c0_i32, %c0_i32_0 : i32, i32, i32
  }
}

</mosaic_0001>

<llo_original>
// kernel: tpu_custom_call.1
$region0: #{tpu_custom_call.1}
  #allocation0 [shape = 'u32[]', space=smem, size = 0x4, offset = 0x4, fixed_abs, tag = 'smem constant byte address 0x4 - core index']
  #allocation1 [shape = 'u32[144,128]{1,0:T(1,128)}', space=vmem, size = 0x12000, scoped, tag = 'internal scratch']
  %s0 = inlined_call_operand.hbm [shape: f32[2,32,256], index: 0, kind: input, shape index: {}]
  %s1 = inlined_call_operand.vmem [shape: bf16[96,32], index: 1, kind: input, shape index: {}]
  %s2 = inlined_call_operand.vmem [shape: bf16[32,32], index: 2, kind: input, shape index: {}]
  %s3 = inlined_call_operand.vmem [shape: f32[32,1], index: 3, kind: input, shape index: {}]
  %s4 = inlined_call_operand.hbm [shape: f32[2,32,256], index: 4, kind: output, shape index: {}]
  %s5 = sld [smem:[#allocation0]]
  $region53: #{tpu_custom_call.1} parent=0
    _
  %s7 = ssub.s32 1, %s5
  %s8 = scalar_select 0, %s7, %s5
  $region1: #{tpu_custom_call.1} parent=0
    #allocation2 [shape = 'u8[65536]{0}', space=vmem, size = 0x10000, scoped, tag = 'input window, operand 0']
    #allocation3 [shape = 's32[2]{0}', space=sflag, size = 0x8, scoped, tag = 'scoped memory for tpu_custom_call.1']
    #allocation4 [shape = 's32[2]{0}', space=sflag, size = 0x8, scoped, tag = 'scoped memory for tpu_custom_call.1']
    #allocation5 [shape = 'u8[65536]{0}', space=vmem, size = 0x10000, scoped, tag = 'output window, operand 0']
    %9 = vsyncpa [#allocation3], 0
    %s10 = scalar_lea.sflag [#allocation3], 1
    %11 = vsyncpa %s10, 0
    %12 = vsyncpa [#allocation4], 0
    %s13 = scalar_lea.sflag [#allocation4], 1
    %14 = vsyncpa %s13, 0
    loop: start=0, step=1, limit=4
    $region2: #{tpu_custom_call.1} parent=1 // loop_pre_header
      _
    $region3: #{tpu_custom_call.1} parent=1 // loop_header
      %s16 = sphi 0, %s20
      %p17 = scmp.ge.s32.totalorder %s16, 4
      %s26 = sphi 0, %s28
      %s29 = sphi 0, %s26
      %s30 = sphi 0, %s29
      %s46 = sphi 0, %s30
      %s50 = sphi 0, %s50
      %s52 = sphi 0, %s50
      %s53 = sphi 0, %s52
      %s67 = sphi 0, %s53
      %s71 = sphi 0, %s71
      %s73 = sphi 0, %s71
      %s74 = sphi 0, %s73
      %s88 = sphi 0, %s74
      %s92 = sphi 0, %s92
      %s94 = sphi 0, %s92
      %s95 = sphi 0, %s94
      %s109 = sphi 0, %s95
      %s115 = sphi 0, %s117
      %s118 = sphi 0, %s115
      %s119 = sphi 0, %s118
      %s135 = sphi 0, %s119
    $region4: #{tpu_custom_call.1} parent=1 // loop_header_branch
      %19 = sbr.rel (%p17) target = $region8
    $region5: #{tpu_custom_call.1} parent=1 // loop_body
      %s21 = ssub.s32 %s16, 1
      %s22 = ssub.s32 %s16, 2
      %s23 = sadd.s32 %s16, 1
      %s24 = ssub.s32 %s16, %s23
      %p25 = scmp.eq.s32.totalorder %s24, 0
      %s27 = sadd.s32 %s26, 1
      %s28 = scalar_select %p25, %s26, %s27
      %p31 = pneg %p25
      %p32 = scmp.eq.s32.totalorder %s16, 1
      %p33 = por %p31, %p32
      %p34 = scmp.ne.s32.totalorder %s26, %s29
      %p35 = scmp.eq.s32.totalorder %s16, 0
      %p36 = por %p34, %p35
      %p37 = scmp.ne.s32.totalorder %s26, %s29
      %p38 = scmp.eq.s32.totalorder %s21, 1
      %p39 = por %p37, %p38
      %p40 = scmp.ne.s32.totalorder %s29, %s30
      %p41 = scmp.eq.s32.totalorder %s21, 0
      %p42 = por %p40, %p41
      %p43 = scmp.ne.s32.totalorder %s29, %s30
      %p44 = scmp.eq.s32.totalorder %s22, 1
      %p45 = por %p43, %p44
      %p47 = scmp.ne.s32.totalorder %s30, %s46
      %p48 = scmp.eq.s32.totalorder %s22, 0
      %p49 = por %p47, %p48
      %s51 = sadd.s32 %s50, 1
      %p54 = scmp.eq.s32.totalorder %s16, 1
      %p55 = scmp.ne.s32.totalorder %s50, %s52
      %p56 = scmp.eq.s32.totalorder %s16, 0
      %p57 = por %p55, %p56
      %p58 = scmp.ne.s32.totalorder %s50, %s52
      %p59 = scmp.eq.s32.totalorder %s21, 1
      %p60 = por %p58, %p59
      %p61 = scmp.ne.s32.totalorder %s52, %s53
      %p62 = scmp.eq.s32.totalorder %s21, 0
      %p63 = por %p61, %p62
      %p64 = scmp.ne.s32.totalorder %s52, %s53
      %p65 = scmp.eq.s32.totalorder %s22, 1
      %p66 = por %p64, %p65
      %p68 = scmp.ne.s32.totalorder %s53, %s67
      %p69 = scmp.eq.s32.totalorder %s22, 0
      %p70 = por %p68, %p69
      %s72 = sadd.s32 %s71, 1
      %p75 = scmp.eq.s32.totalorder %s16, 1
      %p76 = scmp.ne.s32.totalorder %s71, %s73
      %p77 = scmp.eq.s32.totalorder %s16, 0
      %p78 = por %p76, %p77
      %p79 = scmp.ne.s32.totalorder %s71, %s73
      %p80 = scmp.eq.s32.totalorder %s21, 1
      %p81 = por %p79, %p80
      %p82 = scmp.ne.s32.totalorder %s73, %s74
      %p83 = scmp.eq.s32.totalorder %s21, 0
      %p84 = por %p82, %p83
      %p85 = scmp.ne.s32.totalorder %s73, %s74
      %p86 = scmp.eq.s32.totalorder %s22, 1
      %p87 = por %p85, %p86
      %p89 = scmp.ne.s32.totalorder %s74, %s88
      %p90 = scmp.eq.s32.totalorder %s22, 0
      %p91 = por %p89, %p90
      %s93 = sadd.s32 %s92, 1
      %p96 = scmp.eq.s32.totalorder %s16, 1
      %p97 = scmp.ne.s32.totalorder %s92, %s94
      %p98 = scmp.eq.s32.totalorder %s16, 0
      %p99 = por %p97, %p98
      %p100 = scmp.ne.s32.totalorder %s92, %s94
      %p101 = scmp.eq.s32.totalorder %s21, 1
      %p102 = por %p100, %p101
      %p103 = scmp.ne.s32.totalorder %s94, %s95
      %p104 = scmp.eq.s32.totalorder %s21, 0
      %p105 = por %p103, %p104
      %p106 = scmp.ne.s32.totalorder %s94, %s95
      %p107 = scmp.eq.s32.totalorder %s22, 1
      %p108 = por %p106, %p107
      %p110 = scmp.ne.s32.totalorder %s95, %s109
      %p111 = scmp.eq.s32.totalorder %s22, 0
      %p112 = por %p110, %p111
      %s113 = ssub.s32 %s16, %s23
      %p114 = scmp.eq.s32.totalorder %s113, 0
      %s116 = sadd.s32 %s115, 1
      %s117 = scalar_select %p114, %s115, %s116
      %p120 = pneg %p114
      %p121 = scmp.eq.s32.totalorder %s16, 1
      %p122 = por %p120, %p121
      %p123 = scmp.ne.s32.totalorder %s115, %s118
      %p124 = scmp.eq.s32.totalorder %s16, 0
      %p125 = por %p123, %p124
      %p126 = scmp.ne.s32.totalorder %s115, %s118
      %p127 = scmp.eq.s32.totalorder %s21, 1
      %p128 = por %p126, %p127
      %p129 = scmp.ne.s32.totalorder %s118, %s119
      %p130 = scmp.eq.s32.totalorder %s21, 0
      %p131 = por %p129, %p130
      %p132 = scmp.ne.s32.totalorder %s118, %s119
      %p133 = scmp.eq.s32.totalorder %s22, 1
      %p134 = por %p132, %p133
      %p136 = scmp.ne.s32.totalorder %s119, %s135
      %p137 = scmp.eq.s32.totalorder %s22, 0
      %p138 = por %p136, %p137
      %p139 = scmp.le.s32.totalorder 1, %s16
      %p140 = scmp.lt.s32.totalorder %s16, 3
      %p141 = pnand %p139, %p140
      %p142 = pneg %p141
      // Predicated region
      $region9: #{tpu_custom_call.1} parent=5 // pred_check
        _
      $region10: #{tpu_custom_call.1} parent=5 // pred_check_branch
        %144 = sbr.rel (%p141) target = $region12
      $region11: #{tpu_custom_call.1} parent=5 // pred_region
        %s145 = ssub.s32 %s16, 1
        // Predicated region
        $region13: #{tpu_custom_call.1} parent=11 // pred_check
          %p146 = pneg %p63
        $region14: #{tpu_custom_call.1} parent=11 // pred_check_branch
          %148 = sbr.rel (%p146) target = $region16
        $region15: #{tpu_custom_call.1} parent=11 // pred_region
          _
        $region16: #{tpu_custom_call.1} parent=11 // pred_fallthru
          _
        // Predicated region
        $region17: #{tpu_custom_call.1} parent=11 // pred_check
          %p149 = pneg %p84
        $region18: #{tpu_custom_call.1} parent=11 // pred_check_branch
          %151 = sbr.rel (%p149) target = $region20
        $region19: #{tpu_custom_call.1} parent=11 // pred_region
          _
        $region20: #{tpu_custom_call.1} parent=11 // pred_fallthru
          _
        // Predicated region
        $region21: #{tpu_custom_call.1} parent=11 // pred_check
          %p152 = pneg %p105
        $region22: #{tpu_custom_call.1} parent=11 // pred_check_branch
          %154 = sbr.rel (%p152) target = $region24
        $region23: #{tpu_custom_call.1} parent=11 // pred_region
          _
        $region24: #{tpu_custom_call.1} parent=11 // pred_fallthru
          _
      $region12: #{tpu_custom_call.1} parent=5 // pred_fallthru
        _
      %p155 = scmp.lt.s32.totalorder %s16, 2
      // Predicated region
      $region25: #{tpu_custom_call.1} parent=5 // pred_check
        %p156 = pneg %p155
      $region26: #{tpu_custom_call.1} parent=5 // pred_check_branch
        %158 = sbr.rel (%p156) target = $region28
      $region27: #{tpu_custom_call.1} parent=5 // pred_region
        // Predicated region
        $region29: #{tpu_custom_call.1} parent=27 // pred_check
          %p159 = pneg %p36
        $region30: #{tpu_custom_call.1} parent=27 // pred_check_branch
          %161 = sbr.rel (%p159) target = $region32
        $region31: #{tpu_custom_call.1} parent=27 // pred_region
          %s162 = sand.u32 %s26, 1
          %s163 = scalar_lea.sflag [#allocation3], %s162
          %s164 = sand.u32 %s26, 1
          %s165 = smul.addr %s164, 64
          %s166 = scalar_lea.vmem [#allocation2], %s165
          %s168 = ssub.s32 1024, 1024
          %169 = vsyncadd %s163, %s168
          %s170 = smul.addr %s16, 8
          %s171 = smul.addr %s170, 128
          %s172 = scalar_lea.hbm %s0, %s171
          %s173 = sshll.u32 %s166, 4
          %s174 = int_to_ptr.vmem [resolvable:$true] %s173
          %179 = dma.hbm_to_vmem [thread:$0]  %s172, 1024, %s174, %s163, 256, 256, 16
        $region32: #{tpu_custom_call.1} parent=27 // pred_fallthru
          _
      $region28: #{tpu_custom_call.1} parent=5 // pred_fallthru
        _
      %p180 = scmp.le.s32.totalorder 1, %s16
      %p181 = scmp.lt.s32.totalorder %s16, 3
      %p182 = pnand %p180, %p181
      %p183 = pneg %p182
      // Predicated region
      $region33: #{tpu_custom_call.1} parent=5 // pred_check
        _
      $region34: #{tpu_custom_call.1} parent=5 // pred_check_branch
        %185 = sbr.rel (%p182) target = $region36
      $region35: #{tpu_custom_call.1} parent=5 // pred_region
        %s186 = ssub.s32 %s16, 1
        %s187 = sand.u32 %s29, 1
        %s188 = scalar_lea.sflag [#allocation3], %s187
        %s189 = sand.u32 %s29, 1
        %s190 = smul.addr %s189, 64
        %s191 = scalar_lea.vmem [#allocation2], %s190
        // Predicated region
        $region37: #{tpu_custom_call.1} parent=35 // pred_check
          %p192 = pneg %p42
        $region38: #{tpu_custom_call.1} parent=35 // pred_check_branch
          %194 = sbr.rel (%p192) target = $region40
        $region39: #{tpu_custom_call.1} parent=35 // pred_region
          %195 = dma.done %s188, 1024
        $region40: #{tpu_custom_call.1} parent=35 // pred_fallthru
          _
        %s196 = sand.u32 %s29, 1
        %s197 = scalar_lea.sflag [#allocation3], %s196
        %s198 = sand.u32 %s29, 1
        %s199 = smul.addr %s198, 64
        %s200 = scalar_lea.vmem [#allocation2], %s199
        %p201 = pneg %p42
        %p202 = pneg %p39
        %p203 = pneg %p63
        %p204 = pneg %p60
        %p205 = pneg %p84
        %p206 = pneg %p81
        %p207 = pneg %p105
        %p208 = pneg %p102
        %p209 = pneg %p131
        %p210 = pneg %p128
        %s211 = sand.u32 %s118, 1
        %s212 = scalar_lea.sflag [#allocation4], %s211
        %s213 = sand.u32 %s118, 1
        %s214 = smul.addr %s213, 64
        %s215 = scalar_lea.vmem [#allocation5], %s214
        %v217 = vld [vmem:[%s191] sm:$0xff]
        %v218 = vld [vmem:[%s191 + $0x8] sm:$0xff]
        %v219 = vld [vmem:[%s191 + $0x10] sm:$0xff]
        %v220 = vld [vmem:[%s191 + $0x18] sm:$0xff]
        %v221 = vld [vmem:[%s191 + $0x20] sm:$0xff]
        %v222 = vld [vmem:[%s191 + $0x28] sm:$0xff]
        %v223 = vld [vmem:[%s191 + $0x30] sm:$0xff]
        %v224 = vld [vmem:[%s191 + $0x38] sm:$0xff]
        %v225 = vpack.c.bf16 %v219, %v217
        %v226 = vpack.c.bf16 %v220, %v218
        %v227 = vpack.c.bf16 %v223, %v221
        %v228 = vpack.c.bf16 %v224, %v222
        %v229 = vld [vmem:[%s1] sm:$0xf]
        %v230 = vld [vmem:[%s1 + $0x4] sm:$0xf]
        %v231 = vld [vmem:[%s1 + $0x8] sm:$0xf]
        %v232 = vld [vmem:[%s1 + $0xc] sm:$0xf]
        %v233 = vld [vmem:[%s1 + $0x10] sm:$0xf]
        %v234 = vld [vmem:[%s1 + $0x14] sm:$0xf]
        %v235 = vld [vmem:[%s1 + $0x18] sm:$0xf]
        %v236 = vld [vmem:[%s1 + $0x1c] sm:$0xf]
        %v237 = vld [vmem:[%s1 + $0x20] sm:$0xf]
        %v238 = vld [vmem:[%s1 + $0x24] sm:$0xf]
        %v239 = vld [vmem:[%s1 + $0x28] sm:$0xf]
        %v240 = vld [vmem:[%s1 + $0x2c] sm:$0xf]
        %v253 = vunpack.c.l.b16 %v229
        %v254 = vunpack.c.l.b16 %v230
        %v255 = vunpack.c.l.b16 %v231
        %v256 = vunpack.c.l.b16 %v232
        %v257 = vunpack.c.l.b16 %v233
        %v258 = vunpack.c.l.b16 %v234
        %v259 = vunpack.c.l.b16 %v235
        %v260 = vunpack.c.l.b16 %v236
        %v261 = vunpack.c.l.b16 %v237
        %v262 = vunpack.c.l.b16 %v238
        %v263 = vunpack.c.l.b16 %v239
        %v264 = vunpack.c.l.b16 %v240
        %v265 = vpack.c.b16 %v254, %v253
        %v266 = vpack.c.b16 %v256, %v255
        %v267 = vpack.c.b16 %v258, %v257
        %v268 = vpack.c.b16 %v260, %v259
        %v269 = vpack.c.b16 %v262, %v261
        %v270 = vpack.c.b16 %v264, %v263
        %vm271 = vcmask 261120
        %v273 = vsel %vm271, %v265, 0
        %v276 = vsel %vm271, %v266, 0
        %v279 = vsel %vm271, %v267, 0
        %v282 = vsel %vm271, %v268, 0
        %v285 = vsel %vm271, %v269, 0
        %v288 = vsel %vm271, %v270, 0
        %290 = vmatprep.subr.bf16.mxu0 0
        %291 = vmatpush1.bf16.msra.mxu0 0
        %292 = vmatprep.subr.bf16.mxu0 0
        %293 = vmatpush1.bf16.msra.mxu0 0
        %294 = vmatprep.subr.bf16.mxu0 0
        %295 = vmatpush1.bf16.msra.mxu0 0
        %296 = vmatprep.subr.bf16.mxu0 0
        %297 = vmatpush1.bf16.msra.mxu0 0
        %298 = vmatprep.subr.bf16.mxu0 0
        %299 = vmatpush1.bf16.msra.mxu0 0
        %300 = vmatprep.subr.bf16.mxu0 0
        %301 = vmatpush1.bf16.msra.mxu0 0
        %302 = vmatprep.subr.bf16.mxu0 %v228
        %303 = vmatpush1.bf16.msra.mxu0 %v227
        %304 = vmatprep.subr.bf16.mxu0 %v226
        %305 = vmatpush1.bf16.msra.mxu0 %v225
        %306 = vmatprep.subr.bf16.mxu0 0
        %307 = vmatpush2.bf16.msra.mxu0 0
        %308 = vmatprep.subr.bf16.mxu0 0
        %309 = vmatpush2.bf16.msra.mxu0 0
        %310 = vmatprep.subr.bf16.mxu0 0
        %311 = vmatpush2.bf16.msra.mxu0 0
        %312 = vmatprep.subr.bf16.mxu0 0
        %313 = vmatpush2.bf16.msra.mxu0 0
        %314 = vmatprep.subr.bf16.mxu0 0
        %315 = vmatpush2.bf16.msra.mxu0 0
        %316 = vmatprep.subr.bf16.mxu0 0
        %317 = vmatpush2.bf16.msra.mxu0 0
        %318 = vmatprep.subr.bf16.mxu0 0
        %319 = vmatpush2.bf16.msra.mxu0 0
        %320 = vmatprep.subr.bf16.mxu0 0
        %321 = vmatpush2.bf16.msra.mxu0 0
        %322 = vmatprep.mubr.bf16.mxu0 0
        %323 = vmatmul.mubr.bf16.gmra.mxu0 %v273
        %v324 = vpop.f32.mrf.mxu0
        %v325 = vadd.f32 0.0, %v324
        %v326 = vpop.f32.mrf.mxu0
        %v327 = vadd.f32 0.0, %v326
        %v328 = vpop.f32.mrf.mxu0
        %v329 = vadd.f32 0.0, %v328
        %v330 = vpop.f32.mrf.mxu0
        %v331 = vadd.f32 0.0, %v330
        %332 = vmatprep.mubr.bf16.mxu0 0
        %333 = vmatmul.mubr.bf16.gmra.mxu0 %v276
        %v334 = vpop.f32.mrf.mxu0
        %v335 = vadd.f32 0.0, %v334
        %v336 = vpop.f32.mrf.mxu0
        %v337 = vadd.f32 0.0, %v336
        %v338 = vpop.f32.mrf.mxu0
        %v339 = vadd.f32 0.0, %v338
        %v340 = vpop.f32.mrf.mxu0
        %v341 = vadd.f32 0.0, %v340
        %342 = vmatprep.mubr.bf16.mxu0 0
        %343 = vmatmul.mubr.bf16.gmra.mxu0 %v279
        %v344 = vpop.f32.mrf.mxu0
        %v345 = vadd.f32 0.0, %v344
        %v346 = vpop.f32.mrf.mxu0
        %v347 = vadd.f32 0.0, %v346
        %v348 = vpop.f32.mrf.mxu0
        %v349 = vadd.f32 0.0, %v348
        %v350 = vpop.f32.mrf.mxu0
        %v351 = vadd.f32 0.0, %v350
        %352 = vmatprep.mubr.bf16.mxu0 0
        %353 = vmatmul.mubr.bf16.gmra.mxu0 %v282
        %v354 = vpop.f32.mrf.mxu0
        %v355 = vadd.f32 0.0, %v354
        %v356 = vpop.f32.mrf.mxu0
        %v357 = vadd.f32 0.0, %v356
        %v358 = vpop.f32.mrf.mxu0
        %v359 = vadd.f32 0.0, %v358
        %v360 = vpop.f32.mrf.mxu0
        %v361 = vadd.f32 0.0, %v360
        %362 = vmatprep.mubr.bf16.mxu0 0
        %363 = vmatmul.mubr.bf16.gmra.mxu0 %v285
        %v364 = vpop.f32.mrf.mxu0
        %v365 = vadd.f32 0.0, %v364
        %v366 = vpop.f32.mrf.mxu0
        %v367 = vadd.f32 0.0, %v366
        %v368 = vpop.f32.mrf.mxu0
        %v369 = vadd.f32 0.0, %v368
        %v370 = vpop.f32.mrf.mxu0
        %v371 = vadd.f32 0.0, %v370
        %372 = vmatprep.mubr.bf16.mxu0 0
        %373 = vmatmul.mubr.bf16.gmra.mxu0 %v288
        %v374 = vpop.f32.mrf.mxu0
        %v375 = vadd.f32 0.0, %v374
        %v376 = vpop.f32.mrf.mxu0
        %v377 = vadd.f32 0.0, %v376
        %v378 = vpop.f32.mrf.mxu0
        %v379 = vadd.f32 0.0, %v378
        %v380 = vpop.f32.mrf.mxu0
        %v381 = vadd.f32 0.0, %v380
        %382 = vdwg.mxu0
        %v383 = vpack.c.bf16 %v345, %v345
        %v384 = vpack.c.bf16 %v347, %v347
        %v385 = vpack.c.bf16 %v349, %v349
        %v386 = vpack.c.bf16 %v351, %v351
        %v387 = vpack.c.bf16 %v355, %v355
        %v388 = vpack.c.bf16 %v357, %v357
        %v389 = vpack.c.bf16 %v359, %v359
        %v390 = vpack.c.bf16 %v361, %v361
        %v391 = vpack.c.bf16 %v365, %v365
        %v392 = vpack.c.bf16 %v367, %v367
        %v393 = vpack.c.bf16 %v369, %v369
        %v394 = vpack.c.bf16 %v371, %v371
        %v395 = vpack.c.bf16 %v375, %v375
        %v396 = vpack.c.bf16 %v377, %v377
        %v397 = vpack.c.bf16 %v379, %v379
        %v398 = vpack.c.bf16 %v381, %v381
        %399 = vxpose.xlu0.b32.start [1/16] %v325, 128
        %400 = vxpose.xlu0.b32.cont [2/16] 0.0, 128
        %401 = vxpose.xlu0.b32.cont [3/16] 0.0, 128
        %402 = vxpose.xlu0.b32.cont [4/16] 0.0, 128
        %403 = vxpose.xlu0.b32.cont [5/16] 0.0, 128
        %404 = vxpose.xlu0.b32.cont [6/16] 0.0, 128
        %405 = vxpose.xlu0.b32.cont [7/16] 0.0, 128
        %406 = vxpose.xlu0.b32.cont [8/16] 0.0, 128
        %407 = vxpose.xlu0.b32.cont [9/16] 0.0, 128
        %408 = vxpose.xlu0.b32.cont [10/16] 0.0, 128
        %409 = vxpose.xlu0.b32.cont [11/16] 0.0, 128
        %410 = vxpose.xlu0.b32.cont [12/16] 0.0, 128
        %411 = vxpose.xlu0.b32.cont [13/16] 0.0, 128
        %412 = vxpose.xlu0.b32.cont [14/16] 0.0, 128
        %413 = vxpose.xlu0.b32.cont [15/16] 0.0, 128
        %414 = vxpose.xlu0.b32.end [16/16] 0.0, 128
        %v415 = vpop.trf.xlu0
        %v416 = vpop.trf.xlu0
        %v417 = vpop.trf.xlu0
        %v418 = vpop.trf.xlu0
        %v419 = vpop.trf.xlu0
        %v420 = vpop.trf.xlu0
        %v421 = vpop.trf.xlu0
        %v422 = vpop.trf.xlu0
        %v423 = vpop.trf.xlu0
        %v424 = vpop.trf.xlu0
        %v425 = vpop.trf.xlu0
        %v426 = vpop.trf.xlu0
        %v427 = vpop.trf.xlu0
        %v428 = vpop.trf.xlu0
        %v429 = vpop.trf.xlu0
        %v430 = vpop.trf.xlu0
        %431 = vxpose.xlu0.b32.start [1/16] %v327, 128
        %432 = vxpose.xlu0.b32.cont [2/16] 0.0, 128
        %433 = vxpose.xlu0.b32.cont [3/16] 0.0, 128
        %434 = vxpose.xlu0.b32.cont [4/16] 0.0, 128
        %435 = vxpose.xlu0.b32.cont [5/16] 0.0, 128
        %436 = vxpose.xlu0.b32.cont [6/16] 0.0, 128
        %437 = vxpose.xlu0.b32.cont [7/16] 0.0, 128
        %438 = vxpose.xlu0.b32.cont [8/16] 0.0, 128
        %439 = vxpose.xlu0.b32.cont [9/16] 0.0, 128
        %440 = vxpose.xlu0.b32.cont [10/16] 0.0, 128
        %441 = vxpose.xlu0.b32.cont [11/16] 0.0, 128
        %442 = vxpose.xlu0.b32.cont [12/16] 0.0, 128
        %443 = vxpose.xlu0.b32.cont [13/16] 0.0, 128
        %444 = vxpose.xlu0.b32.cont [14/16] 0.0, 128
        %445 = vxpose.xlu0.b32.cont [15/16] 0.0, 128
        %446 = vxpose.xlu0.b32.end [16/16] 0.0, 128
        %v447 = vpop.trf.xlu0
        %v448 = vpop.trf.xlu0
        %v449 = vpop.trf.xlu0
        %v450 = vpop.trf.xlu0
        %v451 = vpop.trf.xlu0
        %v452 = vpop.trf.xlu0
        %v453 = vpop.trf.xlu0
        %v454 = vpop.trf.xlu0
        %v455 = vpop.trf.xlu0
        %v456 = vpop.trf.xlu0
        %v457 = vpop.trf.xlu0
        %v458 = vpop.trf.xlu0
        %v459 = vpop.trf.xlu0
        %v460 = vpop.trf.xlu0
        %v461 = vpop.trf.xlu0
        %v462 = vpop.trf.xlu0
        %463 = vxpose.xlu0.b32.start [1/16] %v329, 128
        %464 = vxpose.xlu0.b32.cont [2/16] 0.0, 128
        %465 = vxpose.xlu0.b32.cont [3/16] 0.0, 128
        %466 = vxpose.xlu0.b32.cont [4/16] 0.0, 128
        %467 = vxpose.xlu0.b32.cont [5/16] 0.0, 128
        %468 = vxpose.xlu0.b32.cont [6/16] 0.0, 128
        %469 = vxpose.xlu0.b32.cont [7/16] 0.0, 128
        %470 = vxpose.xlu0.b32.cont [8/16] 0.0, 128
        %471 = vxpose.xlu0.b32.cont [9/16] 0.0, 128
        %472 = vxpose.xlu0.b32.cont [10/16] 0.0, 128
        %473 = vxpose.xlu0.b32.cont [11/16] 0.0, 128
        %474 = vxpose.xlu0.b32.cont [12/16] 0.0, 128
        %475 = vxpose.xlu0.b32.cont [13/16] 0.0, 128
        %476 = vxpose.xlu0.b32.cont [14/16] 0.0, 128
        %477 = vxpose.xlu0.b32.cont [15/16] 0.0, 128
        %478 = vxpose.xlu0.b32.end [16/16] 0.0, 128
        %v479 = vpop.trf.xlu0
        %v480 = vpop.trf.xlu0
        %v481 = vpop.trf.xlu0
        %v482 = vpop.trf.xlu0
        %v483 = vpop.trf.xlu0
        %v484 = vpop.trf.xlu0
        %v485 = vpop.trf.xlu0
        %v486 = vpop.trf.xlu0
        %v487 = vpop.trf.xlu0
        %v488 = vpop.trf.xlu0
        %v489 = vpop.trf.xlu0
        %v490 = vpop.trf.xlu0
        %v491 = vpop.trf.xlu0
        %v492 = vpop.trf.xlu0
        %v493 = vpop.trf.xlu0
        %v494 = vpop.trf.xlu0
        %495 = vxpose.xlu0.b32.start [1/16] %v331, 128
        %496 = vxpose.xlu0.b32.cont [2/16] 0.0, 128
        %497 = vxpose.xlu0.b32.cont [3/16] 0.0, 128
        %498 = vxpose.xlu0.b32.cont [4/16] 0.0, 128
        %499 = vxpose.xlu0.b32.cont [5/16] 0.0, 128
        %500 = vxpose.xlu0.b32.cont [6/16] 0.0, 128
        %501 = vxpose.xlu0.b32.cont [7/16] 0.0, 128
        %502 = vxpose.xlu0.b32.cont [8/16] 0.0, 128
        %503 = vxpose.xlu0.b32.cont [9/16] 0.0, 128
        %504 = vxpose.xlu0.b32.cont [10/16] 0.0, 128
        %505 = vxpose.xlu0.b32.cont [11/16] 0.0, 128
        %506 = vxpose.xlu0.b32.cont [12/16] 0.0, 128
        %507 = vxpose.xlu0.b32.cont [13/16] 0.0, 128
        %508 = vxpose.xlu0.b32.cont [14/16] 0.0, 128
        %509 = vxpose.xlu0.b32.cont [15/16] 0.0, 128
        %510 = vxpose.xlu0.b32.end [16/16] 0.0, 128
        %v511 = vpop.trf.xlu0
        %v512 = vpop.trf.xlu0
        %v513 = vpop.trf.xlu0
        %v514 = vpop.trf.xlu0
        %v515 = vpop.trf.xlu0
        %v516 = vpop.trf.xlu0
        %v517 = vpop.trf.xlu0
        %v518 = vpop.trf.xlu0
        %v519 = vpop.trf.xlu0
        %v520 = vpop.trf.xlu0
        %v521 = vpop.trf.xlu0
        %v522 = vpop.trf.xlu0
        %v523 = vpop.trf.xlu0
        %v524 = vpop.trf.xlu0
        %v525 = vpop.trf.xlu0
        %v526 = vpop.trf.xlu0
        %527 = vxpose.xlu0.b32.start [1/16] %v335, 128
        %528 = vxpose.xlu0.b32.cont [2/16] 0.0, 128
        %529 = vxpose.xlu0.b32.cont [3/16] 0.0, 128
        %530 = vxpose.xlu0.b32.cont [4/16] 0.0, 128
        %531 = vxpose.xlu0.b32.cont [5/16] 0.0, 128
        %532 = vxpose.xlu0.b32.cont [6/16] 0.0, 128
        %533 = vxpose.xlu0.b32.cont [7/16] 0.0, 128
        %534 = vxpose.xlu0.b32.cont [8/16] 0.0, 128
        %535 = vxpose.xlu0.b32.cont [9/16] 0.0, 128
        %536 = vxpose.xlu0.b32.cont [10/16] 0.0, 128
        %537 = vxpose.xlu0.b32.cont [11/16] 0.0, 128
        %538 = vxpose.xlu0.b32.cont [12/16] 0.0, 128
        %539 = vxpose.xlu0.b32.cont [13/16] 0.0, 128
        %540 = vxpose.xlu0.b32.cont [14/16] 0.0, 128
        %541 = vxpose.xlu0.b32.cont [15/16] 0.0, 128
        %542 = vxpose.xlu0.b32.end [16/16] 0.0, 128
        %v543 = vpop.trf.xlu0
        %v544 = vpop.trf.xlu0
        %v545 = vpop.trf.xlu0
        %v546 = vpop.trf.xlu0
        %v547 = vpop.trf.xlu0
        %v548 = vpop.trf.xlu0
        %v549 = vpop.trf.xlu0
        %v550 = vpop.trf.xlu0
        %v551 = vpop.trf.xlu0
        %v552 = vpop.trf.xlu0
        %v553 = vpop.trf.xlu0
        %v554 = vpop.trf.xlu0
        %v555 = vpop.trf.xlu0
        %v556 = vpop.trf.xlu0
        %v557 = vpop.trf.xlu0
        %v558 = vpop.trf.xlu0
        %559 = vxpose.xlu0.b32.start [1/16] %v337, 128
        %560 = vxpose.xlu0.b32.cont [2/16] 0.0, 128
        %561 = vxpose.xlu0.b32.cont [3/16] 0.0, 128
        %562 = vxpose.xlu0.b32.cont [4/16] 0.0, 128
        %563 = vxpose.xlu0.b32.cont [5/16] 0.0, 128
        %564 = vxpose.xlu0.b32.cont [6/16] 0.0, 128
        %565 = vxpose.xlu0.b32.cont [7/16] 0.0, 128
        %566 = vxpose.xlu0.b32.cont [8/16] 0.0, 128
        %567 = vxpose.xlu0.b32.cont [9/16] 0.0, 128
        %568 = vxpose.xlu0.b32.cont [10/16] 0.0, 128
        %569 = vxpose.xlu0.b32.cont [11/16] 0.0, 128
        %570 = vxpose.xlu0.b32.cont [12/16] 0.0, 128
        %571 = vxpose.xlu0.b32.cont [13/16] 0.0, 128
        %572 = vxpose.xlu0.b32.cont [14/16] 0.0, 128
        %573 = vxpose.xlu0.b32.cont [15/16] 0.0, 128
        %574 = vxpose.xlu0.b32.end [16/16] 0.0, 128
        %v575 = vpop.trf.xlu0
        %v576 = vpop.trf.xlu0
        %v577 = vpop.trf.xlu0
        %v578 = vpop.trf.xlu0
        %v579 = vpop.trf.xlu0
        %v580 = vpop.trf.xlu0
        %v581 = vpop.trf.xlu0
        %v582 = vpop.trf.xlu0
        %v583 = vpop.trf.xlu0
        %v584 = vpop.trf.xlu0
        %v585 = vpop.trf.xlu0
        %v586 = vpop.trf.xlu0
        %v587 = vpop.trf.xlu0
        %v588 = vpop.trf.xlu0
        %v589 = vpop.trf.xlu0
        %v590 = vpop.trf.xlu0
        %591 = vxpose.xlu0.b32.start [1/16] %v339, 128
        %592 = vxpose.xlu0.b32.cont [2/16] 0.0, 128
        %593 = vxpose.xlu0.b32.cont [3/16] 0.0, 128
        %594 = vxpose.xlu0.b32.cont [4/16] 0.0, 128
        %595 = vxpose.xlu0.b32.cont [5/16] 0.0, 128
        %596 = vxpose.xlu0.b32.cont [6/16] 0.0, 128
        %597 = vxpose.xlu0.b32.cont [7/16] 0.0, 128
        %598 = vxpose.xlu0.b32.cont [8/16] 0.0, 128
        %599 = vxpose.xlu0.b32.cont [9/16] 0.0, 128
        %600 = vxpose.xlu0.b32.cont [10/16] 0.0, 128
        %601 = vxpose.xlu0.b32.cont [11/16] 0.0, 128
        %602 = vxpose.xlu0.b32.cont [12/16] 0.0, 128
        %603 = vxpose.xlu0.b32.cont [13/16] 0.0, 128
        %604 = vxpose.xlu0.b32.cont [14/16] 0.0, 128
        %605 = vxpose.xlu0.b32.cont [15/16] 0.0, 128
        %606 = vxpose.xlu0.b32.end [16/16] 0.0, 128
        %v607 = vpop.trf.xlu0
        %v608 = vpop.trf.xlu0
        %v609 = vpop.trf.xlu0
        %v610 = vpop.trf.xlu0
        %v611 = vpop.trf.xlu0
        %v612 = vpop.trf.xlu0
        %v613 = vpop.trf.xlu0
        %v614 = vpop.trf.xlu0
        %v615 = vpop.trf.xlu0
        %v616 = vpop.trf.xlu0
        %v617 = vpop.trf.xlu0
        %v618 = vpop.trf.xlu0
        %v619 = vpop.trf.xlu0
        %v620 = vpop.trf.xlu0
        %v621 = vpop.trf.xlu0
        %v622 = vpop.trf.xlu0
        %623 = vxpose.xlu0.b32.start [1/16] %v341, 128
        %624 = vxpose.xlu0.b32.cont [2/16] 0.0, 128
        %625 = vxpose.xlu0.b32.cont [3/16] 0.0, 128
        %626 = vxpose.xlu0.b32.cont [4/16] 0.0, 128
        %627 = vxpose.xlu0.b32.cont [5/16] 0.0, 128
        %628 = vxpose.xlu0.b32.cont [6/16] 0.0, 128
        %629 = vxpose.xlu0.b32.cont [7/16] 0.0, 128
        %630 = vxpose.xlu0.b32.cont [8/16] 0.0, 128
        %631 = vxpose.xlu0.b32.cont [9/16] 0.0, 128
        %632 = vxpose.xlu0.b32.cont [10/16] 0.0, 128
        %633 = vxpose.xlu0.b32.cont [11/16] 0.0, 128
        %634 = vxpose.xlu0.b32.cont [12/16] 0.0, 128
        %635 = vxpose.xlu0.b32.cont [13/16] 0.0, 128
        %636 = vxpose.xlu0.b32.cont [14/16] 0.0, 128
        %637 = vxpose.xlu0.b32.cont [15/16] 0.0, 128
        %638 = vxpose.xlu0.b32.end [16/16] 0.0, 128
        %v639 = vpop.trf.xlu0
        %v640 = vpop.trf.xlu0
        %v641 = vpop.trf.xlu0
        %v642 = vpop.trf.xlu0
        %v643 = vpop.trf.xlu0
        %v644 = vpop.trf.xlu0
        %v645 = vpop.trf.xlu0
        %v646 = vpop.trf.xlu0
        %v647 = vpop.trf.xlu0
        %v648 = vpop.trf.xlu0
        %v649 = vpop.trf.xlu0
        %v650 = vpop.trf.xlu0
        %v651 = vpop.trf.xlu0
        %v652 = vpop.trf.xlu0
        %v653 = vpop.trf.xlu0
        %v654 = vpop.trf.xlu0
        %v655 = vpack.c.bf16 %v416, %v415
        %v656 = vpack.c.bf16 %v418, %v417
        %v657 = vpack.c.bf16 %v420, %v419
        %v658 = vpack.c.bf16 %v422, %v421
        %v659 = vpack.c.bf16 %v424, %v423
        %v660 = vpack.c.bf16 %v426, %v425
        %v661 = vpack.c.bf16 %v428, %v427
        %v662 = vpack.c.bf16 %v430, %v429
        %v663 = vpack.c.bf16 %v448, %v447
        %v664 = vpack.c.bf16 %v450, %v449
        %v665 = vpack.c.bf16 %v452, %v451
        %v666 = vpack.c.bf16 %v454, %v453
        %v667 = vpack.c.bf16 %v456, %v455
        %v668 = vpack.c.bf16 %v458, %v457
        %v669 = vpack.c.bf16 %v460, %v459
        %v670 = vpack.c.bf16 %v462, %v461
        %v671 = vpack.c.bf16 %v480, %v479
        %v672 = vpack.c.bf16 %v482, %v481
        %v673 = vpack.c.bf16 %v484, %v483
        %v674 = vpack.c.bf16 %v486, %v485
        %v675 = vpack.c.bf16 %v488, %v487
        %v676 = vpack.c.bf16 %v490, %v489
        %v677 = vpack.c.bf16 %v492, %v491
        %v678 = vpack.c.bf16 %v494, %v493
        %v679 = vpack.c.bf16 %v512, %v511
        %v680 = vpack.c.bf16 %v514, %v513
        %v681 = vpack.c.bf16 %v516, %v515
        %v682 = vpack.c.bf16 %v518, %v517
        %v683 = vpack.c.bf16 %v520, %v519
        %v684 = vpack.c.bf16 %v522, %v521
        %v685 = vpack.c.bf16 %v524, %v523
        %v686 = vpack.c.bf16 %v526, %v525
        %v687 = vpack.c.bf16 %v544, %v543
        %v688 = vpack.c.bf16 %v546, %v545
        %v689 = vpack.c.bf16 %v548, %v547
        %v690 = vpack.c.bf16 %v550, %v549
        %v691 = vpack.c.bf16 %v552, %v551
        %v692 = vpack.c.bf16 %v554, %v553
        %v693 = vpack.c.bf16 %v556, %v555
        %v694 = vpack.c.bf16 %v558, %v557
        %v695 = vpack.c.bf16 %v576, %v575
        %v696 = vpack.c.bf16 %v578, %v577
        %v697 = vpack.c.bf16 %v580, %v579
        %v698 = vpack.c.bf16 %v582, %v581
        %v699 = vpack.c.bf16 %v584, %v583
        %v700 = vpack.c.bf16 %v586, %v585
        %v701 = vpack.c.bf16 %v588, %v587
        %v702 = vpack.c.bf16 %v590, %v589
        %v703 = vpack.c.bf16 %v608, %v607
        %v704 = vpack.c.bf16 %v610, %v609
        %v705 = vpack.c.bf16 %v612, %v611
        %v706 = vpack.c.bf16 %v614, %v613
        %v707 = vpack.c.bf16 %v616, %v615
        %v708 = vpack.c.bf16 %v618, %v617
        %v709 = vpack.c.bf16 %v620, %v619
        %v710 = vpack.c.bf16 %v622, %v621
        %v711 = vpack.c.bf16 %v640, %v639
        %v712 = vpack.c.bf16 %v642, %v641
        %v713 = vpack.c.bf16 %v644, %v643
        %v714 = vpack.c.bf16 %v646, %v645
        %v715 = vpack.c.bf16 %v648, %v647
        %v716 = vpack.c.bf16 %v650, %v649
        %v717 = vpack.c.bf16 %v652, %v651
        %v718 = vpack.c.bf16 %v654, %v653
        %vm719 = vcmask 64512
        %v721 = vsel %vm719, %v655, 0
        %v724 = vsel %vm719, %v656, 0
        %v727 = vsel %vm719, %v657, 0
        %v730 = vsel %vm719, %v658, 0
        %v733 = vsel %vm719, %v659, 0
        %v736 = vsel %vm719, %v660, 0
        %v739 = vsel %vm719, %v661, 0
        %v742 = vsel %vm719, %v662, 0
        %v745 = vsel %vm719, %v663, 0
        %v748 = vsel %vm719, %v664, 0
        %v751 = vsel %vm719, %v665, 0
        %v754 = vsel %vm719, %v666, 0
        %v757 = vsel %vm719, %v667, 0
        %v760 = vsel %vm719, %v668, 0
        %v763 = vsel %vm719, %v669, 0
        %v766 = vsel %vm719, %v670, 0
        %vm768 = vcmask 1043456
        %v770 = vsel %vm768, %v383, 0
        %v773 = vsel %vm768, %v384, 0
        %775 = vmatprep.subr.bf16.mxu0 0
        %776 = vmatpush1.bf16.msra.mxu0 0
        %777 = vmatprep.subr.bf16.mxu0 0
        %778 = vmatpush1.bf16.msra.mxu0 0
        %779 = vmatprep.subr.bf16.mxu0 0
        %780 = vmatpush1.bf16.msra.mxu0 0
        %781 = vmatprep.subr.bf16.mxu0 0
        %782 = vmatpush1.bf16.msra.mxu0 0
        %783 = vmatprep.subr.bf16.mxu0 0
        %784 = vmatpush1.bf16.msra.mxu0 0
        %785 = vmatprep.subr.bf16.mxu0 0
        %786 = vmatpush1.bf16.msra.mxu0 0
        %787 = vmatprep.subr.bf16.mxu0 0
        %788 = vmatpush1.bf16.msra.mxu0 0
        %789 = vmatprep.subr.bf16.mxu0 %v773
        %790 = vmatpush1.bf16.msra.mxu0 %v770
        %791 = vmatprep.subr.bf16.mxu0 0
        %792 = vmatpush2.bf16.msra.mxu0 0
        %793 = vmatprep.subr.bf16.mxu0 0
        %794 = vmatpush2.bf16.msra.mxu0 0
        %795 = vmatprep.subr.bf16.mxu0 0
        %796 = vmatpush2.bf16.msra.mxu0 0
        %797 = vmatprep.subr.bf16.mxu0 0
        %798 = vmatpush2.bf16.msra.mxu0 0
        %799 = vmatprep.subr.bf16.mxu0 0
        %800 = vmatpush2.bf16.msra.mxu0 0
        %801 = vmatprep.subr.bf16.mxu0 0
        %802 = vmatpush2.bf16.msra.mxu0 0
        %803 = vmatprep.subr.bf16.mxu0 0
        %804 = vmatpush2.bf16.msra.mxu0 0
        %805 = vmatprep.subr.bf16.mxu0 0
        %806 = vmatpush2.bf16.msra.mxu0 0
        %807 = vmatprep.mubr.bf16.mxu0 0
        %808 = vmatmul.mubr.bf16.gmra.mxu0 %v721
        %v809 = vpop.f32.mrf.mxu0
        %v810 = vadd.f32 0.0, %v809
        %v811 = vpop.f32.mrf.mxu0
        %v812 = vadd.f32 0.0, %v811
        %v813 = vpop.f32.mrf.mxu0
        %v814 = vadd.f32 0.0, %v813
        %v815 = vpop.f32.mrf.mxu0
        %v816 = vadd.f32 0.0, %v815
        %817 = vmatprep.mubr.bf16.mxu0 0
        %818 = vmatmul.mubr.bf16.gmra.mxu0 %v724
        %v819 = vpop.f32.mrf.mxu0
        %v820 = vadd.f32 0.0, %v819
        %v821 = vpop.f32.mrf.mxu0
        %v822 = vadd.f32 0.0, %v821
        %v823 = vpop.f32.mrf.mxu0
        %v824 = vadd.f32 0.0, %v823
        %v825 = vpop.f32.mrf.mxu0
        %v826 = vadd.f32 0.0, %v825
        %827 = vmatprep.mubr.bf16.mxu0 0
        %828 = vmatmul.mubr.bf16.gmra.mxu0 %v727
        %v829 = vpop.f32.mrf.mxu0
        %v830 = vadd.f32 0.0, %v829
        %v831 = vpop.f32.mrf.mxu0
        %v832 = vadd.f32 0.0, %v831
        %v833 = vpop.f32.mrf.mxu0
        %v834 = vadd.f32 0.0, %v833
        %v835 = vpop.f32.mrf.mxu0
        %v836 = vadd.f32 0.0, %v835
        %837 = vmatprep.mubr.bf16.mxu0 0
        %838 = vmatmul.mubr.bf16.gmra.mxu0 %v730
        %v839 = vpop.f32.mrf.mxu0
        %v840 = vadd.f32 0.0, %v839
        %v841 = vpop.f32.mrf.mxu0
        %v842 = vadd.f32 0.0, %v841
        %v843 = vpop.f32.mrf.mxu0
        %v844 = vadd.f32 0.0, %v843
        %v845 = vpop.f32.mrf.mxu0
        %v846 = vadd.f32 0.0, %v845
        %847 = vmatprep.mubr.bf16.mxu0 0
        %848 = vmatmul.mubr.bf16.gmra.mxu0 %v733
        %v849 = vpop.f32.mrf.mxu0
        %v850 = vadd.f32 0.0, %v849
        %v851 = vpop.f32.mrf.mxu0
        %v852 = vadd.f32 0.0, %v851
        %v853 = vpop.f32.mrf.mxu0
        %v854 = vadd.f32 0.0, %v853
        %v855 = vpop.f32.mrf.mxu0
        %v856 = vadd.f32 0.0, %v855
        %857 = vmatprep.mubr.bf16.mxu0 0
        %858 = vmatmul.mubr.bf16.gmra.mxu0 %v736
        %v859 = vpop.f32.mrf.mxu0
        %v860 = vadd.f32 0.0, %v859
        %v861 = vpop.f32.mrf.mxu0
        %v862 = vadd.f32 0.0, %v861
        %v863 = vpop.f32.mrf.mxu0
        %v864 = vadd.f32 0.0, %v863
        %v865 = vpop.f32.mrf.mxu0
        %v866 = vadd.f32 0.0, %v865
        %867 = vmatprep.mubr.bf16.mxu0 0
        %868 = vmatmul.mubr.bf16.gmra.mxu0 %v739
        %v869 = vpop.f32.mrf.mxu0
        %v870 = vadd.f32 0.0, %v869
        %v871 = vpop.f32.mrf.mxu0
        %v872 = vadd.f32 0.0, %v871
        %v873 = vpop.f32.mrf.mxu0
        %v874 = vadd.f32 0.0, %v873
        %v875 = vpop.f32.mrf.mxu0
        %v876 = vadd.f32 0.0, %v875
        %877 = vmatprep.mubr.bf16.mxu0 0
        %878 = vmatmul.mubr.bf16.gmra.mxu0 %v742
        %v879 = vpop.f32.mrf.mxu0
        %v880 = vadd.f32 0.0, %v879
        %v881 = vpop.f32.mrf.mxu0
        %v882 = vadd.f32 0.0, %v881
        %v883 = vpop.f32.mrf.mxu0
        %v884 = vadd.f32 0.0, %v883
        %v885 = vpop.f32.mrf.mxu0
        %v886 = vadd.f32 0.0, %v885
        %887 = vmatprep.mubr.bf16.mxu0 0
        %888 = vmatmul.mubr.bf16.gmra.mxu0 %v745
        %v889 = vpop.f32.mrf.mxu0
        %v890 = vadd.f32 0.0, %v889
        %v891 = vpop.f32.mrf.mxu0
        %v892 = vadd.f32 0.0, %v891
        %v893 = vpop.f32.mrf.mxu0
        %v894 = vadd.f32 0.0, %v893
        %v895 = vpop.f32.mrf.mxu0
        %v896 = vadd.f32 0.0, %v895
        %897 = vmatprep.mubr.bf16.mxu0 0
        %898 = vmatmul.mubr.bf16.gmra.mxu0 %v748
        %v899 = vpop.f32.mrf.mxu0
        %v900 = vadd.f32 0.0, %v899
        %v901 = vpop.f32.mrf.mxu0
        %v902 = vadd.f32 0.0, %v901
        %v903 = vpop.f32.mrf.mxu0
        %v904 = vadd.f32 0.0, %v903
        %v905 = vpop.f32.mrf.mxu0
        %v906 = vadd.f32 0.0, %v905
        %907 = vmatprep.mubr.bf16.mxu0 0
        %908 = vmatmul.mubr.bf16.gmra.mxu0 %v751
        %v909 = vpop.f32.mrf.mxu0
        %v910 = vadd.f32 0.0, %v909
        %v911 = vpop.f32.mrf.mxu0
        %v912 = vadd.f32 0.0, %v911
        %v913 = vpop.f32.mrf.mxu0
        %v914 = vadd.f32 0.0, %v913
        %v915 = vpop.f32.mrf.mxu0
        %v916 = vadd.f32 0.0, %v915
        %917 = vmatprep.mubr.bf16.mxu0 0
        %918 = vmatmul.mubr.bf16.gmra.mxu0 %v754
        %v919 = vpop.f32.mrf.mxu0
        %v920 = vadd.f32 0.0, %v919
        %v921 = vpop.f32.mrf.mxu0
        %v922 = vadd.f32 0.0, %v921
        %v923 = vpop.f32.mrf.mxu0
        %v924 = vadd.f32 0.0, %v923
        %v925 = vpop.f32.mrf.mxu0
        %v926 = vadd.f32 0.0, %v925
        %927 = vmatprep.mubr.bf16.mxu0 0
        %928 = vmatmul.mubr.bf16.gmra.mxu0 %v757
        %v929 = vpop.f32.mrf.mxu0
        %v930 = vadd.f32 0.0, %v929
        %v931 = vpop.f32.mrf.mxu0
        %v932 = vadd.f32 0.0, %v931
        %v933 = vpop.f32.mrf.mxu0
        %v934 = vadd.f32 0.0, %v933
        %v935 = vpop.f32.mrf.mxu0
        %v936 = vadd.f32 0.0, %v935
        %937 = vmatprep.mubr.bf16.mxu0 0
        %938 = vmatmul.mubr.bf16.gmra.mxu0 %v760
        %v939 = vpop.f32.mrf.mxu0
        %v940 = vadd.f32 0.0, %v939
        %v941 = vpop.f32.mrf.mxu0
        %v942 = vadd.f32 0.0, %v941
        %v943 = vpop.f32.mrf.mxu0
        %v944 = vadd.f32 0.0, %v943
        %v945 = vpop.f32.mrf.mxu0
        %v946 = vadd.f32 0.0, %v945
        %947 = vmatprep.mubr.bf16.mxu0 0
        %948 = vmatmul.mubr.bf16.gmra.mxu0 %v763
        %v949 = vpop.f32.mrf.mxu0
        %v950 = vadd.f32 0.0, %v949
        %v951 = vpop.f32.mrf.mxu0
        %v952 = vadd.f32 0.0, %v951
        %v953 = vpop.f32.mrf.mxu0
        %v954 = vadd.f32 0.0, %v953
        %v955 = vpop.f32.mrf.mxu0
        %v956 = vadd.f32 0.0, %v955
        %957 = vmatprep.mubr.bf16.mxu0 0
        %958 = vmatmul.mubr.bf16.gmra.mxu0 %v766
        %v959 = vpop.f32.mrf.mxu0
        %v960 = vadd.f32 0.0, %v959
        %v961 = vpop.f32.mrf.mxu0
        %v962 = vadd.f32 0.0, %v961
        %v963 = vpop.f32.mrf.mxu0
        %v964 = vadd.f32 0.0, %v963
        %v965 = vpop.f32.mrf.mxu0
        %v966 = vadd.f32 0.0, %v965
        %967 = vdwg.mxu0
        %v969 = vsel %vm719, %v671, 0
        %v972 = vsel %vm719, %v672, 0
        %v975 = vsel %vm719, %v673, 0
        %v978 = vsel %vm719, %v674, 0
        %v981 = vsel %vm719, %v675, 0
        %v984 = vsel %vm719, %v676, 0
        %v987 = vsel %vm719, %v677, 0
        %v990 = vsel %vm719, %v678, 0
        %v993 = vsel %vm719, %v679, 0
        %v996 = vsel %vm719, %v680, 0
        %v999 = vsel %vm719, %v681, 0
        %v1002 = vsel %vm719, %v682, 0
        %v1005 = vsel %vm719, %v683, 0
        %v1008 = vsel %vm719, %v684, 0
        %v1011 = vsel %vm719, %v685, 0
        %v1014 = vsel %vm719, %v686, 0
        %v1017 = vsel %vm768, %v385, 0
        %v1020 = vsel %vm768, %v386, 0
        %1022 = vmatprep.subr.bf16.mxu0 0
        %1023 = vmatpush1.bf16.msra.mxu0 0
        %1024 = vmatprep.subr.bf16.mxu0 0
        %1025 = vmatpush1.bf16.msra.mxu0 0
        %1026 = vmatprep.subr.bf16.mxu0 0
        %1027 = vmatpush1.bf16.msra.mxu0 0
        %1028 = vmatprep.subr.bf16.mxu0 0
        %1029 = vmatpush1.bf16.msra.mxu0 0
        %1030 = vmatprep.subr.bf16.mxu0 0
        %1031 = vmatpush1.bf16.msra.mxu0 0
        %1032 = vmatprep.subr.bf16.mxu0 0
        %1033 = vmatpush1.bf16.msra.mxu0 0
        %1034 = vmatprep.subr.bf16.mxu0 0
        %1035 = vmatpush1.bf16.msra.mxu0 0
        %1036 = vmatprep.subr.bf16.mxu0 %v1020
        %1037 = vmatpush1.bf16.msra.mxu0 %v1017
        %1038 = vmatprep.subr.bf16.mxu0 0
        %1039 = vmatpush2.bf16.msra.mxu0 0
        %1040 = vmatprep.subr.bf16.mxu0 0
        %1041 = vmatpush2.bf16.msra.mxu0 0
        %1042 = vmatprep.subr.bf16.mxu0 0
        %1043 = vmatpush2.bf16.msra.mxu0 0
        %1044 = vmatprep.subr.bf16.mxu0 0
        %1045 = vmatpush2.bf16.msra.mxu0 0
        %1046 = vmatprep.subr.bf16.mxu0 0
        %1047 = vmatpush2.bf16.msra.mxu0 0
        %1048 = vmatprep.subr.bf16.mxu0 0
        %1049 = vmatpush2.bf16.msra.mxu0 0
        %1050 = vmatprep.subr.bf16.mxu0 0
        %1051 = vmatpush2.bf16.msra.mxu0 0
        %1052 = vmatprep.subr.bf16.mxu0 0
        %1053 = vmatpush2.bf16.msra.mxu0 0
        %1054 = vmatprep.mubr.bf16.mxu0 0
        %1055 = vmatmul.mubr.bf16.gmra.mxu0 %v969
        %v1056 = vpop.f32.mrf.mxu0
        %v1057 = vadd.f32 0.0, %v1056
        %v1058 = vpop.f32.mrf.mxu0
        %v1059 = vadd.f32 0.0, %v1058
        %v1060 = vpop.f32.mrf.mxu0
        %v1061 = vadd.f32 0.0, %v1060
        %v1062 = vpop.f32.mrf.mxu0
        %v1063 = vadd.f32 0.0, %v1062
        %1064 = vmatprep.mubr.bf16.mxu0 0
        %1065 = vmatmul.mubr.bf16.gmra.mxu0 %v972
        %v1066 = vpop.f32.mrf.mxu0
        %v1067 = vadd.f32 0.0, %v1066
        %v1068 = vpop.f32.mrf.mxu0
        %v1069 = vadd.f32 0.0, %v1068
        %v1070 = vpop.f32.mrf.mxu0
        %v1071 = vadd.f32 0.0, %v1070
        %v1072 = vpop.f32.mrf.mxu0
        %v1073 = vadd.f32 0.0, %v1072
        %1074 = vmatprep.mubr.bf16.mxu0 0
        %1075 = vmatmul.mubr.bf16.gmra.mxu0 %v975
        %v1076 = vpop.f32.mrf.mxu0
        %v1077 = vadd.f32 0.0, %v1076
        %v1078 = vpop.f32.mrf.mxu0
        %v1079 = vadd.f32 0.0, %v1078
        %v1080 = vpop.f32.mrf.mxu0
        %v1081 = vadd.f32 0.0, %v1080
        %v1082 = vpop.f32.mrf.mxu0
        %v1083 = vadd.f32 0.0, %v1082
        %1084 = vmatprep.mubr.bf16.mxu0 0
        %1085 = vmatmul.mubr.bf16.gmra.mxu0 %v978
        %v1086 = vpop.f32.mrf.mxu0
        %v1087 = vadd.f32 0.0, %v1086
        %v1088 = vpop.f32.mrf.mxu0
        %v1089 = vadd.f32 0.0, %v1088
        %v1090 = vpop.f32.mrf.mxu0
        %v1091 = vadd.f32 0.0, %v1090
        %v1092 = vpop.f32.mrf.mxu0
        %v1093 = vadd.f32 0.0, %v1092
        %1094 = vmatprep.mubr.bf16.mxu0 0
        %1095 = vmatmul.mubr.bf16.gmra.mxu0 %v981
        %v1096 = vpop.f32.mrf.mxu0
        %v1097 = vadd.f32 0.0, %v1096
        %v1098 = vpop.f32.mrf.mxu0
        %v1099 = vadd.f32 0.0, %v1098
        %v1100 = vpop.f32.mrf.mxu0
        %v1101 = vadd.f32 0.0, %v1100
        %v1102 = vpop.f32.mrf.mxu0
        %v1103 = vadd.f32 0.0, %v1102
        %1104 = vmatprep.mubr.bf16.mxu0 0
        %1105 = vmatmul.mubr.bf16.gmra.mxu0 %v984
        %v1106 = vpop.f32.mrf.mxu0
        %v1107 = vadd.f32 0.0, %v1106
        %v1108 = vpop.f32.mrf.mxu0
        %v1109 = vadd.f32 0.0, %v1108
        %v1110 = vpop.f32.mrf.mxu0
        %v1111 = vadd.f32 0.0, %v1110
        %v1112 = vpop.f32.mrf.mxu0
        %v1113 = vadd.f32 0.0, %v1112
        %1114 = vmatprep.mubr.bf16.mxu0 0
        %1115 = vmatmul.mubr.bf16.gmra.mxu0 %v987
        %v1116 = vpop.f32.mrf.mxu0
        %v1117 = vadd.f32 0.0, %v1116
        %v1118 = vpop.f32.mrf.mxu0
        %v1119 = vadd.f32 0.0, %v1118
        %v1120 = vpop.f32.mrf.mxu0
        %v1121 = vadd.f32 0.0, %v1120
        %v1122 = vpop.f32.mrf.mxu0
        %v1123 = vadd.f32 0.0, %v1122
        %1124 = vmatprep.mubr.bf16.mxu0 0
        %1125 = vmatmul.mubr.bf16.gmra.mxu0 %v990
        %v1126 = vpop.f32.mrf.mxu0
        %v1127 = vadd.f32 0.0, %v1126
        %v1128 = vpop.f32.mrf.mxu0
        %v1129 = vadd.f32 0.0, %v1128
        %v1130 = vpop.f32.mrf.mxu0
        %v1131 = vadd.f32 0.0, %v1130
        %v1132 = vpop.f32.mrf.mxu0
        %v1133 = vadd.f32 0.0, %v1132
        %1134 = vmatprep.mubr.bf16.mxu0 0
        %1135 = vmatmul.mubr.bf16.gmra.mxu0 %v993
        %v1136 = vpop.f32.mrf.mxu0
        %v1137 = vadd.f32 0.0, %v1136
        %v1138 = vpop.f32.mrf.mxu0
        %v1139 = vadd.f32 0.0, %v1138
        %v1140 = vpop.f32.mrf.mxu0
        %v1141 = vadd.f32 0.0, %v1140
        %v1142 = vpop.f32.mrf.mxu0
        %v1143 = vadd.f32 0.0, %v1142
        %1144 = vmatprep.mubr.bf16.mxu0 0
        %1145 = vmatmul.mubr.bf16.gmra.mxu0 %v996
        %v1146 = vpop.f32.mrf.mxu0
        %v1147 = vadd.f32 0.0, %v1146
        %v1148 = vpop.f32.mrf.mxu0
        %v1149 = vadd.f32 0.0, %v1148
        %v1150 = vpop.f32.mrf.mxu0
        %v1151 = vadd.f32 0.0, %v1150
        %v1152 = vpop.f32.mrf.mxu0
        %v1153 = vadd.f32 0.0, %v1152
        %1154 = vmatprep.mubr.bf16.mxu0 0
        %1155 = vmatmul.mubr.bf16.gmra.mxu0 %v999
        %v1156 = vpop.f32.mrf.mxu0
        %v1157 = vadd.f32 0.0, %v1156
        %v1158 = vpop.f32.mrf.mxu0
        %v1159 = vadd.f32 0.0, %v1158
        %v1160 = vpop.f32.mrf.mxu0
        %v1161 = vadd.f32 0.0, %v1160
        %v1162 = vpop.f32.mrf.mxu0
        %v1163 = vadd.f32 0.0, %v1162
        %1164 = vmatprep.mubr.bf16.mxu0 0
        %1165 = vmatmul.mubr.bf16.gmra.mxu0 %v1002
        %v1166 = vpop.f32.mrf.mxu0
        %v1167 = vadd.f32 0.0, %v1166
        %v1168 = vpop.f32.mrf.mxu0
        %v1169 = vadd.f32 0.0, %v1168
        %v1170 = vpop.f32.mrf.mxu0
        %v1171 = vadd.f32 0.0, %v1170
        %v1172 = vpop.f32.mrf.mxu0
        %v1173 = vadd.f32 0.0, %v1172
        %1174 = vmatprep.mubr.bf16.mxu0 0
        %1175 = vmatmul.mubr.bf16.gmra.mxu0 %v1005
        %v1176 = vpop.f32.mrf.mxu0
        %v1177 = vadd.f32 0.0, %v1176
        %v1178 = vpop.f32.mrf.mxu0
        %v1179 = vadd.f32 0.0, %v1178
        %v1180 = vpop.f32.mrf.mxu0
        %v1181 = vadd.f32 0.0, %v1180
        %v1182 = vpop.f32.mrf.mxu0
        %v1183 = vadd.f32 0.0, %v1182
        %1184 = vmatprep.mubr.bf16.mxu0 0
        %1185 = vmatmul.mubr.bf16.gmra.mxu0 %v1008
        %v1186 = vpop.f32.mrf.mxu0
        %v1187 = vadd.f32 0.0, %v1186
        %v1188 = vpop.f32.mrf.mxu0
        %v1189 = vadd.f32 0.0, %v1188
        %v1190 = vpop.f32.mrf.mxu0
        %v1191 = vadd.f32 0.0, %v1190
        %v1192 = vpop.f32.mrf.mxu0
        %v1193 = vadd.f32 0.0, %v1192
        %1194 = vmatprep.mubr.bf16.mxu0 0
        %1195 = vmatmul.mubr.bf16.gmra.mxu0 %v1011
        %v1196 = vpop.f32.mrf.mxu0
        %v1197 = vadd.f32 0.0, %v1196
        %v1198 = vpop.f32.mrf.mxu0
        %v1199 = vadd.f32 0.0, %v1198
        %v1200 = vpop.f32.mrf.mxu0
        %v1201 = vadd.f32 0.0, %v1200
        %v1202 = vpop.f32.mrf.mxu0
        %v1203 = vadd.f32 0.0, %v1202
        %1204 = vmatprep.mubr.bf16.mxu0 0
        %1205 = vmatmul.mubr.bf16.gmra.mxu0 %v1014
        %v1206 = vpop.f32.mrf.mxu0
        %v1207 = vadd.f32 0.0, %v1206
        %v1208 = vpop.f32.mrf.mxu0
        %v1209 = vadd.f32 0.0, %v1208
        %v1210 = vpop.f32.mrf.mxu0
        %v1211 = vadd.f32 0.0, %v1210
        %v1212 = vpop.f32.mrf.mxu0
        %v1213 = vadd.f32 0.0, %v1212
        %1214 = vdwg.mxu0
        %v1216 = vsel %vm719, %v687, 0
        %v1219 = vsel %vm719, %v688, 0
        %v1222 = vsel %vm719, %v689, 0
        %v1225 = vsel %vm719, %v690, 0
        %v1228 = vsel %vm719, %v691, 0
        %v1231 = vsel %vm719, %v692, 0
        %v1234 = vsel %vm719, %v693, 0
        %v1237 = vsel %vm719, %v694, 0
        %v1240 = vsel %vm719, %v695, 0
        %v1243 = vsel %vm719, %v696, 0
        %v1246 = vsel %vm719, %v697, 0
        %v1249 = vsel %vm719, %v698, 0
        %v1252 = vsel %vm719, %v699, 0
        %v1255 = vsel %vm719, %v700, 0
        %v1258 = vsel %vm719, %v701, 0
        %v1261 = vsel %vm719, %v702, 0
        %v1264 = vsel %vm768, %v387, 0
        %v1267 = vsel %vm768, %v388, 0
        %1269 = vmatprep.subr.bf16.mxu0 0
        %1270 = vmatpush1.bf16.msra.mxu0 0
        %1271 = vmatprep.subr.bf16.mxu0 0
        %1272 = vmatpush1.bf16.msra.mxu0 0
        %1273 = vmatprep.subr.bf16.mxu0 0
        %1274 = vmatpush1.bf16.msra.mxu0 0
        %1275 = vmatprep.subr.bf16.mxu0 0
        %1276 = vmatpush1.bf16.msra.mxu0 0
        %1277 = vmatprep.subr.bf16.mxu0 0
        %1278 = vmatpush1.bf16.msra.mxu0 0
        %1279 = vmatprep.subr.bf16.mxu0 0
        %1280 = vmatpush1.bf16.msra.mxu0 0
        %1281 = vmatprep.subr.bf16.mxu0 0
        %1282 = vmatpush1.bf16.msra.mxu0 0
        %1283 = vmatprep.subr.bf16.mxu0 %v1267
        %1284 = vmatpush1.bf16.msra.mxu0 %v1264
        %1285 = vmatprep.subr.bf16.mxu0 0
        %1286 = vmatpush2.bf16.msra.mxu0 0
        %1287 = vmatprep.subr.bf16.mxu0 0
        %1288 = vmatpush2.bf16.msra.mxu0 0
        %1289 = vmatprep.subr.bf16.mxu0 0
        %1290 = vmatpush2.bf16.msra.mxu0 0
        %1291 = vmatprep.subr.bf16.mxu0 0
        %1292 = vmatpush2.bf16.msra.mxu0 0
        %1293 = vmatprep.subr.bf16.mxu0 0
        %1294 = vmatpush2.bf16.msra.mxu0 0
        %1295 = vmatprep.subr.bf16.mxu0 0
        %1296 = vmatpush2.bf16.msra.mxu0 0
        %1297 = vmatprep.subr.bf16.mxu0 0
        %1298 = vmatpush2.bf16.msra.mxu0 0
        %1299 = vmatprep.subr.bf16.mxu0 0
        %1300 = vmatpush2.bf16.msra.mxu0 0
        %1301 = vmatprep.mubr.bf16.mxu0 0
        %1302 = vmatmul.mubr.bf16.gmra.mxu0 %v1216
        %v1303 = vpop.f32.mrf.mxu0
        %v1304 = vadd.f32 0.0, %v1303
        %v1305 = vpop.f32.mrf.mxu0
        %v1306 = vadd.f32 0.0, %v1305
        %v1307 = vpop.f32.mrf.mxu0
        %v1308 = vadd.f32 0.0, %v1307
        %v1309 = vpop.f32.mrf.mxu0
        %v1310 = vadd.f32 0.0, %v1309
        %1311 = vmatprep.mubr.bf16.mxu0 0
        %1312 = vmatmul.mubr.bf16.gmra.mxu0 %v1219
        %v1313 = vpop.f32.mrf.mxu0
        %v1314 = vadd.f32 0.0, %v1313
        %v1315 = vpop.f32.mrf.mxu0
        %v1316 = vadd.f32 0.0, %v1315
        %v1317 = vpop.f32.mrf.mxu0
        %v1318 = vadd.f32 0.0, %v1317
        %v1319 = vpop.f32.mrf.mxu0
        %v1320 = vadd.f32 0.0, %v1319
        %1321 = vmatprep.mubr.bf16.mxu0 0
        %1322 = vmatmul.mubr.bf16.gmra.mxu0 %v1222
        %v1323 = vpop.f32.mrf.mxu0
        %v1324 = vadd.f32 0.0, %v1323
        %v1325 = vpop.f32.mrf.mxu0
        %v1326 = vadd.f32 0.0, %v1325
        %v1327 = vpop.f32.mrf.mxu0
        %v1328 = vadd.f32 0.0, %v1327
        %v1329 = vpop.f32.mrf.mxu0
        %v1330 = vadd.f32 0.0, %v1329
        %1331 = vmatprep.mubr.bf16.mxu0 0
        %1332 = vmatmul.mubr.bf16.gmra.mxu0 %v1225
        %v1333 = vpop.f32.mrf.mxu0
        %v1334 = vadd.f32 0.0, %v1333
        %v1335 = vpop.f32.mrf.mxu0
        %v1336 = vadd.f32 0.0, %v1335
        %v1337 = vpop.f32.mrf.mxu0
        %v1338 = vadd.f32 0.0, %v1337
        %v1339 = vpop.f32.mrf.mxu0
        %v1340 = vadd.f32 0.0, %v1339
        %1341 = vmatprep.mubr.bf16.mxu0 0
        %1342 = vmatmul.mubr.bf16.gmra.mxu0 %v1228
        %v1343 = vpop.f32.mrf.mxu0
        %v1344 = vadd.f32 0.0, %v1343
        %v1345 = vpop.f32.mrf.mxu0
        %v1346 = vadd.f32 0.0, %v1345
        %v1347 = vpop.f32.mrf.mxu0
        %v1348 = vadd.f32 0.0, %v1347
        %v1349 = vpop.f32.mrf.mxu0
        %v1350 = vadd.f32 0.0, %v1349
        %1351 = vmatprep.mubr.bf16.mxu0 0
        %1352 = vmatmul.mubr.bf16.gmra.mxu0 %v1231
        %v1353 = vpop.f32.mrf.mxu0
        %v1354 = vadd.f32 0.0, %v1353
        %v1355 = vpop.f32.mrf.mxu0
        %v1356 = vadd.f32 0.0, %v1355
        %v1357 = vpop.f32.mrf.mxu0
        %v1358 = vadd.f32 0.0, %v1357
        %v1359 = vpop.f32.mrf.mxu0
        %v1360 = vadd.f32 0.0, %v1359
        %1361 = vmatprep.mubr.bf16.mxu0 0
        %1362 = vmatmul.mubr.bf16.gmra.mxu0 %v1234
        %v1363 = vpop.f32.mrf.mxu0
        %v1364 = vadd.f32 0.0, %v1363
        %v1365 = vpop.f32.mrf.mxu0
        %v1366 = vadd.f32 0.0, %v1365
        %v1367 = vpop.f32.mrf.mxu0
        %v1368 = vadd.f32 0.0, %v1367
        %v1369 = vpop.f32.mrf.mxu0
        %v1370 = vadd.f32 0.0, %v1369
        %1371 = vmatprep.mubr.bf16.mxu0 0
        %1372 = vmatmul.mubr.bf16.gmra.mxu0 %v1237
        %v1373 = vpop.f32.mrf.mxu0
        %v1374 = vadd.f32 0.0, %v1373
        %v1375 = vpop.f32.mrf.mxu0
        %v1376 = vadd.f32 0.0, %v1375
        %v1377 = vpop.f32.mrf.mxu0
        %v1378 = vadd.f32 0.0, %v1377
        %v1379 = vpop.f32.mrf.mxu0
        %v1380 = vadd.f32 0.0, %v1379
        %1381 = vmatprep.mubr.bf16.mxu0 0
        %1382 = vmatmul.mubr.bf16.gmra.mxu0 %v1240
        %v1383 = vpop.f32.mrf.mxu0
        %v1384 = vadd.f32 0.0, %v1383
        %v1385 = vpop.f32.mrf.mxu0
        %v1386 = vadd.f32 0.0, %v1385
        %v1387 = vpop.f32.mrf.mxu0
        %v1388 = vadd.f32 0.0, %v1387
        %v1389 = vpop.f32.mrf.mxu0
        %v1390 = vadd.f32 0.0, %v1389
        %1391 = vmatprep.mubr.bf16.mxu0 0
        %1392 = vmatmul.mubr.bf16.gmra.mxu0 %v1243
        %v1393 = vpop.f32.mrf.mxu0
        %v1394 = vadd.f32 0.0, %v1393
        %v1395 = vpop.f32.mrf.mxu0
        %v1396 = vadd.f32 0.0, %v1395
        %v1397 = vpop.f32.mrf.mxu0
        %v1398 = vadd.f32 0.0, %v1397
        %v1399 = vpop.f32.mrf.mxu0
        %v1400 = vadd.f32 0.0, %v1399
        %1401 = vmatprep.mubr.bf16.mxu0 0
        %1402 = vmatmul.mubr.bf16.gmra.mxu0 %v1246
        %v1403 = vpop.f32.mrf.mxu0
        %v1404 = vadd.f32 0.0, %v1403
        %v1405 = vpop.f32.mrf.mxu0
        %v1406 = vadd.f32 0.0, %v1405
        %v1407 = vpop.f32.mrf.mxu0
        %v1408 = vadd.f32 0.0, %v1407
        %v1409 = vpop.f32.mrf.mxu0
        %v1410 = vadd.f32 0.0, %v1409
        %1411 = vmatprep.mubr.bf16.mxu0 0
        %1412 = vmatmul.mubr.bf16.gmra.mxu0 %v1249
        %v1413 = vpop.f32.mrf.mxu0
        %v1414 = vadd.f32 0.0, %v1413
        %v1415 = vpop.f32.mrf.mxu0
        %v1416 = vadd.f32 0.0, %v1415
        %v1417 = vpop.f32.mrf.mxu0
        %v1418 = vadd.f32 0.0, %v1417
        %v1419 = vpop.f32.mrf.mxu0
        %v1420 = vadd.f32 0.0, %v1419
        %1421 = vmatprep.mubr.bf16.mxu0 0
        %1422 = vmatmul.mubr.bf16.gmra.mxu0 %v1252
        %v1423 = vpop.f32.mrf.mxu0
        %v1424 = vadd.f32 0.0, %v1423
        %v1425 = vpop.f32.mrf.mxu0
        %v1426 = vadd.f32 0.0, %v1425
        %v1427 = vpop.f32.mrf.mxu0
        %v1428 = vadd.f32 0.0, %v1427
        %v1429 = vpop.f32.mrf.mxu0
        %v1430 = vadd.f32 0.0, %v1429
        %1431 = vmatprep.mubr.bf16.mxu0 0
        %1432 = vmatmul.mubr.bf16.gmra.mxu0 %v1255
        %v1433 = vpop.f32.mrf.mxu0
        %v1434 = vadd.f32 0.0, %v1433
        %v1435 = vpop.f32.mrf.mxu0
        %v1436 = vadd.f32 0.0, %v1435
        %v1437 = vpop.f32.mrf.mxu0
        %v1438 = vadd.f32 0.0, %v1437
        %v1439 = vpop.f32.mrf.mxu0
        %v1440 = vadd.f32 0.0, %v1439
        %1441 = vmatprep.mubr.bf16.mxu0 0
        %1442 = vmatmul.mubr.bf16.gmra.mxu0 %v1258
        %v1443 = vpop.f32.mrf.mxu0
        %v1444 = vadd.f32 0.0, %v1443
        %v1445 = vpop.f32.mrf.mxu0
        %v1446 = vadd.f32 0.0, %v1445
        %v1447 = vpop.f32.mrf.mxu0
        %v1448 = vadd.f32 0.0, %v1447
        %v1449 = vpop.f32.mrf.mxu0
        %v1450 = vadd.f32 0.0, %v1449
        %1451 = vmatprep.mubr.bf16.mxu0 0
        %1452 = vmatmul.mubr.bf16.gmra.mxu0 %v1261
        %v1453 = vpop.f32.mrf.mxu0
        %v1454 = vadd.f32 0.0, %v1453
        %v1455 = vpop.f32.mrf.mxu0
        %v1456 = vadd.f32 0.0, %v1455
        %v1457 = vpop.f32.mrf.mxu0
        %v1458 = vadd.f32 0.0, %v1457
        %v1459 = vpop.f32.mrf.mxu0
        %v1460 = vadd.f32 0.0, %v1459
        %1461 = vdwg.mxu0
        %v1463 = vsel %vm719, %v703, 0
        %v1466 = vsel %vm719, %v704, 0
        %v1469 = vsel %vm719, %v705, 0
        %v1472 = vsel %vm719, %v706, 0
        %v1475 = vsel %vm719, %v707, 0
        %v1478 = vsel %vm719, %v708, 0
        %v1481 = vsel %vm719, %v709, 0
        %v1484 = vsel %vm719, %v710, 0
        %v1487 = vsel %vm719, %v711, 0
        %v1490 = vsel %vm719, %v712, 0
        %v1493 = vsel %vm719, %v713, 0
        %v1496 = vsel %vm719, %v714, 0
        %v1499 = vsel %vm719, %v715, 0
        %v1502 = vsel %vm719, %v716, 0
        %v1505 = vsel %vm719, %v717, 0
        %v1508 = vsel %vm719, %v718, 0
        %v1511 = vsel %vm768, %v389, 0
        %v1514 = vsel %vm768, %v390, 0
        %1516 = vmatprep.subr.bf16.mxu0 0
        %1517 = vmatpush1.bf16.msra.mxu0 0
        %1518 = vmatprep.subr.bf16.mxu0 0
        %1519 = vmatpush1.bf16.msra.mxu0 0
        %1520 = vmatprep.subr.bf16.mxu0 0
        %1521 = vmatpush1.bf16.msra.mxu0 0
        %1522 = vmatprep.subr.bf16.mxu0 0
        %1523 = vmatpush1.bf16.msra.mxu0 0
        %1524 = vmatprep.subr.bf16.mxu0 0
        %1525 = vmatpush1.bf16.msra.mxu0 0
        %1526 = vmatprep.subr.bf16.mxu0 0
        %1527 = vmatpush1.bf16.msra.mxu0 0
        %1528 = vmatprep.subr.bf16.mxu0 0
        %1529 = vmatpush1.bf16.msra.mxu0 0
        %1530 = vmatprep.subr.bf16.mxu0 %v1514
        %1531 = vmatpush1.bf16.msra.mxu0 %v1511
        %1532 = vmatprep.subr.bf16.mxu0 0
        %1533 = vmatpush2.bf16.msra.mxu0 0
        %1534 = vmatprep.subr.bf16.mxu0 0
        %1535 = vmatpush2.bf16.msra.mxu0 0
        %1536 = vmatprep.subr.bf16.mxu0 0
        %1537 = vmatpush2.bf16.msra.mxu0 0
        %1538 = vmatprep.subr.bf16.mxu0 0
        %1539 = vmatpush2.bf16.msra.mxu0 0
        %1540 = vmatprep.subr.bf16.mxu0 0
        %1541 = vmatpush2.bf16.msra.mxu0 0
        %1542 = vmatprep.subr.bf16.mxu0 0
        %1543 = vmatpush2.bf16.msra.mxu0 0
        %1544 = vmatprep.subr.bf16.mxu0 0
        %1545 = vmatpush2.bf16.msra.mxu0 0
        %1546 = vmatprep.subr.bf16.mxu0 0
        %1547 = vmatpush2.bf16.msra.mxu0 0
        %1548 = vmatprep.mubr.bf16.mxu0 0
        %1549 = vmatmul.mubr.bf16.gmra.mxu0 %v1463
        %v1550 = vpop.f32.mrf.mxu0
        %v1551 = vadd.f32 0.0, %v1550
        %v1552 = vpop.f32.mrf.mxu0
        %v1553 = vadd.f32 0.0, %v1552
        %v1554 = vpop.f32.mrf.mxu0
        %v1555 = vadd.f32 0.0, %v1554
        %v1556 = vpop.f32.mrf.mxu0
        %v1557 = vadd.f32 0.0, %v1556
        %1558 = vmatprep.mubr.bf16.mxu0 0
        %1559 = vmatmul.mubr.bf16.gmra.mxu0 %v1466
        %v1560 = vpop.f32.mrf.mxu0
        %v1561 = vadd.f32 0.0, %v1560
        %v1562 = vpop.f32.mrf.mxu0
        %v1563 = vadd.f32 0.0, %v1562
        %v1564 = vpop.f32.mrf.mxu0
        %v1565 = vadd.f32 0.0, %v1564
        %v1566 = vpop.f32.mrf.mxu0
        %v1567 = vadd.f32 0.0, %v1566
        %1568 = vmatprep.mubr.bf16.mxu0 0
        %1569 = vmatmul.mubr.bf16.gmra.mxu0 %v1469
        %v1570 = vpop.f32.mrf.mxu0
        %v1571 = vadd.f32 0.0, %v1570
        %v1572 = vpop.f32.mrf.mxu0
        %v1573 = vadd.f32 0.0, %v1572
        %v1574 = vpop.f32.mrf.mxu0
        %v1575 = vadd.f32 0.0, %v1574
        %v1576 = vpop.f32.mrf.mxu0
        %v1577 = vadd.f32 0.0, %v1576
        %1578 = vmatprep.mubr.bf16.mxu0 0
        %1579 = vmatmul.mubr.bf16.gmra.mxu0 %v1472
        %v1580 = vpop.f32.mrf.mxu0
        %v1581 = vadd.f32 0.0, %v1580
        %v1582 = vpop.f32.mrf.mxu0
        %v1583 = vadd.f32 0.0, %v1582
        %v1584 = vpop.f32.mrf.mxu0
        %v1585 = vadd.f32 0.0, %v1584
        %v1586 = vpop.f32.mrf.mxu0
        %v1587 = vadd.f32 0.0, %v1586
        %1588 = vmatprep.mubr.bf16.mxu0 0
        %1589 = vmatmul.mubr.bf16.gmra.mxu0 %v1475
        %v1590 = vpop.f32.mrf.mxu0
        %v1591 = vadd.f32 0.0, %v1590
        %v1592 = vpop.f32.mrf.mxu0
        %v1593 = vadd.f32 0.0, %v1592
        %v1594 = vpop.f32.mrf.mxu0
        %v1595 = vadd.f32 0.0, %v1594
        %v1596 = vpop.f32.mrf.mxu0
        %v1597 = vadd.f32 0.0, %v1596
        %1598 = vmatprep.mubr.bf16.mxu0 0
        %1599 = vmatmul.mubr.bf16.gmra.mxu0 %v1478
        %v1600 = vpop.f32.mrf.mxu0
        %v1601 = vadd.f32 0.0, %v1600
        %v1602 = vpop.f32.mrf.mxu0
        %v1603 = vadd.f32 0.0, %v1602
        %v1604 = vpop.f32.mrf.mxu0
        %v1605 = vadd.f32 0.0, %v1604
        %v1606 = vpop.f32.mrf.mxu0
        %v1607 = vadd.f32 0.0, %v1606
        %1608 = vmatprep.mubr.bf16.mxu0 0
        %1609 = vmatmul.mubr.bf16.gmra.mxu0 %v1481
        %v1610 = vpop.f32.mrf.mxu0
        %v1611 = vadd.f32 0.0, %v1610
        %v1612 = vpop.f32.mrf.mxu0
        %v1613 = vadd.f32 0.0, %v1612
        %v1614 = vpop.f32.mrf.mxu0
        %v1615 = vadd.f32 0.0, %v1614
        %v1616 = vpop.f32.mrf.mxu0
        %v1617 = vadd.f32 0.0, %v1616
        %1618 = vmatprep.mubr.bf16.mxu0 0
        %1619 = vmatmul.mubr.bf16.gmra.mxu0 %v1484
        %v1620 = vpop.f32.mrf.mxu0
        %v1621 = vadd.f32 0.0, %v1620
        %v1622 = vpop.f32.mrf.mxu0
        %v1623 = vadd.f32 0.0, %v1622
        %v1624 = vpop.f32.mrf.mxu0
        %v1625 = vadd.f32 0.0, %v1624
        %v1626 = vpop.f32.mrf.mxu0
        %v1627 = vadd.f32 0.0, %v1626
        %1628 = vmatprep.mubr.bf16.mxu0 0
        %1629 = vmatmul.mubr.bf16.gmra.mxu0 %v1487
        %v1630 = vpop.f32.mrf.mxu0
        %v1631 = vadd.f32 0.0, %v1630
        %v1632 = vpop.f32.mrf.mxu0
        %v1633 = vadd.f32 0.0, %v1632
        %v1634 = vpop.f32.mrf.mxu0
        %v1635 = vadd.f32 0.0, %v1634
        %v1636 = vpop.f32.mrf.mxu0
        %v1637 = vadd.f32 0.0, %v1636
        %1638 = vmatprep.mubr.bf16.mxu0 0
        %1639 = vmatmul.mubr.bf16.gmra.mxu0 %v1490
        %v1640 = vpop.f32.mrf.mxu0
        %v1641 = vadd.f32 0.0, %v1640
        %v1642 = vpop.f32.mrf.mxu0
        %v1643 = vadd.f32 0.0, %v1642
        %v1644 = vpop.f32.mrf.mxu0
        %v1645 = vadd.f32 0.0, %v1644
        %v1646 = vpop.f32.mrf.mxu0
        %v1647 = vadd.f32 0.0, %v1646
        %1648 = vmatprep.mubr.bf16.mxu0 0
        %1649 = vmatmul.mubr.bf16.gmra.mxu0 %v1493
        %v1650 = vpop.f32.mrf.mxu0
        %v1651 = vadd.f32 0.0, %v1650
        %v1652 = vpop.f32.mrf.mxu0
        %v1653 = vadd.f32 0.0, %v1652
        %v1654 = vpop.f32.mrf.mxu0
        %v1655 = vadd.f32 0.0, %v1654
        %v1656 = vpop.f32.mrf.mxu0
        %v1657 = vadd.f32 0.0, %v1656
        %1658 = vmatprep.mubr.bf16.mxu0 0
        %1659 = vmatmul.mubr.bf16.gmra.mxu0 %v1496
        %v1660 = vpop.f32.mrf.mxu0
        %v1661 = vadd.f32 0.0, %v1660
        %v1662 = vpop.f32.mrf.mxu0
        %v1663 = vadd.f32 0.0, %v1662
        %v1664 = vpop.f32.mrf.mxu0
        %v1665 = vadd.f32 0.0, %v1664
        %v1666 = vpop.f32.mrf.mxu0
        %v1667 = vadd.f32 0.0, %v1666
        %1668 = vmatprep.mubr.bf16.mxu0 0
        %1669 = vmatmul.mubr.bf16.gmra.mxu0 %v1499
        %v1670 = vpop.f32.mrf.mxu0
        %v1671 = vadd.f32 0.0, %v1670
        %v1672 = vpop.f32.mrf.mxu0
        %v1673 = vadd.f32 0.0, %v1672
        %v1674 = vpop.f32.mrf.mxu0
        %v1675 = vadd.f32 0.0, %v1674
        %v1676 = vpop.f32.mrf.mxu0
        %v1677 = vadd.f32 0.0, %v1676
        %1678 = vmatprep.mubr.bf16.mxu0 0
        %1679 = vmatmul.mubr.bf16.gmra.mxu0 %v1502
        %v1680 = vpop.f32.mrf.mxu0
        %v1681 = vadd.f32 0.0, %v1680
        %v1682 = vpop.f32.mrf.mxu0
        %v1683 = vadd.f32 0.0, %v1682
        %v1684 = vpop.f32.mrf.mxu0
        %v1685 = vadd.f32 0.0, %v1684
        %v1686 = vpop.f32.mrf.mxu0
        %v1687 = vadd.f32 0.0, %v1686
        %1688 = vmatprep.mubr.bf16.mxu0 0
        %1689 = vmatmul.mubr.bf16.gmra.mxu0 %v1505
        %v1690 = vpop.f32.mrf.mxu0
        %v1691 = vadd.f32 0.0, %v1690
        %v1692 = vpop.f32.mrf.mxu0
        %v1693 = vadd.f32 0.0, %v1692
        %v1694 = vpop.f32.mrf.mxu0
        %v1695 = vadd.f32 0.0, %v1694
        %v1696 = vpop.f32.mrf.mxu0
        %v1697 = vadd.f32 0.0, %v1696
        %1698 = vmatprep.mubr.bf16.mxu0 0
        %1699 = vmatmul.mubr.bf16.gmra.mxu0 %v1508
        %v1700 = vpop.f32.mrf.mxu0
        %v1701 = vadd.f32 0.0, %v1700
        %v1702 = vpop.f32.mrf.mxu0
        %v1703 = vadd.f32 0.0, %v1702
        %v1704 = vpop.f32.mrf.mxu0
        %v1705 = vadd.f32 0.0, %v1704
        %v1706 = vpop.f32.mrf.mxu0
        %v1707 = vadd.f32 0.0, %v1706
        %1708 = vdwg.mxu0
        %v1709 = vmax.f32 %v810, %v812
        %1710 = vmax.xlane.f32.xlu0 %v1709
        %v1711 = vpop.xlane.xlu0 %1710
        %v1712 = vmax.f32 %v814, %v816
        %1713 = vmax.xlane.f32.xlu0 %v1712
        %v1714 = vpop.xlane.xlu0 %1713
        %v1715 = vmax.f32 %v820, %v822
        %1716 = vmax.xlane.f32.xlu0 %v1715
        %v1717 = vpop.xlane.xlu0 %1716
        %v1718 = vmax.f32 %v824, %v826
        %1719 = vmax.xlane.f32.xlu0 %v1718
        %v1720 = vpop.xlane.xlu0 %1719
        %v1721 = vmax.f32 %v830, %v832
        %1722 = vmax.xlane.f32.xlu0 %v1721
        %v1723 = vpop.xlane.xlu0 %1722
        %v1724 = vmax.f32 %v834, %v836
        %1725 = vmax.xlane.f32.xlu0 %v1724
        %v1726 = vpop.xlane.xlu0 %1725
        %v1727 = vmax.f32 %v840, %v842
        %1728 = vmax.xlane.f32.xlu0 %v1727
        %v1729 = vpop.xlane.xlu0 %1728
        %v1730 = vmax.f32 %v844, %v846
        %1731 = vmax.xlane.f32.xlu0 %v1730
        %v1732 = vpop.xlane.xlu0 %1731
        %v1733 = vmax.f32 %v850, %v852
        %1734 = vmax.xlane.f32.xlu0 %v1733
        %v1735 = vpop.xlane.xlu0 %1734
        %v1736 = vmax.f32 %v854, %v856
        %1737 = vmax.xlane.f32.xlu0 %v1736
        %v1738 = vpop.xlane.xlu0 %1737
        %v1739 = vmax.f32 %v860, %v862
        %1740 = vmax.xlane.f32.xlu0 %v1739
        %v1741 = vpop.xlane.xlu0 %1740
        %v1742 = vmax.f32 %v864, %v866
        %1743 = vmax.xlane.f32.xlu0 %v1742
        %v1744 = vpop.xlane.xlu0 %1743
        %v1745 = vmax.f32 %v870, %v872
        %1746 = vmax.xlane.f32.xlu0 %v1745
        %v1747 = vpop.xlane.xlu0 %1746
        %v1748 = vmax.f32 %v874, %v876
        %1749 = vmax.xlane.f32.xlu0 %v1748
        %v1750 = vpop.xlane.xlu0 %1749
        %v1751 = vmax.f32 %v880, %v882
        %1752 = vmax.xlane.f32.xlu0 %v1751
        %v1753 = vpop.xlane.xlu0 %1752
        %v1754 = vmax.f32 %v884, %v886
        %1755 = vmax.xlane.f32.xlu0 %v1754
        %v1756 = vpop.xlane.xlu0 %1755
        %v1757 = vmax.f32 %v890, %v892
        %1758 = vmax.xlane.f32.xlu0 %v1757
        %v1759 = vpop.xlane.xlu0 %1758
        %v1760 = vmax.f32 %v894, %v896
        %1761 = vmax.xlane.f32.xlu0 %v1760
        %v1762 = vpop.xlane.xlu0 %1761
        %v1763 = vmax.f32 %v900, %v902
        %1764 = vmax.xlane.f32.xlu0 %v1763
        %v1765 = vpop.xlane.xlu0 %1764
        %v1766 = vmax.f32 %v904, %v906
        %1767 = vmax.xlane.f32.xlu0 %v1766
        %v1768 = vpop.xlane.xlu0 %1767
        %v1769 = vmax.f32 %v910, %v912
        %1770 = vmax.xlane.f32.xlu0 %v1769
        %v1771 = vpop.xlane.xlu0 %1770
        %v1772 = vmax.f32 %v914, %v916
        %1773 = vmax.xlane.f32.xlu0 %v1772
        %v1774 = vpop.xlane.xlu0 %1773
        %v1775 = vmax.f32 %v920, %v922
        %1776 = vmax.xlane.f32.xlu0 %v1775
        %v1777 = vpop.xlane.xlu0 %1776
        %v1778 = vmax.f32 %v924, %v926
        %1779 = vmax.xlane.f32.xlu0 %v1778
        %v1780 = vpop.xlane.xlu0 %1779
        %v1781 = vmax.f32 %v930, %v932
        %1782 = vmax.xlane.f32.xlu0 %v1781
        %v1783 = vpop.xlane.xlu0 %1782
        %v1784 = vmax.f32 %v934, %v936
        %1785 = vmax.xlane.f32.xlu0 %v1784
        %v1786 = vpop.xlane.xlu0 %1785
        %v1787 = vmax.f32 %v940, %v942
        %1788 = vmax.xlane.f32.xlu0 %v1787
        %v1789 = vpop.xlane.xlu0 %1788
        %v1790 = vmax.f32 %v944, %v946
        %1791 = vmax.xlane.f32.xlu0 %v1790
        %v1792 = vpop.xlane.xlu0 %1791
        %v1793 = vmax.f32 %v950, %v952
        %1794 = vmax.xlane.f32.xlu0 %v1793
        %v1795 = vpop.xlane.xlu0 %1794
        %v1796 = vmax.f32 %v954, %v956
        %1797 = vmax.xlane.f32.xlu0 %v1796
        %v1798 = vpop.xlane.xlu0 %1797
        %v1799 = vmax.f32 %v960, %v962
        %1800 = vmax.xlane.f32.xlu0 %v1799
        %v1801 = vpop.xlane.xlu0 %1800
        %v1802 = vmax.f32 %v964, %v966
        %1803 = vmax.xlane.f32.xlu0 %v1802
        %v1804 = vpop.xlane.xlu0 %1803
        %v1805 = vmax.f32 %v1057, %v1059
        %1806 = vmax.xlane.f32.xlu0 %v1805
        %v1807 = vpop.xlane.xlu0 %1806
        %v1808 = vmax.f32 %v1061, %v1063
        %1809 = vmax.xlane.f32.xlu0 %v1808
        %v1810 = vpop.xlane.xlu0 %1809
        %v1811 = vmax.f32 %v1067, %v1069
        %1812 = vmax.xlane.f32.xlu0 %v1811
        %v1813 = vpop.xlane.xlu0 %1812
        %v1814 = vmax.f32 %v1071, %v1073
        %1815 = vmax.xlane.f32.xlu0 %v1814
        %v1816 = vpop.xlane.xlu0 %1815
        %v1817 = vmax.f32 %v1077, %v1079
        %1818 = vmax.xlane.f32.xlu0 %v1817
        %v1819 = vpop.xlane.xlu0 %1818
        %v1820 = vmax.f32 %v1081, %v1083
        %1821 = vmax.xlane.f32.xlu0 %v1820
        %v1822 = vpop.xlane.xlu0 %1821
        %v1823 = vmax.f32 %v1087, %v1089
        %1824 = vmax.xlane.f32.xlu0 %v1823
        %v1825 = vpop.xlane.xlu0 %1824
        %v1826 = vmax.f32 %v1091, %v1093
        %1827 = vmax.xlane.f32.xlu0 %v1826
        %v1828 = vpop.xlane.xlu0 %1827
        %v1829 = vmax.f32 %v1097, %v1099
        %1830 = vmax.xlane.f32.xlu0 %v1829
        %v1831 = vpop.xlane.xlu0 %1830
        %v1832 = vmax.f32 %v1101, %v1103
        %1833 = vmax.xlane.f32.xlu0 %v1832
        %v1834 = vpop.xlane.xlu0 %1833
        %v1835 = vmax.f32 %v1107, %v1109
        %1836 = vmax.xlane.f32.xlu0 %v1835
        %v1837 = vpop.xlane.xlu0 %1836
        %v1838 = vmax.f32 %v1111, %v1113
        %1839 = vmax.xlane.f32.xlu0 %v1838
        %v1840 = vpop.xlane.xlu0 %1839
        %v1841 = vmax.f32 %v1117, %v1119
        %1842 = vmax.xlane.f32.xlu0 %v1841
        %v1843 = vpop.xlane.xlu0 %1842
        %v1844 = vmax.f32 %v1121, %v1123
        %1845 = vmax.xlane.f32.xlu0 %v1844
        %v1846 = vpop.xlane.xlu0 %1845
        %v1847 = vmax.f32 %v1127, %v1129
        %1848 = vmax.xlane.f32.xlu0 %v1847
        %v1849 = vpop.xlane.xlu0 %1848
        %v1850 = vmax.f32 %v1131, %v1133
        %1851 = vmax.xlane.f32.xlu0 %v1850
        %v1852 = vpop.xlane.xlu0 %1851
        %v1853 = vmax.f32 %v1137, %v1139
        %1854 = vmax.xlane.f32.xlu0 %v1853
        %v1855 = vpop.xlane.xlu0 %1854
        %v1856 = vmax.f32 %v1141, %v1143
        %1857 = vmax.xlane.f32.xlu0 %v1856
        %v1858 = vpop.xlane.xlu0 %1857
        %v1859 = vmax.f32 %v1147, %v1149
        %1860 = vmax.xlane.f32.xlu0 %v1859
        %v1861 = vpop.xlane.xlu0 %1860
        %v1862 = vmax.f32 %v1151, %v1153
        %1863 = vmax.xlane.f32.xlu0 %v1862
        %v1864 = vpop.xlane.xlu0 %1863
        %v1865 = vmax.f32 %v1157, %v1159
        %1866 = vmax.xlane.f32.xlu0 %v1865
        %v1867 = vpop.xlane.xlu0 %1866
        %v1868 = vmax.f32 %v1161, %v1163
        %1869 = vmax.xlane.f32.xlu0 %v1868
        %v1870 = vpop.xlane.xlu0 %1869
        %v1871 = vmax.f32 %v1167, %v1169
        %1872 = vmax.xlane.f32.xlu0 %v1871
        %v1873 = vpop.xlane.xlu0 %1872
        %v1874 = vmax.f32 %v1171, %v1173
        %1875 = vmax.xlane.f32.xlu0 %v1874
        %v1876 = vpop.xlane.xlu0 %1875
        %v1877 = vmax.f32 %v1177, %v1179
        %1878 = vmax.xlane.f32.xlu0 %v1877
        %v1879 = vpop.xlane.xlu0 %1878
        %v1880 = vmax.f32 %v1181, %v1183
        %1881 = vmax.xlane.f32.xlu0 %v1880
        %v1882 = vpop.xlane.xlu0 %1881
        %v1883 = vmax.f32 %v1187, %v1189
        %1884 = vmax.xlane.f32.xlu0 %v1883
        %v1885 = vpop.xlane.xlu0 %1884
        %v1886 = vmax.f32 %v1191, %v1193
        %1887 = vmax.xlane.f32.xlu0 %v1886
        %v1888 = vpop.xlane.xlu0 %1887
        %v1889 = vmax.f32 %v1197, %v1199
        %1890 = vmax.xlane.f32.xlu0 %v1889
        %v1891 = vpop.xlane.xlu0 %1890
        %v1892 = vmax.f32 %v1201, %v1203
        %1893 = vmax.xlane.f32.xlu0 %v1892
        %v1894 = vpop.xlane.xlu0 %1893
        %v1895 = vmax.f32 %v1207, %v1209
        %1896 = vmax.xlane.f32.xlu0 %v1895
        %v1897 = vpop.xlane.xlu0 %1896
        %v1898 = vmax.f32 %v1211, %v1213
        %1899 = vmax.xlane.f32.xlu0 %v1898
        %v1900 = vpop.xlane.xlu0 %1899
        %v1901 = vmax.f32 %v1304, %v1306
        %1902 = vmax.xlane.f32.xlu0 %v1901
        %v1903 = vpop.xlane.xlu0 %1902
        %v1904 = vmax.f32 %v1308, %v1310
        %1905 = vmax.xlane.f32.xlu0 %v1904
        %v1906 = vpop.xlane.xlu0 %1905
        %v1907 = vmax.f32 %v1314, %v1316
        %1908 = vmax.xlane.f32.xlu0 %v1907
        %v1909 = vpop.xlane.xlu0 %1908
        %v1910 = vmax.f32 %v1318, %v1320
        %1911 = vmax.xlane.f32.xlu0 %v1910
        %v1912 = vpop.xlane.xlu0 %1911
        %v1913 = vmax.f32 %v1324, %v1326
        %1914 = vmax.xlane.f32.xlu0 %v1913
        %v1915 = vpop.xlane.xlu0 %1914
        %v1916 = vmax.f32 %v1328, %v1330
        %1917 = vmax.xlane.f32.xlu0 %v1916
        %v1918 = vpop.xlane.xlu0 %1917
        %v1919 = vmax.f32 %v1334, %v1336
        %1920 = vmax.xlane.f32.xlu0 %v1919
        %v1921 = vpop.xlane.xlu0 %1920
        %v1922 = vmax.f32 %v1338, %v1340
        %1923 = vmax.xlane.f32.xlu0 %v1922
        %v1924 = vpop.xlane.xlu0 %1923
        %v1925 = vmax.f32 %v1344, %v1346
        %1926 = vmax.xlane.f32.xlu0 %v1925
        %v1927 = vpop.xlane.xlu0 %1926
        %v1928 = vmax.f32 %v1348, %v1350
        %1929 = vmax.xlane.f32.xlu0 %v1928
        %v1930 = vpop.xlane.xlu0 %1929
        %v1931 = vmax.f32 %v1354, %v1356
        %1932 = vmax.xlane.f32.xlu0 %v1931
        %v1933 = vpop.xlane.xlu0 %1932
        %v1934 = vmax.f32 %v1358, %v1360
        %1935 = vmax.xlane.f32.xlu0 %v1934
        %v1936 = vpop.xlane.xlu0 %1935
        %v1937 = vmax.f32 %v1364, %v1366
        %1938 = vmax.xlane.f32.xlu0 %v1937
        %v1939 = vpop.xlane.xlu0 %1938
        %v1940 = vmax.f32 %v1368, %v1370
        %1941 = vmax.xlane.f32.xlu0 %v1940
        %v1942 = vpop.xlane.xlu0 %1941
        %v1943 = vmax.f32 %v1374, %v1376
        %1944 = vmax.xlane.f32.xlu0 %v1943
        %v1945 = vpop.xlane.xlu0 %1944
        %v1946 = vmax.f32 %v1378, %v1380
        %1947 = vmax.xlane.f32.xlu0 %v1946
        %v1948 = vpop.xlane.xlu0 %1947
        %v1949 = vmax.f32 %v1384, %v1386
        %1950 = vmax.xlane.f32.xlu0 %v1949
        %v1951 = vpop.xlane.xlu0 %1950
        %v1952 = vmax.f32 %v1388, %v1390
        %1953 = vmax.xlane.f32.xlu0 %v1952
        %v1954 = vpop.xlane.xlu0 %1953
        %v1955 = vmax.f32 %v1394, %v1396
        %1956 = vmax.xlane.f32.xlu0 %v1955
        %v1957 = vpop.xlane.xlu0 %1956
        %v1958 = vmax.f32 %v1398, %v1400
        %1959 = vmax.xlane.f32.xlu0 %v1958
        %v1960 = vpop.xlane.xlu0 %1959
        %v1961 = vmax.f32 %v1404, %v1406
        %1962 = vmax.xlane.f32.xlu0 %v1961
        %v1963 = vpop.xlane.xlu0 %1962
        %v1964 = vmax.f32 %v1408, %v1410
        %1965 = vmax.xlane.f32.xlu0 %v1964
        %v1966 = vpop.xlane.xlu0 %1965
        %v1967 = vmax.f32 %v1414, %v1416
        %1968 = vmax.xlane.f32.xlu0 %v1967
        %v1969 = vpop.xlane.xlu0 %1968
        %v1970 = vmax.f32 %v1418, %v1420
        %1971 = vmax.xlane.f32.xlu0 %v1970
        %v1972 = vpop.xlane.xlu0 %1971
        %v1973 = vmax.f32 %v1424, %v1426
        %1974 = vmax.xlane.f32.xlu0 %v1973
        %v1975 = vpop.xlane.xlu0 %1974
        %v1976 = vmax.f32 %v1428, %v1430
        %1977 = vmax.xlane.f32.xlu0 %v1976
        %v1978 = vpop.xlane.xlu0 %1977
        %v1979 = vmax.f32 %v1434, %v1436
        %1980 = vmax.xlane.f32.xlu0 %v1979
        %v1981 = vpop.xlane.xlu0 %1980
        %v1982 = vmax.f32 %v1438, %v1440
        %1983 = vmax.xlane.f32.xlu0 %v1982
        %v1984 = vpop.xlane.xlu0 %1983
        %v1985 = vmax.f32 %v1444, %v1446
        %1986 = vmax.xlane.f32.xlu0 %v1985
        %v1987 = vpop.xlane.xlu0 %1986
        %v1988 = vmax.f32 %v1448, %v1450
        %1989 = vmax.xlane.f32.xlu0 %v1988
        %v1990 = vpop.xlane.xlu0 %1989
        %v1991 = vmax.f32 %v1454, %v1456
        %1992 = vmax.xlane.f32.xlu0 %v1991
        %v1993 = vpop.xlane.xlu0 %1992
        %v1994 = vmax.f32 %v1458, %v1460
        %1995 = vmax.xlane.f32.xlu0 %v1994
        %v1996 = vpop.xlane.xlu0 %1995
        %v1997 = vmax.f32 %v1551, %v1553
        %1998 = vmax.xlane.f32.xlu0 %v1997
        %v1999 = vpop.xlane.xlu0 %1998
        %v2000 = vmax.f32 %v1555, %v1557
        %2001 = vmax.xlane.f32.xlu0 %v2000
        %v2002 = vpop.xlane.xlu0 %2001
        %v2003 = vmax.f32 %v1561, %v1563
        %2004 = vmax.xlane.f32.xlu0 %v2003
        %v2005 = vpop.xlane.xlu0 %2004
        %v2006 = vmax.f32 %v1565, %v1567
        %2007 = vmax.xlane.f32.xlu0 %v2006
        %v2008 = vpop.xlane.xlu0 %2007
        %v2009 = vmax.f32 %v1571, %v1573
        %2010 = vmax.xlane.f32.xlu0 %v2009
        %v2011 = vpop.xlane.xlu0 %2010
        %v2012 = vmax.f32 %v1575, %v1577
        %2013 = vmax.xlane.f32.xlu0 %v2012
        %v2014 = vpop.xlane.xlu0 %2013
        %v2015 = vmax.f32 %v1581, %v1583
        %2016 = vmax.xlane.f32.xlu0 %v2015
        %v2017 = vpop.xlane.xlu0 %2016
        %v2018 = vmax.f32 %v1585, %v1587
        %2019 = vmax.xlane.f32.xlu0 %v2018
        %v2020 = vpop.xlane.xlu0 %2019
        %v2021 = vmax.f32 %v1591, %v1593
        %2022 = vmax.xlane.f32.xlu0 %v2021
        %v2023 = vpop.xlane.xlu0 %2022
        %v2024 = vmax.f32 %v1595, %v1597
        %2025 = vmax.xlane.f32.xlu0 %v2024
        %v2026 = vpop.xlane.xlu0 %2025
        %v2027 = vmax.f32 %v1601, %v1603
        %2028 = vmax.xlane.f32.xlu0 %v2027
        %v2029 = vpop.xlane.xlu0 %2028
        %v2030 = vmax.f32 %v1605, %v1607
        %2031 = vmax.xlane.f32.xlu0 %v2030
        %v2032 = vpop.xlane.xlu0 %2031
        %v2033 = vmax.f32 %v1611, %v1613
        %2034 = vmax.xlane.f32.xlu0 %v2033
        %v2035 = vpop.xlane.xlu0 %2034
        %v2036 = vmax.f32 %v1615, %v1617
        %2037 = vmax.xlane.f32.xlu0 %v2036
        %v2038 = vpop.xlane.xlu0 %2037
        %v2039 = vmax.f32 %v1621, %v1623
        %2040 = vmax.xlane.f32.xlu0 %v2039
        %v2041 = vpop.xlane.xlu0 %2040
        %v2042 = vmax.f32 %v1625, %v1627
        %2043 = vmax.xlane.f32.xlu0 %v2042
        %v2044 = vpop.xlane.xlu0 %2043
        %v2045 = vmax.f32 %v1631, %v1633
        %2046 = vmax.xlane.f32.xlu0 %v2045
        %v2047 = vpop.xlane.xlu0 %2046
        %v2048 = vmax.f32 %v1635, %v1637
        %2049 = vmax.xlane.f32.xlu0 %v2048
        %v2050 = vpop.xlane.xlu0 %2049
        %v2051 = vmax.f32 %v1641, %v1643
        %2052 = vmax.xlane.f32.xlu0 %v2051
        %v2053 = vpop.xlane.xlu0 %2052
        %v2054 = vmax.f32 %v1645, %v1647
        %2055 = vmax.xlane.f32.xlu0 %v2054
        %v2056 = vpop.xlane.xlu0 %2055
        %v2057 = vmax.f32 %v1651, %v1653
        %2058 = vmax.xlane.f32.xlu0 %v2057
        %v2059 = vpop.xlane.xlu0 %2058
        %v2060 = vmax.f32 %v1655, %v1657
        %2061 = vmax.xlane.f32.xlu0 %v2060
        %v2062 = vpop.xlane.xlu0 %2061
        %v2063 = vmax.f32 %v1661, %v1663
        %2064 = vmax.xlane.f32.xlu0 %v2063
        %v2065 = vpop.xlane.xlu0 %2064
        %v2066 = vmax.f32 %v1665, %v1667
        %2067 = vmax.xlane.f32.xlu0 %v2066
        %v2068 = vpop.xlane.xlu0 %2067
        %v2069 = vmax.f32 %v1671, %v1673
        %2070 = vmax.xlane.f32.xlu0 %v2069
        %v2071 = vpop.xlane.xlu0 %2070
        %v2072 = vmax.f32 %v1675, %v1677
        %2073 = vmax.xlane.f32.xlu0 %v2072
        %v2074 = vpop.xlane.xlu0 %2073
        %v2075 = vmax.f32 %v1681, %v1683
        %2076 = vmax.xlane.f32.xlu0 %v2075
        %v2077 = vpop.xlane.xlu0 %2076
        %v2078 = vmax.f32 %v1685, %v1687
        %2079 = vmax.xlane.f32.xlu0 %v2078
        %v2080 = vpop.xlane.xlu0 %2079
        %v2081 = vmax.f32 %v1691, %v1693
        %2082 = vmax.xlane.f32.xlu0 %v2081
        %v2083 = vpop.xlane.xlu0 %2082
        %v2084 = vmax.f32 %v1695, %v1697
        %2085 = vmax.xlane.f32.xlu0 %v2084
        %v2086 = vpop.xlane.xlu0 %2085
        %v2087 = vmax.f32 %v1701, %v1703
        %2088 = vmax.xlane.f32.xlu0 %v2087
        %v2089 = vpop.xlane.xlu0 %2088
        %v2090 = vmax.f32 %v1705, %v1707
        %2091 = vmax.xlane.f32.xlu0 %v2090
        %v2092 = vpop.xlane.xlu0 %2091
        %v2093 = vsub.f32 %v810, %v1711
        %v2094 = vsub.f32 %v812, %v1711
        %v2095 = vsub.f32 %v814, %v1714
        %v2096 = vsub.f32 %v816, %v1714
        %v2097 = vsub.f32 %v820, %v1717
        %v2098 = vsub.f32 %v822, %v1717
        %v2099 = vsub.f32 %v824, %v1720
        %v2100 = vsub.f32 %v826, %v1720
        %v2101 = vsub.f32 %v830, %v1723
        %v2102 = vsub.f32 %v832, %v1723
        %v2103 = vsub.f32 %v834, %v1726
        %v2104 = vsub.f32 %v836, %v1726
        %v2105 = vsub.f32 %v840, %v1729
        %v2106 = vsub.f32 %v842, %v1729
        %v2107 = vsub.f32 %v844, %v1732
        %v2108 = vsub.f32 %v846, %v1732
        %v2109 = vsub.f32 %v850, %v1735
        %v2110 = vsub.f32 %v852, %v1735
        %v2111 = vsub.f32 %v854, %v1738
        %v2112 = vsub.f32 %v856, %v1738
        %v2113 = vsub.f32 %v860, %v1741
        %v2114 = vsub.f32 %v862, %v1741
        %v2115 = vsub.f32 %v864, %v1744
        %v2116 = vsub.f32 %v866, %v1744
        %v2117 = vsub.f32 %v870, %v1747
        %v2118 = vsub.f32 %v872, %v1747
        %v2119 = vsub.f32 %v874, %v1750
        %v2120 = vsub.f32 %v876, %v1750
        %v2121 = vsub.f32 %v880, %v1753
        %v2122 = vsub.f32 %v882, %v1753
        %v2123 = vsub.f32 %v884, %v1756
        %v2124 = vsub.f32 %v886, %v1756
        %v2125 = vsub.f32 %v890, %v1759
        %v2126 = vsub.f32 %v892, %v1759
        %v2127 = vsub.f32 %v894, %v1762
        %v2128 = vsub.f32 %v896, %v1762
        %v2129 = vsub.f32 %v900, %v1765
        %v2130 = vsub.f32 %v902, %v1765
        %v2131 = vsub.f32 %v904, %v1768
        %v2132 = vsub.f32 %v906, %v1768
        %v2133 = vsub.f32 %v910, %v1771
        %v2134 = vsub.f32 %v912, %v1771
        %v2135 = vsub.f32 %v914, %v1774
        %v2136 = vsub.f32 %v916, %v1774
        %v2137 = vsub.f32 %v920, %v1777
        %v2138 = vsub.f32 %v922, %v1777
        %v2139 = vsub.f32 %v924, %v1780
        %v2140 = vsub.f32 %v926, %v1780
        %v2141 = vsub.f32 %v930, %v1783
        %v2142 = vsub.f32 %v932, %v1783
        %v2143 = vsub.f32 %v934, %v1786
        %v2144 = vsub.f32 %v936, %v1786
        %v2145 = vsub.f32 %v940, %v1789
        %v2146 = vsub.f32 %v942, %v1789
        %v2147 = vsub.f32 %v944, %v1792
        %v2148 = vsub.f32 %v946, %v1792
        %v2149 = vsub.f32 %v950, %v1795
        %v2150 = vsub.f32 %v952, %v1795
        %v2151 = vsub.f32 %v954, %v1798
        %v2152 = vsub.f32 %v956, %v1798
        %v2153 = vsub.f32 %v960, %v1801
        %v2154 = vsub.f32 %v962, %v1801
        %v2155 = vsub.f32 %v964, %v1804
        %v2156 = vsub.f32 %v966, %v1804
        %v2157 = vsub.f32 %v1057, %v1807
        %v2158 = vsub.f32 %v1059, %v1807
        %v2159 = vsub.f32 %v1061, %v1810
        %v2160 = vsub.f32 %v1063, %v1810
        %v2161 = vsub.f32 %v1067, %v1813
        %v2162 = vsub.f32 %v1069, %v1813
        %v2163 = vsub.f32 %v1071, %v1816
        %v2164 = vsub.f32 %v1073, %v1816
        %v2165 = vsub.f32 %v1077, %v1819
        %v2166 = vsub.f32 %v1079, %v1819
        %v2167 = vsub.f32 %v1081, %v1822
        %v2168 = vsub.f32 %v1083, %v1822
        %v2169 = vsub.f32 %v1087, %v1825
        %v2170 = vsub.f32 %v1089, %v1825
        %v2171 = vsub.f32 %v1091, %v1828
        %v2172 = vsub.f32 %v1093, %v1828
        %v2173 = vsub.f32 %v1097, %v1831
        %v2174 = vsub.f32 %v1099, %v1831
        %v2175 = vsub.f32 %v1101, %v1834
        %v2176 = vsub.f32 %v1103, %v1834
        %v2177 = vsub.f32 %v1107, %v1837
        %v2178 = vsub.f32 %v1109, %v1837
        %v2179 = vsub.f32 %v1111, %v1840
        %v2180 = vsub.f32 %v1113, %v1840
        %v2181 = vsub.f32 %v1117, %v1843
        %v2182 = vsub.f32 %v1119, %v1843
        %v2183 = vsub.f32 %v1121, %v1846
        %v2184 = vsub.f32 %v1123, %v1846
        %v2185 = vsub.f32 %v1127, %v1849
        %v2186 = vsub.f32 %v1129, %v1849
        %v2187 = vsub.f32 %v1131, %v1852
        %v2188 = vsub.f32 %v1133, %v1852
        %v2189 = vsub.f32 %v1137, %v1855
        %v2190 = vsub.f32 %v1139, %v1855
        %v2191 = vsub.f32 %v1141, %v1858
        %v2192 = vsub.f32 %v1143, %v1858
        %v2193 = vsub.f32 %v1147, %v1861
        %v2194 = vsub.f32 %v1149, %v1861
        %v2195 = vsub.f32 %v1151, %v1864
        %v2196 = vsub.f32 %v1153, %v1864
        %v2197 = vsub.f32 %v1157, %v1867
        %v2198 = vsub.f32 %v1159, %v1867
        %v2199 = vsub.f32 %v1161, %v1870
        %v2200 = vsub.f32 %v1163, %v1870
        %v2201 = vsub.f32 %v1167, %v1873
        %v2202 = vsub.f32 %v1169, %v1873
        %v2203 = vsub.f32 %v1171, %v1876
        %v2204 = vsub.f32 %v1173, %v1876
        %v2205 = vsub.f32 %v1177, %v1879
        %v2206 = vsub.f32 %v1179, %v1879
        %v2207 = vsub.f32 %v1181, %v1882
        %v2208 = vsub.f32 %v1183, %v1882
        %v2209 = vsub.f32 %v1187, %v1885
        %v2210 = vsub.f32 %v1189, %v1885
        %v2211 = vsub.f32 %v1191, %v1888
        %v2212 = vsub.f32 %v1193, %v1888
        %v2213 = vsub.f32 %v1197, %v1891
        %v2214 = vsub.f32 %v1199, %v1891
        %v2215 = vsub.f32 %v1201, %v1894
        %v2216 = vsub.f32 %v1203, %v1894
        %v2217 = vsub.f32 %v1207, %v1897
        %v2218 = vsub.f32 %v1209, %v1897
        %v2219 = vsub.f32 %v1211, %v1900
        %v2220 = vsub.f32 %v1213, %v1900
        %v2221 = vsub.f32 %v1304, %v1903
        %v2222 = vsub.f32 %v1306, %v1903
        %v2223 = vsub.f32 %v1308, %v1906
        %v2224 = vsub.f32 %v1310, %v1906
        %v2225 = vsub.f32 %v1314, %v1909
        %v2226 = vsub.f32 %v1316, %v1909
        %v2227 = vsub.f32 %v1318, %v1912
        %v2228 = vsub.f32 %v1320, %v1912
        %v2229 = vsub.f32 %v1324, %v1915
        %v2230 = vsub.f32 %v1326, %v1915
        %v2231 = vsub.f32 %v1328, %v1918
        %v2232 = vsub.f32 %v1330, %v1918
        %v2233 = vsub.f32 %v1334, %v1921
        %v2234 = vsub.f32 %v1336, %v1921
        %v2235 = vsub.f32 %v1338, %v1924
        %v2236 = vsub.f32 %v1340, %v1924
        %v2237 = vsub.f32 %v1344, %v1927
        %v2238 = vsub.f32 %v1346, %v1927
        %v2239 = vsub.f32 %v1348, %v1930
        %v2240 = vsub.f32 %v1350, %v1930
        %v2241 = vsub.f32 %v1354, %v1933
        %v2242 = vsub.f32 %v1356, %v1933
        %v2243 = vsub.f32 %v1358, %v1936
        %v2244 = vsub.f32 %v1360, %v1936
        %v2245 = vsub.f32 %v1364, %v1939
        %v2246 = vsub.f32 %v1366, %v1939
        %v2247 = vsub.f32 %v1368, %v1942
        %v2248 = vsub.f32 %v1370, %v1942
        %v2249 = vsub.f32 %v1374, %v1945
        %v2250 = vsub.f32 %v1376, %v1945
        %v2251 = vsub.f32 %v1378, %v1948
        %v2252 = vsub.f32 %v1380, %v1948
        %v2253 = vsub.f32 %v1384, %v1951
        %v2254 = vsub.f32 %v1386, %v1951
        %v2255 = vsub.f32 %v1388, %v1954
        %v2256 = vsub.f32 %v1390, %v1954
        %v2257 = vsub.f32 %v1394, %v1957
        %v2258 = vsub.f32 %v1396, %v1957
        %v2259 = vsub.f32 %v1398, %v1960
        %v2260 = vsub.f32 %v1400, %v1960
        %v2261 = vsub.f32 %v1404, %v1963
        %v2262 = vsub.f32 %v1406, %v1963
        %v2263 = vsub.f32 %v1408, %v1966
        %v2264 = vsub.f32 %v1410, %v1966
        %v2265 = vsub.f32 %v1414, %v1969
        %v2266 = vsub.f32 %v1416, %v1969
        %v2267 = vsub.f32 %v1418, %v1972
        %v2268 = vsub.f32 %v1420, %v1972
        %v2269 = vsub.f32 %v1424, %v1975
        %v2270 = vsub.f32 %v1426, %v1975
        %v2271 = vsub.f32 %v1428, %v1978
        %v2272 = vsub.f32 %v1430, %v1978
        %v2273 = vsub.f32 %v1434, %v1981
        %v2274 = vsub.f32 %v1436, %v1981
        %v2275 = vsub.f32 %v1438, %v1984
        %v2276 = vsub.f32 %v1440, %v1984
        %v2277 = vsub.f32 %v1444, %v1987
        %v2278 = vsub.f32 %v1446, %v1987
        %v2279 = vsub.f32 %v1448, %v1990
        %v2280 = vsub.f32 %v1450, %v1990
        %v2281 = vsub.f32 %v1454, %v1993
        %v2282 = vsub.f32 %v1456, %v1993
        %v2283 = vsub.f32 %v1458, %v1996
        %v2284 = vsub.f32 %v1460, %v1996
        %v2285 = vsub.f32 %v1551, %v1999
        %v2286 = vsub.f32 %v1553, %v1999
        %v2287 = vsub.f32 %v1555, %v2002
        %v2288 = vsub.f32 %v1557, %v2002
        %v2289 = vsub.f32 %v1561, %v2005
        %v2290 = vsub.f32 %v1563, %v2005
        %v2291 = vsub.f32 %v1565, %v2008
        %v2292 = vsub.f32 %v1567, %v2008
        %v2293 = vsub.f32 %v1571, %v2011
        %v2294 = vsub.f32 %v1573, %v2011
        %v2295 = vsub.f32 %v1575, %v2014
        %v2296 = vsub.f32 %v1577, %v2014
        %v2297 = vsub.f32 %v1581, %v2017
        %v2298 = vsub.f32 %v1583, %v2017
        %v2299 = vsub.f32 %v1585, %v2020
        %v2300 = vsub.f32 %v1587, %v2020
        %v2301 = vsub.f32 %v1591, %v2023
        %v2302 = vsub.f32 %v1593, %v2023
        %v2303 = vsub.f32 %v1595, %v2026
        %v2304 = vsub.f32 %v1597, %v2026
        %v2305 = vsub.f32 %v1601, %v2029
        %v2306 = vsub.f32 %v1603, %v2029
        %v2307 = vsub.f32 %v1605, %v2032
        %v2308 = vsub.f32 %v1607, %v2032
        %v2309 = vsub.f32 %v1611, %v2035
        %v2310 = vsub.f32 %v1613, %v2035
        %v2311 = vsub.f32 %v1615, %v2038
        %v2312 = vsub.f32 %v1617, %v2038
        %v2313 = vsub.f32 %v1621, %v2041
        %v2314 = vsub.f32 %v1623, %v2041
        %v2315 = vsub.f32 %v1625, %v2044
        %v2316 = vsub.f32 %v1627, %v2044
        %v2317 = vsub.f32 %v1631, %v2047
        %v2318 = vsub.f32 %v1633, %v2047
        %v2319 = vsub.f32 %v1635, %v2050
        %v2320 = vsub.f32 %v1637, %v2050
        %v2321 = vsub.f32 %v1641, %v2053
        %v2322 = vsub.f32 %v1643, %v2053
        %v2323 = vsub.f32 %v1645, %v2056
        %v2324 = vsub.f32 %v1647, %v2056
        %v2325 = vsub.f32 %v1651, %v2059
        %v2326 = vsub.f32 %v1653, %v2059
        %v2327 = vsub.f32 %v1655, %v2062
        %v2328 = vsub.f32 %v1657, %v2062
        %v2329 = vsub.f32 %v1661, %v2065
        %v2330 = vsub.f32 %v1663, %v2065
        %v2331 = vsub.f32 %v1665, %v2068
        %v2332 = vsub.f32 %v1667, %v2068
        %v2333 = vsub.f32 %v1671, %v2071
        %v2334 = vsub.f32 %v1673, %v2071
        %v2335 = vsub.f32 %v1675, %v2074
        %v2336 = vsub.f32 %v1677, %v2074
        %v2337 = vsub.f32 %v1681, %v2077
        %v2338 = vsub.f32 %v1683, %v2077
        %v2339 = vsub.f32 %v1685, %v2080
        %v2340 = vsub.f32 %v1687, %v2080
        %v2341 = vsub.f32 %v1691, %v2083
        %v2342 = vsub.f32 %v1693, %v2083
        %v2343 = vsub.f32 %v1695, %v2086
        %v2344 = vsub.f32 %v1697, %v2086
        %v2345 = vsub.f32 %v1701, %v2089
        %v2346 = vsub.f32 %v1703, %v2089
        %v2347 = vsub.f32 %v1705, %v2092
        %v2348 = vsub.f32 %v1707, %v2092
        %v2349 = vmul.f32 %v2093, 1.442695
        %v2350 = vpow.pop %v2349
        %v2351 = vmul.f32 %v2094, 1.442695
        %v2352 = vpow.pop %v2351
        %v2353 = vmul.f32 %v2095, 1.442695
        %v2354 = vpow.pop %v2353
        %v2355 = vmul.f32 %v2096, 1.442695
        %v2356 = vpow.pop %v2355
        %v2357 = vmul.f32 %v2097, 1.442695
        %v2358 = vpow.pop %v2357
        %v2359 = vmul.f32 %v2098, 1.442695
        %v2360 = vpow.pop %v2359
        %v2361 = vmul.f32 %v2099, 1.442695
        %v2362 = vpow.pop %v2361
        %v2363 = vmul.f32 %v2100, 1.442695
        %v2364 = vpow.pop %v2363
        %v2365 = vmul.f32 %v2101, 1.442695
        %v2366 = vpow.pop %v2365
        %v2367 = vmul.f32 %v2102, 1.442695
        %v2368 = vpow.pop %v2367
        %v2369 = vmul.f32 %v2103, 1.442695
        %v2370 = vpow.pop %v2369
        %v2371 = vmul.f32 %v2104, 1.442695
        %v2372 = vpow.pop %v2371
        %v2373 = vmul.f32 %v2105, 1.442695
        %v2374 = vpow.pop %v2373
        %v2375 = vmul.f32 %v2106, 1.442695
        %v2376 = vpow.pop %v2375
        %v2377 = vmul.f32 %v2107, 1.442695
        %v2378 = vpow.pop %v2377
        %v2379 = vmul.f32 %v2108, 1.442695
        %v2380 = vpow.pop %v2379
        %v2381 = vmul.f32 %v2109, 1.442695
        %v2382 = vpow.pop %v2381
        %v2383 = vmul.f32 %v2110, 1.442695
        %v2384 = vpow.pop %v2383
        %v2385 = vmul.f32 %v2111, 1.442695
        %v2386 = vpow.pop %v2385
        %v2387 = vmul.f32 %v2112, 1.442695
        %v2388 = vpow.pop %v2387
        %v2389 = vmul.f32 %v2113, 1.442695
        %v2390 = vpow.pop %v2389
        %v2391 = vmul.f32 %v2114, 1.442695
        %v2392 = vpow.pop %v2391
        %v2393 = vmul.f32 %v2115, 1.442695
        %v2394 = vpow.pop %v2393
        %v2395 = vmul.f32 %v2116, 1.442695
        %v2396 = vpow.pop %v2395
        %v2397 = vmul.f32 %v2117, 1.442695
        %v2398 = vpow.pop %v2397
        %v2399 = vmul.f32 %v2118, 1.442695
        %v2400 = vpow.pop %v2399
        %v2401 = vmul.f32 %v2119, 1.442695
        %v2402 = vpow.pop %v2401
        %v2403 = vmul.f32 %v2120, 1.442695
        %v2404 = vpow.pop %v2403
        %v2405 = vmul.f32 %v2121, 1.442695
        %v2406 = vpow.pop %v2405
        %v2407 = vmul.f32 %v2122, 1.442695
        %v2408 = vpow.pop %v2407
        %v2409 = vmul.f32 %v2123, 1.442695
        %v2410 = vpow.pop %v2409
        %v2411 = vmul.f32 %v2124, 1.442695
        %v2412 = vpow.pop %v2411
        %v2413 = vmul.f32 %v2125, 1.442695
        %v2414 = vpow.pop %v2413
        %v2415 = vmul.f32 %v2126, 1.442695
        %v2416 = vpow.pop %v2415
        %v2417 = vmul.f32 %v2127, 1.442695
        %v2418 = vpow.pop %v2417
        %v2419 = vmul.f32 %v2128, 1.442695
        %v2420 = vpow.pop %v2419
        %v2421 = vmul.f32 %v2129, 1.442695
        %v2422 = vpow.pop %v2421
        %v2423 = vmul.f32 %v2130, 1.442695
        %v2424 = vpow.pop %v2423
        %v2425 = vmul.f32 %v2131, 1.442695
        %v2426 = vpow.pop %v2425
        %v2427 = vmul.f32 %v2132, 1.442695
        %v2428 = vpow.pop %v2427
        %v2429 = vmul.f32 %v2133, 1.442695
        %v2430 = vpow.pop %v2429
        %v2431 = vmul.f32 %v2134, 1.442695
        %v2432 = vpow.pop %v2431
        %v2433 = vmul.f32 %v2135, 1.442695
        %v2434 = vpow.pop %v2433
        %v2435 = vmul.f32 %v2136, 1.442695
        %v2436 = vpow.pop %v2435
        %v2437 = vmul.f32 %v2137, 1.442695
        %v2438 = vpow.pop %v2437
        %v2439 = vmul.f32 %v2138, 1.442695
        %v2440 = vpow.pop %v2439
        %v2441 = vmul.f32 %v2139, 1.442695
        %v2442 = vpow.pop %v2441
        %v2443 = vmul.f32 %v2140, 1.442695
        %v2444 = vpow.pop %v2443
        %v2445 = vmul.f32 %v2141, 1.442695
        %v2446 = vpow.pop %v2445
        %v2447 = vmul.f32 %v2142, 1.442695
        %v2448 = vpow.pop %v2447
        %v2449 = vmul.f32 %v2143, 1.442695
        %v2450 = vpow.pop %v2449
        %v2451 = vmul.f32 %v2144, 1.442695
        %v2452 = vpow.pop %v2451
        %v2453 = vmul.f32 %v2145, 1.442695
        %v2454 = vpow.pop %v2453
        %v2455 = vmul.f32 %v2146, 1.442695
        %v2456 = vpow.pop %v2455
        %v2457 = vmul.f32 %v2147, 1.442695
        %v2458 = vpow.pop %v2457
        %v2459 = vmul.f32 %v2148, 1.442695
        %v2460 = vpow.pop %v2459
        %v2461 = vmul.f32 %v2149, 1.442695
        %v2462 = vpow.pop %v2461
        %v2463 = vmul.f32 %v2150, 1.442695
        %v2464 = vpow.pop %v2463
        %v2465 = vmul.f32 %v2151, 1.442695
        %v2466 = vpow.pop %v2465
        %v2467 = vmul.f32 %v2152, 1.442695
        %v2468 = vpow.pop %v2467
        %v2469 = vmul.f32 %v2153, 1.442695
        %v2470 = vpow.pop %v2469
        %v2471 = vmul.f32 %v2154, 1.442695
        %v2472 = vpow.pop %v2471
        %v2473 = vmul.f32 %v2155, 1.442695
        %v2474 = vpow.pop %v2473
        %v2475 = vmul.f32 %v2156, 1.442695
        %v2476 = vpow.pop %v2475
        %v2477 = vmul.f32 %v2157, 1.442695
        %v2478 = vpow.pop %v2477
        %v2479 = vmul.f32 %v2158, 1.442695
        %v2480 = vpow.pop %v2479
        %v2481 = vmul.f32 %v2159, 1.442695
        %v2482 = vpow.pop %v2481
        %v2483 = vmul.f32 %v2160, 1.442695
        %v2484 = vpow.pop %v2483
        %v2485 = vmul.f32 %v2161, 1.442695
        %v2486 = vpow.pop %v2485
        %v2487 = vmul.f32 %v2162, 1.442695
        %v2488 = vpow.pop %v2487
        %v2489 = vmul.f32 %v2163, 1.442695
        %v2490 = vpow.pop %v2489
        %v2491 = vmul.f32 %v2164, 1.442695
        %v2492 = vpow.pop %v2491
        %v2493 = vmul.f32 %v2165, 1.442695
        %v2494 = vpow.pop %v2493
        %v2495 = vmul.f32 %v2166, 1.442695
        %v2496 = vpow.pop %v2495
        %v2497 = vmul.f32 %v2167, 1.442695
        %v2498 = vpow.pop %v2497
        %v2499 = vmul.f32 %v2168, 1.442695
        %v2500 = vpow.pop %v2499
        %v2501 = vmul.f32 %v2169, 1.442695
        %v2502 = vpow.pop %v2501
        %v2503 = vmul.f32 %v2170, 1.442695
        %v2504 = vpow.pop %v2503
        %v2505 = vmul.f32 %v2171, 1.442695
        %v2506 = vpow.pop %v2505
        %v2507 = vmul.f32 %v2172, 1.442695
        %v2508 = vpow.pop %v2507
        %v2509 = vmul.f32 %v2173, 1.442695
        %v2510 = vpow.pop %v2509
        %v2511 = vmul.f32 %v2174, 1.442695
        %v2512 = vpow.pop %v2511
        %v2513 = vmul.f32 %v2175, 1.442695
        %v2514 = vpow.pop %v2513
        %v2515 = vmul.f32 %v2176, 1.442695
        %v2516 = vpow.pop %v2515
        %v2517 = vmul.f32 %v2177, 1.442695
        %v2518 = vpow.pop %v2517
        %v2519 = vmul.f32 %v2178, 1.442695
        %v2520 = vpow.pop %v2519
        %v2521 = vmul.f32 %v2179, 1.442695
        %v2522 = vpow.pop %v2521
        %v2523 = vmul.f32 %v2180, 1.442695
        %v2524 = vpow.pop %v2523
        %v2525 = vmul.f32 %v2181, 1.442695
        %v2526 = vpow.pop %v2525
        %v2527 = vmul.f32 %v2182, 1.442695
        %v2528 = vpow.pop %v2527
        %v2529 = vmul.f32 %v2183, 1.442695
        %v2530 = vpow.pop %v2529
        %v2531 = vmul.f32 %v2184, 1.442695
        %v2532 = vpow.pop %v2531
        %v2533 = vmul.f32 %v2185, 1.442695
        %v2534 = vpow.pop %v2533
        %v2535 = vmul.f32 %v2186, 1.442695
        %v2536 = vpow.pop %v2535
        %v2537 = vmul.f32 %v2187, 1.442695
        %v2538 = vpow.pop %v2537
        %v2539 = vmul.f32 %v2188, 1.442695
        %v2540 = vpow.pop %v2539
        %v2541 = vmul.f32 %v2189, 1.442695
        %v2542 = vpow.pop %v2541
        %v2543 = vmul.f32 %v2190, 1.442695
        %v2544 = vpow.pop %v2543
        %v2545 = vmul.f32 %v2191, 1.442695
        %v2546 = vpow.pop %v2545
        %v2547 = vmul.f32 %v2192, 1.442695
        %v2548 = vpow.pop %v2547
        %v2549 = vmul.f32 %v2193, 1.442695
        %v2550 = vpow.pop %v2549
        %v2551 = vmul.f32 %v2194, 1.442695
        %v2552 = vpow.pop %v2551
        %v2553 = vmul.f32 %v2195, 1.442695
        %v2554 = vpow.pop %v2553
        %v2555 = vmul.f32 %v2196, 1.442695
        %v2556 = vpow.pop %v2555
        %v2557 = vmul.f32 %v2197, 1.442695
        %v2558 = vpow.pop %v2557
        %v2559 = vmul.f32 %v2198, 1.442695
        %v2560 = vpow.pop %v2559
        %v2561 = vmul.f32 %v2199, 1.442695
        %v2562 = vpow.pop %v2561
        %v2563 = vmul.f32 %v2200, 1.442695
        %v2564 = vpow.pop %v2563
        %v2565 = vmul.f32 %v2201, 1.442695
        %v2566 = vpow.pop %v2565
        %v2567 = vmul.f32 %v2202, 1.442695
        %v2568 = vpow.pop %v2567
        %v2569 = vmul.f32 %v2203, 1.442695
        %v2570 = vpow.pop %v2569
        %v2571 = vmul.f32 %v2204, 1.442695
        %v2572 = vpow.pop %v2571
        %v2573 = vmul.f32 %v2205, 1.442695
        %v2574 = vpow.pop %v2573
        %v2575 = vmul.f32 %v2206, 1.442695
        %v2576 = vpow.pop %v2575
        %v2577 = vmul.f32 %v2207, 1.442695
        %v2578 = vpow.pop %v2577
        %v2579 = vmul.f32 %v2208, 1.442695
        %v2580 = vpow.pop %v2579
        %v2581 = vmul.f32 %v2209, 1.442695
        %v2582 = vpow.pop %v2581
        %v2583 = vmul.f32 %v2210, 1.442695
        %v2584 = vpow.pop %v2583
        %v2585 = vmul.f32 %v2211, 1.442695
        %v2586 = vpow.pop %v2585
        %v2587 = vmul.f32 %v2212, 1.442695
        %v2588 = vpow.pop %v2587
        %v2589 = vmul.f32 %v2213, 1.442695
        %v2590 = vpow.pop %v2589
        %v2591 = vmul.f32 %v2214, 1.442695
        %v2592 = vpow.pop %v2591
        %v2593 = vmul.f32 %v2215, 1.442695
        %v2594 = vpow.pop %v2593
        %v2595 = vmul.f32 %v2216, 1.442695
        %v2596 = vpow.pop %v2595
        %v2597 = vmul.f32 %v2217, 1.442695
        %v2598 = vpow.pop %v2597
        %v2599 = vmul.f32 %v2218, 1.442695
        %v2600 = vpow.pop %v2599
        %v2601 = vmul.f32 %v2219, 1.442695
        %v2602 = vpow.pop %v2601
        %v2603 = vmul.f32 %v2220, 1.442695
        %v2604 = vpow.pop %v2603
        %v2605 = vmul.f32 %v2221, 1.442695
        %v2606 = vpow.pop %v2605
        %v2607 = vmul.f32 %v2222, 1.442695
        %v2608 = vpow.pop %v2607
        %v2609 = vmul.f32 %v2223, 1.442695
        %v2610 = vpow.pop %v2609
        %v2611 = vmul.f32 %v2224, 1.442695
        %v2612 = vpow.pop %v2611
        %v2613 = vmul.f32 %v2225, 1.442695
        %v2614 = vpow.pop %v2613
        %v2615 = vmul.f32 %v2226, 1.442695
        %v2616 = vpow.pop %v2615
        %v2617 = vmul.f32 %v2227, 1.442695
        %v2618 = vpow.pop %v2617
        %v2619 = vmul.f32 %v2228, 1.442695
        %v2620 = vpow.pop %v2619
        %v2621 = vmul.f32 %v2229, 1.442695
        %v2622 = vpow.pop %v2621
        %v2623 = vmul.f32 %v2230, 1.442695
        %v2624 = vpow.pop %v2623
        %v2625 = vmul.f32 %v2231, 1.442695
        %v2626 = vpow.pop %v2625
        %v2627 = vmul.f32 %v2232, 1.442695
        %v2628 = vpow.pop %v2627
        %v2629 = vmul.f32 %v2233, 1.442695
        %v2630 = vpow.pop %v2629
        %v2631 = vmul.f32 %v2234, 1.442695
        %v2632 = vpow.pop %v2631
        %v2633 = vmul.f32 %v2235, 1.442695
        %v2634 = vpow.pop %v2633
        %v2635 = vmul.f32 %v2236, 1.442695
        %v2636 = vpow.pop %v2635
        %v2637 = vmul.f32 %v2237, 1.442695
        %v2638 = vpow.pop %v2637
        %v2639 = vmul.f32 %v2238, 1.442695
        %v2640 = vpow.pop %v2639
        %v2641 = vmul.f32 %v2239, 1.442695
        %v2642 = vpow.pop %v2641
        %v2643 = vmul.f32 %v2240, 1.442695
        %v2644 = vpow.pop %v2643
        %v2645 = vmul.f32 %v2241, 1.442695
        %v2646 = vpow.pop %v2645
        %v2647 = vmul.f32 %v2242, 1.442695
        %v2648 = vpow.pop %v2647
        %v2649 = vmul.f32 %v2243, 1.442695
        %v2650 = vpow.pop %v2649
        %v2651 = vmul.f32 %v2244, 1.442695
        %v2652 = vpow.pop %v2651
        %v2653 = vmul.f32 %v2245, 1.442695
        %v2654 = vpow.pop %v2653
        %v2655 = vmul.f32 %v2246, 1.442695
        %v2656 = vpow.pop %v2655
        %v2657 = vmul.f32 %v2247, 1.442695
        %v2658 = vpow.pop %v2657
        %v2659 = vmul.f32 %v2248, 1.442695
        %v2660 = vpow.pop %v2659
        %v2661 = vmul.f32 %v2249, 1.442695
        %v2662 = vpow.pop %v2661
        %v2663 = vmul.f32 %v2250, 1.442695
        %v2664 = vpow.pop %v2663
        %v2665 = vmul.f32 %v2251, 1.442695
        %v2666 = vpow.pop %v2665
        %v2667 = vmul.f32 %v2252, 1.442695
        %v2668 = vpow.pop %v2667
        %v2669 = vmul.f32 %v2253, 1.442695
        %v2670 = vpow.pop %v2669
        %v2671 = vmul.f32 %v2254, 1.442695
        %v2672 = vpow.pop %v2671
        %v2673 = vmul.f32 %v2255, 1.442695
        %v2674 = vpow.pop %v2673
        %v2675 = vmul.f32 %v2256, 1.442695
        %v2676 = vpow.pop %v2675
        %v2677 = vmul.f32 %v2257, 1.442695
        %v2678 = vpow.pop %v2677
        %v2679 = vmul.f32 %v2258, 1.442695
        %v2680 = vpow.pop %v2679
        %v2681 = vmul.f32 %v2259, 1.442695
        %v2682 = vpow.pop %v2681
        %v2683 = vmul.f32 %v2260, 1.442695
        %v2684 = vpow.pop %v2683
        %v2685 = vmul.f32 %v2261, 1.442695
        %v2686 = vpow.pop %v2685
        %v2687 = vmul.f32 %v2262, 1.442695
        %v2688 = vpow.pop %v2687
        %v2689 = vmul.f32 %v2263, 1.442695
        %v2690 = vpow.pop %v2689
        %v2691 = vmul.f32 %v2264, 1.442695
        %v2692 = vpow.pop %v2691
        %v2693 = vmul.f32 %v2265, 1.442695
        %v2694 = vpow.pop %v2693
        %v2695 = vmul.f32 %v2266, 1.442695
        %v2696 = vpow.pop %v2695
        %v2697 = vmul.f32 %v2267, 1.442695
        %v2698 = vpow.pop %v2697
        %v2699 = vmul.f32 %v2268, 1.442695
        %v2700 = vpow.pop %v2699
        %v2701 = vmul.f32 %v2269, 1.442695
        %v2702 = vpow.pop %v2701
        %v2703 = vmul.f32 %v2270, 1.442695
        %v2704 = vpow.pop %v2703
        %v2705 = vmul.f32 %v2271, 1.442695
        %v2706 = vpow.pop %v2705
        %v2707 = vmul.f32 %v2272, 1.442695
        %v2708 = vpow.pop %v2707
        %v2709 = vmul.f32 %v2273, 1.442695
        %v2710 = vpow.pop %v2709
        %v2711 = vmul.f32 %v2274, 1.442695
        %v2712 = vpow.pop %v2711
        %v2713 = vmul.f32 %v2275, 1.442695
        %v2714 = vpow.pop %v2713
        %v2715 = vmul.f32 %v2276, 1.442695
        %v2716 = vpow.pop %v2715
        %v2717 = vmul.f32 %v2277, 1.442695
        %v2718 = vpow.pop %v2717
        %v2719 = vmul.f32 %v2278, 1.442695
        %v2720 = vpow.pop %v2719
        %v2721 = vmul.f32 %v2279, 1.442695
        %v2722 = vpow.pop %v2721
        %v2723 = vmul.f32 %v2280, 1.442695
        %v2724 = vpow.pop %v2723
        %v2725 = vmul.f32 %v2281, 1.442695
        %v2726 = vpow.pop %v2725
        %v2727 = vmul.f32 %v2282, 1.442695
        %v2728 = vpow.pop %v2727
        %v2729 = vmul.f32 %v2283, 1.442695
        %v2730 = vpow.pop %v2729
        %v2731 = vmul.f32 %v2284, 1.442695
        %v2732 = vpow.pop %v2731
        %v2733 = vmul.f32 %v2285, 1.442695
        %v2734 = vpow.pop %v2733
        %v2735 = vmul.f32 %v2286, 1.442695
        %v2736 = vpow.pop %v2735
        %v2737 = vmul.f32 %v2287, 1.442695
        %v2738 = vpow.pop %v2737
        %v2739 = vmul.f32 %v2288, 1.442695
        %v2740 = vpow.pop %v2739
        %v2741 = vmul.f32 %v2289, 1.442695
        %v2742 = vpow.pop %v2741
        %v2743 = vmul.f32 %v2290, 1.442695
        %v2744 = vpow.pop %v2743
        %v2745 = vmul.f32 %v2291, 1.442695
        %v2746 = vpow.pop %v2745
        %v2747 = vmul.f32 %v2292, 1.442695
        %v2748 = vpow.pop %v2747
        %v2749 = vmul.f32 %v2293, 1.442695
        %v2750 = vpow.pop %v2749
        %v2751 = vmul.f32 %v2294, 1.442695
        %v2752 = vpow.pop %v2751
        %v2753 = vmul.f32 %v2295, 1.442695
        %v2754 = vpow.pop %v2753
        %v2755 = vmul.f32 %v2296, 1.442695
        %v2756 = vpow.pop %v2755
        %v2757 = vmul.f32 %v2297, 1.442695
        %v2758 = vpow.pop %v2757
        %v2759 = vmul.f32 %v2298, 1.442695
        %v2760 = vpow.pop %v2759
        %v2761 = vmul.f32 %v2299, 1.442695
        %v2762 = vpow.pop %v2761
        %v2763 = vmul.f32 %v2300, 1.442695
        %v2764 = vpow.pop %v2763
        %v2765 = vmul.f32 %v2301, 1.442695
        %v2766 = vpow.pop %v2765
        %v2767 = vmul.f32 %v2302, 1.442695
        %v2768 = vpow.pop %v2767
        %v2769 = vmul.f32 %v2303, 1.442695
        %v2770 = vpow.pop %v2769
        %v2771 = vmul.f32 %v2304, 1.442695
        %v2772 = vpow.pop %v2771
        %v2773 = vmul.f32 %v2305, 1.442695
        %v2774 = vpow.pop %v2773
        %v2775 = vmul.f32 %v2306, 1.442695
        %v2776 = vpow.pop %v2775
        %v2777 = vmul.f32 %v2307, 1.442695
        %v2778 = vpow.pop %v2777
        %v2779 = vmul.f32 %v2308, 1.442695
        %v2780 = vpow.pop %v2779
        %v2781 = vmul.f32 %v2309, 1.442695
        %v2782 = vpow.pop %v2781
        %v2783 = vmul.f32 %v2310, 1.442695
        %v2784 = vpow.pop %v2783
        %v2785 = vmul.f32 %v2311, 1.442695
        %v2786 = vpow.pop %v2785
        %v2787 = vmul.f32 %v2312, 1.442695
        %v2788 = vpow.pop %v2787
        %v2789 = vmul.f32 %v2313, 1.442695
        %v2790 = vpow.pop %v2789
        %v2791 = vmul.f32 %v2314, 1.442695
        %v2792 = vpow.pop %v2791
        %v2793 = vmul.f32 %v2315, 1.442695
        %v2794 = vpow.pop %v2793
        %v2795 = vmul.f32 %v2316, 1.442695
        %v2796 = vpow.pop %v2795
        %v2797 = vmul.f32 %v2317, 1.442695
        %v2798 = vpow.pop %v2797
        %v2799 = vmul.f32 %v2318, 1.442695
        %v2800 = vpow.pop %v2799
        %v2801 = vmul.f32 %v2319, 1.442695
        %v2802 = vpow.pop %v2801
        %v2803 = vmul.f32 %v2320, 1.442695
        %v2804 = vpow.pop %v2803
        %v2805 = vmul.f32 %v2321, 1.442695
        %v2806 = vpow.pop %v2805
        %v2807 = vmul.f32 %v2322, 1.442695
        %v2808 = vpow.pop %v2807
        %v2809 = vmul.f32 %v2323, 1.442695
        %v2810 = vpow.pop %v2809
        %v2811 = vmul.f32 %v2324, 1.442695
        %v2812 = vpow.pop %v2811
        %v2813 = vmul.f32 %v2325, 1.442695
        %v2814 = vpow.pop %v2813
        %v2815 = vmul.f32 %v2326, 1.442695
        %v2816 = vpow.pop %v2815
        %v2817 = vmul.f32 %v2327, 1.442695
        %v2818 = vpow.pop %v2817
        %v2819 = vmul.f32 %v2328, 1.442695
        %v2820 = vpow.pop %v2819
        %v2821 = vmul.f32 %v2329, 1.442695
        %v2822 = vpow.pop %v2821
        %v2823 = vmul.f32 %v2330, 1.442695
        %v2824 = vpow.pop %v2823
        %v2825 = vmul.f32 %v2331, 1.442695
        %v2826 = vpow.pop %v2825
        %v2827 = vmul.f32 %v2332, 1.442695
        %v2828 = vpow.pop %v2827
        %v2829 = vmul.f32 %v2333, 1.442695
        %v2830 = vpow.pop %v2829
        %v2831 = vmul.f32 %v2334, 1.442695
        %v2832 = vpow.pop %v2831
        %v2833 = vmul.f32 %v2335, 1.442695
        %v2834 = vpow.pop %v2833
        %v2835 = vmul.f32 %v2336, 1.442695
        %v2836 = vpow.pop %v2835
        %v2837 = vmul.f32 %v2337, 1.442695
        %v2838 = vpow.pop %v2837
        %v2839 = vmul.f32 %v2338, 1.442695
        %v2840 = vpow.pop %v2839
        %v2841 = vmul.f32 %v2339, 1.442695
        %v2842 = vpow.pop %v2841
        %v2843 = vmul.f32 %v2340, 1.442695
        %v2844 = vpow.pop %v2843
        %v2845 = vmul.f32 %v2341, 1.442695
        %v2846 = vpow.pop %v2845
        %v2847 = vmul.f32 %v2342, 1.442695
        %v2848 = vpow.pop %v2847
        %v2849 = vmul.f32 %v2343, 1.442695
        %v2850 = vpow.pop %v2849
        %v2851 = vmul.f32 %v2344, 1.442695
        %v2852 = vpow.pop %v2851
        %v2853 = vmul.f32 %v2345, 1.442695
        %v2854 = vpow.pop %v2853
        %v2855 = vmul.f32 %v2346, 1.442695
        %v2856 = vpow.pop %v2855
        %v2857 = vmul.f32 %v2347, 1.442695
        %v2858 = vpow.pop %v2857
        %v2859 = vmul.f32 %v2348, 1.442695
        %v2860 = vpow.pop %v2859
        %v2861 = vadd.f32 %v2350, %v2352
        %2862 = vadd.xlane.f32.xlu0 %v2861
        %v2863 = vpop.xlane.xlu0 %2862
        %v2864 = vadd.f32 %v2354, %v2356
        %2865 = vadd.xlane.f32.xlu0 %v2864
        %v2866 = vpop.xlane.xlu0 %2865
        %v2867 = vadd.f32 %v2358, %v2360
        %2868 = vadd.xlane.f32.xlu0 %v2867
        %v2869 = vpop.xlane.xlu0 %2868
        %v2870 = vadd.f32 %v2362, %v2364
        %2871 = vadd.xlane.f32.xlu0 %v2870
        %v2872 = vpop.xlane.xlu0 %2871
        %v2873 = vadd.f32 %v2366, %v2368
        %2874 = vadd.xlane.f32.xlu0 %v2873
        %v2875 = vpop.xlane.xlu0 %2874
        %v2876 = vadd.f32 %v2370, %v2372
        %2877 = vadd.xlane.f32.xlu0 %v2876
        %v2878 = vpop.xlane.xlu0 %2877
        %v2879 = vadd.f32 %v2374, %v2376
        %2880 = vadd.xlane.f32.xlu0 %v2879
        %v2881 = vpop.xlane.xlu0 %2880
        %v2882 = vadd.f32 %v2378, %v2380
        %2883 = vadd.xlane.f32.xlu0 %v2882
        %v2884 = vpop.xlane.xlu0 %2883
        %v2885 = vadd.f32 %v2382, %v2384
        %2886 = vadd.xlane.f32.xlu0 %v2885
        %v2887 = vpop.xlane.xlu0 %2886
        %v2888 = vadd.f32 %v2386, %v2388
        %2889 = vadd.xlane.f32.xlu0 %v2888
        %v2890 = vpop.xlane.xlu0 %2889
        %v2891 = vadd.f32 %v2390, %v2392
        %2892 = vadd.xlane.f32.xlu0 %v2891
        %v2893 = vpop.xlane.xlu0 %2892
        %v2894 = vadd.f32 %v2394, %v2396
        %2895 = vadd.xlane.f32.xlu0 %v2894
        %v2896 = vpop.xlane.xlu0 %2895
        %v2897 = vadd.f32 %v2398, %v2400
        %2898 = vadd.xlane.f32.xlu0 %v2897
        %v2899 = vpop.xlane.xlu0 %2898
        %v2900 = vadd.f32 %v2402, %v2404
        %2901 = vadd.xlane.f32.xlu0 %v2900
        %v2902 = vpop.xlane.xlu0 %2901
        %v2903 = vadd.f32 %v2406, %v2408
        %2904 = vadd.xlane.f32.xlu0 %v2903
        %v2905 = vpop.xlane.xlu0 %2904
        %v2906 = vadd.f32 %v2410, %v2412
        %2907 = vadd.xlane.f32.xlu0 %v2906
        %v2908 = vpop.xlane.xlu0 %2907
        %v2909 = vadd.f32 %v2414, %v2416
        %2910 = vadd.xlane.f32.xlu0 %v2909
        %v2911 = vpop.xlane.xlu0 %2910
        %v2912 = vadd.f32 %v2418, %v2420
        %2913 = vadd.xlane.f32.xlu0 %v2912
        %v2914 = vpop.xlane.xlu0 %2913
        %v2915 = vadd.f32 %v2422, %v2424
        %2916 = vadd.xlane.f32.xlu0 %v2915
        %v2917 = vpop.xlane.xlu0 %2916
        %v2918 = vadd.f32 %v2426, %v2428
        %2919 = vadd.xlane.f32.xlu0 %v2918
        %v2920 = vpop.xlane.xlu0 %2919
        %v2921 = vadd.f32 %v2430, %v2432
        %2922 = vadd.xlane.f32.xlu0 %v2921
        %v2923 = vpop.xlane.xlu0 %2922
        %v2924 = vadd.f32 %v2434, %v2436
        %2925 = vadd.xlane.f32.xlu0 %v2924
        %v2926 = vpop.xlane.xlu0 %2925
        %v2927 = vadd.f32 %v2438, %v2440
        %2928 = vadd.xlane.f32.xlu0 %v2927
        %v2929 = vpop.xlane.xlu0 %2928
        %v2930 = vadd.f32 %v2442, %v2444
        %2931 = vadd.xlane.f32.xlu0 %v2930
        %v2932 = vpop.xlane.xlu0 %2931
        %v2933 = vadd.f32 %v2446, %v2448
        %2934 = vadd.xlane.f32.xlu0 %v2933
        %v2935 = vpop.xlane.xlu0 %2934
        %v2936 = vadd.f32 %v2450, %v2452
        %2937 = vadd.xlane.f32.xlu0 %v2936
        %v2938 = vpop.xlane.xlu0 %2937
        %v2939 = vadd.f32 %v2454, %v2456
        %2940 = vadd.xlane.f32.xlu0 %v2939
        %v2941 = vpop.xlane.xlu0 %2940
        %v2942 = vadd.f32 %v2458, %v2460
        %2943 = vadd.xlane.f32.xlu0 %v2942
        %v2944 = vpop.xlane.xlu0 %2943
        %v2945 = vadd.f32 %v2462, %v2464
        %2946 = vadd.xlane.f32.xlu0 %v2945
        %v2947 = vpop.xlane.xlu0 %2946
        %v2948 = vadd.f32 %v2466, %v2468
        %2949 = vadd.xlane.f32.xlu0 %v2948
        %v2950 = vpop.xlane.xlu0 %2949
        %v2951 = vadd.f32 %v2470, %v2472
        %2952 = vadd.xlane.f32.xlu0 %v2951
        %v2953 = vpop.xlane.xlu0 %2952
        %v2954 = vadd.f32 %v2474, %v2476
        %2955 = vadd.xlane.f32.xlu0 %v2954
        %v2956 = vpop.xlane.xlu0 %2955
        %v2957 = vadd.f32 %v2478, %v2480
        %2958 = vadd.xlane.f32.xlu0 %v2957
        %v2959 = vpop.xlane.xlu0 %2958
        %v2960 = vadd.f32 %v2482, %v2484
        %2961 = vadd.xlane.f32.xlu0 %v2960
        %v2962 = vpop.xlane.xlu0 %2961
        %v2963 = vadd.f32 %v2486, %v2488
        %2964 = vadd.xlane.f32.xlu0 %v2963
        %v2965 = vpop.xlane.xlu0 %2964
        %v2966 = vadd.f32 %v2490, %v2492
        %2967 = vadd.xlane.f32.xlu0 %v2966
        %v2968 = vpop.xlane.xlu0 %2967
        %v2969 = vadd.f32 %v2494, %v2496
        %2970 = vadd.xlane.f32.xlu0 %v2969
        %v2971 = vpop.xlane.xlu0 %2970
        %v2972 = vadd.f32 %v2498, %v2500
        %2973 = vadd.xlane.f32.xlu0 %v2972
        %v2974 = vpop.xlane.xlu0 %2973
        %v2975 = vadd.f32 %v2502, %v2504
        %2976 = vadd.xlane.f32.xlu0 %v2975
        %v2977 = vpop.xlane.xlu0 %2976
        %v2978 = vadd.f32 %v2506, %v2508
        %2979 = vadd.xlane.f32.xlu0 %v2978
        %v2980 = vpop.xlane.xlu0 %2979
        %v2981 = vadd.f32 %v2510, %v2512
        %2982 = vadd.xlane.f32.xlu0 %v2981
        %v2983 = vpop.xlane.xlu0 %2982
        %v2984 = vadd.f32 %v2514, %v2516
        %2985 = vadd.xlane.f32.xlu0 %v2984
        %v2986 = vpop.xlane.xlu0 %2985
        %v2987 = vadd.f32 %v2518, %v2520
        %2988 = vadd.xlane.f32.xlu0 %v2987
        %v2989 = vpop.xlane.xlu0 %2988
        %v2990 = vadd.f32 %v2522, %v2524
        %2991 = vadd.xlane.f32.xlu0 %v2990
        %v2992 = vpop.xlane.xlu0 %2991
        %v2993 = vadd.f32 %v2526, %v2528
        %2994 = vadd.xlane.f32.xlu0 %v2993
        %v2995 = vpop.xlane.xlu0 %2994
        %v2996 = vadd.f32 %v2530, %v2532
        %2997 = vadd.xlane.f32.xlu0 %v2996
        %v2998 = vpop.xlane.xlu0 %2997
        %v2999 = vadd.f32 %v2534, %v2536
        %3000 = vadd.xlane.f32.xlu0 %v2999
        %v3001 = vpop.xlane.xlu0 %3000
        %v3002 = vadd.f32 %v2538, %v2540
        %3003 = vadd.xlane.f32.xlu0 %v3002
        %v3004 = vpop.xlane.xlu0 %3003
        %v3005 = vadd.f32 %v2542, %v2544
        %3006 = vadd.xlane.f32.xlu0 %v3005
        %v3007 = vpop.xlane.xlu0 %3006
        %v3008 = vadd.f32 %v2546, %v2548
        %3009 = vadd.xlane.f32.xlu0 %v3008
        %v3010 = vpop.xlane.xlu0 %3009
        %v3011 = vadd.f32 %v2550, %v2552
        %3012 = vadd.xlane.f32.xlu0 %v3011
        %v3013 = vpop.xlane.xlu0 %3012
        %v3014 = vadd.f32 %v2554, %v2556
        %3015 = vadd.xlane.f32.xlu0 %v3014
        %v3016 = vpop.xlane.xlu0 %3015
        %v3017 = vadd.f32 %v2558, %v2560
        %3018 = vadd.xlane.f32.xlu0 %v3017
        %v3019 = vpop.xlane.xlu0 %3018
        %v3020 = vadd.f32 %v2562, %v2564
        %3021 = vadd.xlane.f32.xlu0 %v3020
        %v3022 = vpop.xlane.xlu0 %3021
        %v3023 = vadd.f32 %v2566, %v2568
        %3024 = vadd.xlane.f32.xlu0 %v3023
        %v3025 = vpop.xlane.xlu0 %3024
        %v3026 = vadd.f32 %v2570, %v2572
        %3027 = vadd.xlane.f32.xlu0 %v3026
        %v3028 = vpop.xlane.xlu0 %3027
        %v3029 = vadd.f32 %v2574, %v2576
        %3030 = vadd.xlane.f32.xlu0 %v3029
        %v3031 = vpop.xlane.xlu0 %3030
        %v3032 = vadd.f32 %v2578, %v2580
        %3033 = vadd.xlane.f32.xlu0 %v3032
        %v3034 = vpop.xlane.xlu0 %3033
        %v3035 = vadd.f32 %v2582, %v2584
        %3036 = vadd.xlane.f32.xlu0 %v3035
        %v3037 = vpop.xlane.xlu0 %3036
        %v3038 = vadd.f32 %v2586, %v2588
        %3039 = vadd.xlane.f32.xlu0 %v3038
        %v3040 = vpop.xlane.xlu0 %3039
        %v3041 = vadd.f32 %v2590, %v2592
        %3042 = vadd.xlane.f32.xlu0 %v3041
        %v3043 = vpop.xlane.xlu0 %3042
        %v3044 = vadd.f32 %v2594, %v2596
        %3045 = vadd.xlane.f32.xlu0 %v3044
        %v3046 = vpop.xlane.xlu0 %3045
        %v3047 = vadd.f32 %v2598, %v2600
        %3048 = vadd.xlane.f32.xlu0 %v3047
        %v3049 = vpop.xlane.xlu0 %3048
        %v3050 = vadd.f32 %v2602, %v2604
        %3051 = vadd.xlane.f32.xlu0 %v3050
        %v3052 = vpop.xlane.xlu0 %3051
        %v3053 = vadd.f32 %v2606, %v2608
        %3054 = vadd.xlane.f32.xlu0 %v3053
        %v3055 = vpop.xlane.xlu0 %3054
        %v3056 = vadd.f32 %v2610, %v2612
        %3057 = vadd.xlane.f32.xlu0 %v3056
        %v3058 = vpop.xlane.xlu0 %3057
        %v3059 = vadd.f32 %v2614, %v2616
        %3060 = vadd.xlane.f32.xlu0 %v3059
        %v3061 = vpop.xlane.xlu0 %3060
        %v3062 = vadd.f32 %v2618, %v2620
        %3063 = vadd.xlane.f32.xlu0 %v3062
        %v3064 = vpop.xlane.xlu0 %3063
        %v3065 = vadd.f32 %v2622, %v2624
        %3066 = vadd.xlane.f32.xlu0 %v3065
        %v3067 = vpop.xlane.xlu0 %3066
        %v3068 = vadd.f32 %v2626, %v2628
        %3069 = vadd.xlane.f32.xlu0 %v3068
        %v3070 = vpop.xlane.xlu0 %3069
        %v3071 = vadd.f32 %v2630, %v2632
        %3072 = vadd.xlane.f32.xlu0 %v3071
        %v3073 = vpop.xlane.xlu0 %3072
        %v3074 = vadd.f32 %v2634, %v2636
        %3075 = vadd.xlane.f32.xlu0 %v3074
        %v3076 = vpop.xlane.xlu0 %3075
        %v3077 = vadd.f32 %v2638, %v2640
        %3078 = vadd.xlane.f32.xlu0 %v3077
        %v3079 = vpop.xlane.xlu0 %3078
        %v3080 = vadd.f32 %v2642, %v2644
        %3081 = vadd.xlane.f32.xlu0 %v3080
        %v3082 = vpop.xlane.xlu0 %3081
        %v3083 = vadd.f32 %v2646, %v2648
        %3084 = vadd.xlane.f32.xlu0 %v3083
        %v3085 = vpop.xlane.xlu0 %3084
        %v3086 = vadd.f32 %v2650, %v2652
        %3087 = vadd.xlane.f32.xlu0 %v3086
        %v3088 = vpop.xlane.xlu0 %3087
        %v3089 = vadd.f32 %v2654, %v2656
        %3090 = vadd.xlane.f32.xlu0 %v3089
        %v3091 = vpop.xlane.xlu0 %3090
        %v3092 = vadd.f32 %v2658, %v2660
        %3093 = vadd.xlane.f32.xlu0 %v3092
        %v3094 = vpop.xlane.xlu0 %3093
        %v3095 = vadd.f32 %v2662, %v2664
        %3096 = vadd.xlane.f32.xlu0 %v3095
        %v3097 = vpop.xlane.xlu0 %3096
        %v3098 = vadd.f32 %v2666, %v2668
        %3099 = vadd.xlane.f32.xlu0 %v3098
        %v3100 = vpop.xlane.xlu0 %3099
        %v3101 = vadd.f32 %v2670, %v2672
        %3102 = vadd.xlane.f32.xlu0 %v3101
        %v3103 = vpop.xlane.xlu0 %3102
        %v3104 = vadd.f32 %v2674, %v2676
        %3105 = vadd.xlane.f32.xlu0 %v3104
        %v3106 = vpop.xlane.xlu0 %3105
        %v3107 = vadd.f32 %v2678, %v2680
        %3108 = vadd.xlane.f32.xlu0 %v3107
        %v3109 = vpop.xlane.xlu0 %3108
        %v3110 = vadd.f32 %v2682, %v2684
        %3111 = vadd.xlane.f32.xlu0 %v3110
        %v3112 = vpop.xlane.xlu0 %3111
        %v3113 = vadd.f32 %v2686, %v2688
        %3114 = vadd.xlane.f32.xlu0 %v3113
        %v3115 = vpop.xlane.xlu0 %3114
        %v3116 = vadd.f32 %v2690, %v2692
        %3117 = vadd.xlane.f32.xlu0 %v3116
        %v3118 = vpop.xlane.xlu0 %3117
        %v3119 = vadd.f32 %v2694, %v2696
        %3120 = vadd.xlane.f32.xlu0 %v3119
        %v3121 = vpop.xlane.xlu0 %3120
        %v3122 = vadd.f32 %v2698, %v2700
        %3123 = vadd.xlane.f32.xlu0 %v3122
        %v3124 = vpop.xlane.xlu0 %3123
        %v3125 = vadd.f32 %v2702, %v2704
        %3126 = vadd.xlane.f32.xlu0 %v3125
        %v3127 = vpop.xlane.xlu0 %3126
        %v3128 = vadd.f32 %v2706, %v2708
        %3129 = vadd.xlane.f32.xlu0 %v3128
        %v3130 = vpop.xlane.xlu0 %3129
        %v3131 = vadd.f32 %v2710, %v2712
        %3132 = vadd.xlane.f32.xlu0 %v3131
        %v3133 = vpop.xlane.xlu0 %3132
        %v3134 = vadd.f32 %v2714, %v2716
        %3135 = vadd.xlane.f32.xlu0 %v3134
        %v3136 = vpop.xlane.xlu0 %3135
        %v3137 = vadd.f32 %v2718, %v2720
        %3138 = vadd.xlane.f32.xlu0 %v3137
        %v3139 = vpop.xlane.xlu0 %3138
        %v3140 = vadd.f32 %v2722, %v2724
        %3141 = vadd.xlane.f32.xlu0 %v3140
        %v3142 = vpop.xlane.xlu0 %3141
        %v3143 = vadd.f32 %v2726, %v2728
        %3144 = vadd.xlane.f32.xlu0 %v3143
        %v3145 = vpop.xlane.xlu0 %3144
        %v3146 = vadd.f32 %v2730, %v2732
        %3147 = vadd.xlane.f32.xlu0 %v3146
        %v3148 = vpop.xlane.xlu0 %3147
        %v3149 = vadd.f32 %v2734, %v2736
        %3150 = vadd.xlane.f32.xlu0 %v3149
        %v3151 = vpop.xlane.xlu0 %3150
        %v3152 = vadd.f32 %v2738, %v2740
        %3153 = vadd.xlane.f32.xlu0 %v3152
        %v3154 = vpop.xlane.xlu0 %3153
        %v3155 = vadd.f32 %v2742, %v2744
        %3156 = vadd.xlane.f32.xlu0 %v3155
        %v3157 = vpop.xlane.xlu0 %3156
        %v3158 = vadd.f32 %v2746, %v2748
        %3159 = vadd.xlane.f32.xlu0 %v3158
        %v3160 = vpop.xlane.xlu0 %3159
        %v3161 = vadd.f32 %v2750, %v2752
        %3162 = vadd.xlane.f32.xlu0 %v3161
        %v3163 = vpop.xlane.xlu0 %3162
        %v3164 = vadd.f32 %v2754, %v2756
        %3165 = vadd.xlane.f32.xlu0 %v3164
        %v3166 = vpop.xlane.xlu0 %3165
        %v3167 = vadd.f32 %v2758, %v2760
        %3168 = vadd.xlane.f32.xlu0 %v3167
        %v3169 = vpop.xlane.xlu0 %3168
        %v3170 = vadd.f32 %v2762, %v2764
        %3171 = vadd.xlane.f32.xlu0 %v3170
        %v3172 = vpop.xlane.xlu0 %3171
        %v3173 = vadd.f32 %v2766, %v2768
        %3174 = vadd.xlane.f32.xlu0 %v3173
        %v3175 = vpop.xlane.xlu0 %3174
        %v3176 = vadd.f32 %v2770, %v2772
        %3177 = vadd.xlane.f32.xlu0 %v3176
        %v3178 = vpop.xlane.xlu0 %3177
        %v3179 = vadd.f32 %v2774, %v2776
        %3180 = vadd.xlane.f32.xlu0 %v3179
        %v3181 = vpop.xlane.xlu0 %3180
        %v3182 = vadd.f32 %v2778, %v2780
        %3183 = vadd.xlane.f32.xlu0 %v3182
        %v3184 = vpop.xlane.xlu0 %3183
        %v3185 = vadd.f32 %v2782, %v2784
        %3186 = vadd.xlane.f32.xlu0 %v3185
        %v3187 = vpop.xlane.xlu0 %3186
        %v3188 = vadd.f32 %v2786, %v2788
        %3189 = vadd.xlane.f32.xlu0 %v3188
        %v3190 = vpop.xlane.xlu0 %3189
        %v3191 = vadd.f32 %v2790, %v2792
        %3192 = vadd.xlane.f32.xlu0 %v3191
        %v3193 = vpop.xlane.xlu0 %3192
        %v3194 = vadd.f32 %v2794, %v2796
        %3195 = vadd.xlane.f32.xlu0 %v3194
        %v3196 = vpop.xlane.xlu0 %3195
        %v3197 = vadd.f32 %v2798, %v2800
        %3198 = vadd.xlane.f32.xlu0 %v3197
        %v3199 = vpop.xlane.xlu0 %3198
        %v3200 = vadd.f32 %v2802, %v2804
        %3201 = vadd.xlane.f32.xlu0 %v3200
        %v3202 = vpop.xlane.xlu0 %3201
        %v3203 = vadd.f32 %v2806, %v2808
        %3204 = vadd.xlane.f32.xlu0 %v3203
        %v3205 = vpop.xlane.xlu0 %3204
        %v3206 = vadd.f32 %v2810, %v2812
        %3207 = vadd.xlane.f32.xlu0 %v3206
        %v3208 = vpop.xlane.xlu0 %3207
        %v3209 = vadd.f32 %v2814, %v2816
        %3210 = vadd.xlane.f32.xlu0 %v3209
        %v3211 = vpop.xlane.xlu0 %3210
        %v3212 = vadd.f32 %v2818, %v2820
        %3213 = vadd.xlane.f32.xlu0 %v3212
        %v3214 = vpop.xlane.xlu0 %3213
        %v3215 = vadd.f32 %v2822, %v2824
        %3216 = vadd.xlane.f32.xlu0 %v3215
        %v3217 = vpop.xlane.xlu0 %3216
        %v3218 = vadd.f32 %v2826, %v2828
        %3219 = vadd.xlane.f32.xlu0 %v3218
        %v3220 = vpop.xlane.xlu0 %3219
        %v3221 = vadd.f32 %v2830, %v2832
        %3222 = vadd.xlane.f32.xlu0 %v3221
        %v3223 = vpop.xlane.xlu0 %3222
        %v3224 = vadd.f32 %v2834, %v2836
        %3225 = vadd.xlane.f32.xlu0 %v3224
        %v3226 = vpop.xlane.xlu0 %3225
        %v3227 = vadd.f32 %v2838, %v2840
        %3228 = vadd.xlane.f32.xlu0 %v3227
        %v3229 = vpop.xlane.xlu0 %3228
        %v3230 = vadd.f32 %v2842, %v2844
        %3231 = vadd.xlane.f32.xlu0 %v3230
        %v3232 = vpop.xlane.xlu0 %3231
        %v3233 = vadd.f32 %v2846, %v2848
        %3234 = vadd.xlane.f32.xlu0 %v3233
        %v3235 = vpop.xlane.xlu0 %3234
        %v3236 = vadd.f32 %v2850, %v2852
        %3237 = vadd.xlane.f32.xlu0 %v3236
        %v3238 = vpop.xlane.xlu0 %3237
        %v3239 = vadd.f32 %v2854, %v2856
        %3240 = vadd.xlane.f32.xlu0 %v3239
        %v3241 = vpop.xlane.xlu0 %3240
        %v3242 = vadd.f32 %v2858, %v2860
        %3243 = vadd.xlane.f32.xlu0 %v3242
        %v3244 = vpop.xlane.xlu0 %3243
        %v3245 = vrcp.pop %v2863
        %v3246 = vrcp.pop %v2866
        %v3247 = vrcp.pop %v2869
        %v3248 = vrcp.pop %v2872
        %v3249 = vrcp.pop %v2875
        %v3250 = vrcp.pop %v2878
        %v3251 = vrcp.pop %v2881
        %v3252 = vrcp.pop %v2884
        %v3253 = vrcp.pop %v2887
        %v3254 = vrcp.pop %v2890
        %v3255 = vrcp.pop %v2893
        %v3256 = vrcp.pop %v2896
        %v3257 = vrcp.pop %v2899
        %v3258 = vrcp.pop %v2902
        %v3259 = vrcp.pop %v2905
        %v3260 = vrcp.pop %v2908
        %v3261 = vrcp.pop %v2911
        %v3262 = vrcp.pop %v2914
        %v3263 = vrcp.pop %v2917
        %v3264 = vrcp.pop %v2920
        %v3265 = vrcp.pop %v2923
        %v3266 = vrcp.pop %v2926
        %v3267 = vrcp.pop %v2929
        %v3268 = vrcp.pop %v2932
        %v3269 = vrcp.pop %v2935
        %v3270 = vrcp.pop %v2938
        %v3271 = vrcp.pop %v2941
        %v3272 = vrcp.pop %v2944
        %v3273 = vrcp.pop %v2947
        %v3274 = vrcp.pop %v2950
        %v3275 = vrcp.pop %v2953
        %v3276 = vrcp.pop %v2956
        %v3277 = vrcp.pop %v2959
        %v3278 = vrcp.pop %v2962
        %v3279 = vrcp.pop %v2965
        %v3280 = vrcp.pop %v2968
        %v3281 = vrcp.pop %v2971
        %v3282 = vrcp.pop %v2974
        %v3283 = vrcp.pop %v2977
        %v3284 = vrcp.pop %v2980
        %v3285 = vrcp.pop %v2983
        %v3286 = vrcp.pop %v2986
        %v3287 = vrcp.pop %v2989
        %v3288 = vrcp.pop %v2992
        %v3289 = vrcp.pop %v2995
        %v3290 = vrcp.pop %v2998
        %v3291 = vrcp.pop %v3001
        %v3292 = vrcp.pop %v3004
        %v3293 = vrcp.pop %v3007
        %v3294 = vrcp.pop %v3010
        %v3295 = vrcp.pop %v3013
        %v3296 = vrcp.pop %v3016
        %v3297 = vrcp.pop %v3019
        %v3298 = vrcp.pop %v3022
        %v3299 = vrcp.pop %v3025
        %v3300 = vrcp.pop %v3028
        %v3301 = vrcp.pop %v3031
        %v3302 = vrcp.pop %v3034
        %v3303 = vrcp.pop %v3037
        %v3304 = vrcp.pop %v3040
        %v3305 = vrcp.pop %v3043
        %v3306 = vrcp.pop %v3046
        %v3307 = vrcp.pop %v3049
        %v3308 = vrcp.pop %v3052
        %v3309 = vrcp.pop %v3055
        %v3310 = vrcp.pop %v3058
        %v3311 = vrcp.pop %v3061
        %v3312 = vrcp.pop %v3064
        %v3313 = vrcp.pop %v3067
        %v3314 = vrcp.pop %v3070
        %v3315 = vrcp.pop %v3073
        %v3316 = vrcp.pop %v3076
        %v3317 = vrcp.pop %v3079
        %v3318 = vrcp.pop %v3082
        %v3319 = vrcp.pop %v3085
        %v3320 = vrcp.pop %v3088
        %v3321 = vrcp.pop %v3091
        %v3322 = vrcp.pop %v3094
        %v3323 = vrcp.pop %v3097
        %v3324 = vrcp.pop %v3100
        %v3325 = vrcp.pop %v3103
        %v3326 = vrcp.pop %v3106
        %v3327 = vrcp.pop %v3109
        %v3328 = vrcp.pop %v3112
        %v3329 = vrcp.pop %v3115
        %v3330 = vrcp.pop %v3118
        %v3331 = vrcp.pop %v3121
        %v3332 = vrcp.pop %v3124
        %v3333 = vrcp.pop %v3127
        %v3334 = vrcp.pop %v3130
        %v3335 = vrcp.pop %v3133
        %v3336 = vrcp.pop %v3136
        %v3337 = vrcp.pop %v3139
        %v3338 = vrcp.pop %v3142
        %v3339 = vrcp.pop %v3145
        %v3340 = vrcp.pop %v3148
        %v3341 = vrcp.pop %v3151
        %v3342 = vrcp.pop %v3154
        %v3343 = vrcp.pop %v3157
        %v3344 = vrcp.pop %v3160
        %v3345 = vrcp.pop %v3163
        %v3346 = vrcp.pop %v3166
        %v3347 = vrcp.pop %v3169
        %v3348 = vrcp.pop %v3172
        %v3349 = vrcp.pop %v3175
        %v3350 = vrcp.pop %v3178
        %v3351 = vrcp.pop %v3181
        %v3352 = vrcp.pop %v3184
        %v3353 = vrcp.pop %v3187
        %v3354 = vrcp.pop %v3190
        %v3355 = vrcp.pop %v3193
        %v3356 = vrcp.pop %v3196
        %v3357 = vrcp.pop %v3199
        %v3358 = vrcp.pop %v3202
        %v3359 = vrcp.pop %v3205
        %v3360 = vrcp.pop %v3208
        %v3361 = vrcp.pop %v3211
        %v3362 = vrcp.pop %v3214
        %v3363 = vrcp.pop %v3217
        %v3364 = vrcp.pop %v3220
        %v3365 = vrcp.pop %v3223
        %v3366 = vrcp.pop %v3226
        %v3367 = vrcp.pop %v3229
        %v3368 = vrcp.pop %v3232
        %v3369 = vrcp.pop %v3235
        %v3370 = vrcp.pop %v3238
        %v3371 = vrcp.pop %v3241
        %v3372 = vrcp.pop %v3244
        %v3373 = vmul.f32 %v2350, %v3245
        %v3374 = vmul.f32 %v2352, %v3245
        %v3375 = vmul.f32 %v2354, %v3246
        %v3376 = vmul.f32 %v2356, %v3246
        %v3377 = vmul.f32 %v2358, %v3247
        %v3378 = vmul.f32 %v2360, %v3247
        %v3379 = vmul.f32 %v2362, %v3248
        %v3380 = vmul.f32 %v2364, %v3248
        %v3381 = vmul.f32 %v2366, %v3249
        %v3382 = vmul.f32 %v2368, %v3249
        %v3383 = vmul.f32 %v2370, %v3250
        %v3384 = vmul.f32 %v2372, %v3250
        %v3385 = vmul.f32 %v2374, %v3251
        %v3386 = vmul.f32 %v2376, %v3251
        %v3387 = vmul.f32 %v2378, %v3252
        %v3388 = vmul.f32 %v2380, %v3252
        %v3389 = vmul.f32 %v2382, %v3253
        %v3390 = vmul.f32 %v2384, %v3253
        %v3391 = vmul.f32 %v2386, %v3254
        %v3392 = vmul.f32 %v2388, %v3254
        %v3393 = vmul.f32 %v2390, %v3255
        %v3394 = vmul.f32 %v2392, %v3255
        %v3395 = vmul.f32 %v2394, %v3256
        %v3396 = vmul.f32 %v2396, %v3256
        %v3397 = vmul.f32 %v2398, %v3257
        %v3398 = vmul.f32 %v2400, %v3257
        %v3399 = vmul.f32 %v2402, %v3258
        %v3400 = vmul.f32 %v2404, %v3258
        %v3401 = vmul.f32 %v2406, %v3259
        %v3402 = vmul.f32 %v2408, %v3259
        %v3403 = vmul.f32 %v2410, %v3260
        %v3404 = vmul.f32 %v2412, %v3260
        %v3405 = vmul.f32 %v2414, %v3261
        %v3406 = vmul.f32 %v2416, %v3261
        %v3407 = vmul.f32 %v2418, %v3262
        %v3408 = vmul.f32 %v2420, %v3262
        %v3409 = vmul.f32 %v2422, %v3263
        %v3410 = vmul.f32 %v2424, %v3263
        %v3411 = vmul.f32 %v2426, %v3264
        %v3412 = vmul.f32 %v2428, %v3264
        %v3413 = vmul.f32 %v2430, %v3265
        %v3414 = vmul.f32 %v2432, %v3265
        %v3415 = vmul.f32 %v2434, %v3266
        %v3416 = vmul.f32 %v2436, %v3266
        %v3417 = vmul.f32 %v2438, %v3267
        %v3418 = vmul.f32 %v2440, %v3267
        %v3419 = vmul.f32 %v2442, %v3268
        %v3420 = vmul.f32 %v2444, %v3268
        %v3421 = vmul.f32 %v2446, %v3269
        %v3422 = vmul.f32 %v2448, %v3269
        %v3423 = vmul.f32 %v2450, %v3270
        %v3424 = vmul.f32 %v2452, %v3270
        %v3425 = vmul.f32 %v2454, %v3271
        %v3426 = vmul.f32 %v2456, %v3271
        %v3427 = vmul.f32 %v2458, %v3272
        %v3428 = vmul.f32 %v2460, %v3272
        %v3429 = vmul.f32 %v2462, %v3273
        %v3430 = vmul.f32 %v2464, %v3273
        %v3431 = vmul.f32 %v2466, %v3274
        %v3432 = vmul.f32 %v2468, %v3274
        %v3433 = vmul.f32 %v2470, %v3275
        %v3434 = vmul.f32 %v2472, %v3275
        %v3435 = vmul.f32 %v2474, %v3276
        %v3436 = vmul.f32 %v2476, %v3276
        %v3437 = vmul.f32 %v2478, %v3277
        %v3438 = vmul.f32 %v2480, %v3277
        %v3439 = vmul.f32 %v2482, %v3278
        %v3440 = vmul.f32 %v2484, %v3278
        %v3441 = vmul.f32 %v2486, %v3279
        %v3442 = vmul.f32 %v2488, %v3279
        %v3443 = vmul.f32 %v2490, %v3280
        %v3444 = vmul.f32 %v2492, %v3280
        %v3445 = vmul.f32 %v2494, %v3281
        %v3446 = vmul.f32 %v2496, %v3281
        %v3447 = vmul.f32 %v2498, %v3282
        %v3448 = vmul.f32 %v2500, %v3282
        %v3449 = vmul.f32 %v2502, %v3283
        %v3450 = vmul.f32 %v2504, %v3283
        %v3451 = vmul.f32 %v2506, %v3284
        %v3452 = vmul.f32 %v2508, %v3284
        %v3453 = vmul.f32 %v2510, %v3285
        %v3454 = vmul.f32 %v2512, %v3285
        %v3455 = vmul.f32 %v2514, %v3286
        %v3456 = vmul.f32 %v2516, %v3286
        %v3457 = vmul.f32 %v2518, %v3287
        %v3458 = vmul.f32 %v2520, %v3287
        %v3459 = vmul.f32 %v2522, %v3288
        %v3460 = vmul.f32 %v2524, %v3288
        %v3461 = vmul.f32 %v2526, %v3289
        %v3462 = vmul.f32 %v2528, %v3289
        %v3463 = vmul.f32 %v2530, %v3290
        %v3464 = vmul.f32 %v2532, %v3290
        %v3465 = vmul.f32 %v2534, %v3291
        %v3466 = vmul.f32 %v2536, %v3291
        %v3467 = vmul.f32 %v2538, %v3292
        %v3468 = vmul.f32 %v2540, %v3292
        %v3469 = vmul.f32 %v2542, %v3293
        %v3470 = vmul.f32 %v2544, %v3293
        %v3471 = vmul.f32 %v2546, %v3294
        %v3472 = vmul.f32 %v2548, %v3294
        %v3473 = vmul.f32 %v2550, %v3295
        %v3474 = vmul.f32 %v2552, %v3295
        %v3475 = vmul.f32 %v2554, %v3296
        %v3476 = vmul.f32 %v2556, %v3296
        %v3477 = vmul.f32 %v2558, %v3297
        %v3478 = vmul.f32 %v2560, %v3297
        %v3479 = vmul.f32 %v2562, %v3298
        %v3480 = vmul.f32 %v2564, %v3298
        %v3481 = vmul.f32 %v2566, %v3299
        %v3482 = vmul.f32 %v2568, %v3299
        %v3483 = vmul.f32 %v2570, %v3300
        %v3484 = vmul.f32 %v2572, %v3300
        %v3485 = vmul.f32 %v2574, %v3301
        %v3486 = vmul.f32 %v2576, %v3301
        %v3487 = vmul.f32 %v2578, %v3302
        %v3488 = vmul.f32 %v2580, %v3302
        %v3489 = vmul.f32 %v2582, %v3303
        %v3490 = vmul.f32 %v2584, %v3303
        %v3491 = vmul.f32 %v2586, %v3304
        %v3492 = vmul.f32 %v2588, %v3304
        %v3493 = vmul.f32 %v2590, %v3305
        %v3494 = vmul.f32 %v2592, %v3305
        %v3495 = vmul.f32 %v2594, %v3306
        %v3496 = vmul.f32 %v2596, %v3306
        %v3497 = vmul.f32 %v2598, %v3307
        %v3498 = vmul.f32 %v2600, %v3307
        %v3499 = vmul.f32 %v2602, %v3308
        %v3500 = vmul.f32 %v2604, %v3308
        %v3501 = vmul.f32 %v2606, %v3309
        %v3502 = vmul.f32 %v2608, %v3309
        %v3503 = vmul.f32 %v2610, %v3310
        %v3504 = vmul.f32 %v2612, %v3310
        %v3505 = vmul.f32 %v2614, %v3311
        %v3506 = vmul.f32 %v2616, %v3311
        %v3507 = vmul.f32 %v2618, %v3312
        %v3508 = vmul.f32 %v2620, %v3312
        %v3509 = vmul.f32 %v2622, %v3313
        %v3510 = vmul.f32 %v2624, %v3313
        %v3511 = vmul.f32 %v2626, %v3314
        %v3512 = vmul.f32 %v2628, %v3314
        %v3513 = vmul.f32 %v2630, %v3315
        %v3514 = vmul.f32 %v2632, %v3315
        %v3515 = vmul.f32 %v2634, %v3316
        %v3516 = vmul.f32 %v2636, %v3316
        %v3517 = vmul.f32 %v2638, %v3317
        %v3518 = vmul.f32 %v2640, %v3317
        %v3519 = vmul.f32 %v2642, %v3318
        %v3520 = vmul.f32 %v2644, %v3318
        %v3521 = vmul.f32 %v2646, %v3319
        %v3522 = vmul.f32 %v2648, %v3319
        %v3523 = vmul.f32 %v2650, %v3320
        %v3524 = vmul.f32 %v2652, %v3320
        %v3525 = vmul.f32 %v2654, %v3321
        %v3526 = vmul.f32 %v2656, %v3321
        %v3527 = vmul.f32 %v2658, %v3322
        %v3528 = vmul.f32 %v2660, %v3322
        %v3529 = vmul.f32 %v2662, %v3323
        %v3530 = vmul.f32 %v2664, %v3323
        %v3531 = vmul.f32 %v2666, %v3324
        %v3532 = vmul.f32 %v2668, %v3324
        %v3533 = vmul.f32 %v2670, %v3325
        %v3534 = vmul.f32 %v2672, %v3325
        %v3535 = vmul.f32 %v2674, %v3326
        %v3536 = vmul.f32 %v2676, %v3326
        %v3537 = vmul.f32 %v2678, %v3327
        %v3538 = vmul.f32 %v2680, %v3327
        %v3539 = vmul.f32 %v2682, %v3328
        %v3540 = vmul.f32 %v2684, %v3328
        %v3541 = vmul.f32 %v2686, %v3329
        %v3542 = vmul.f32 %v2688, %v3329
        %v3543 = vmul.f32 %v2690, %v3330
        %v3544 = vmul.f32 %v2692, %v3330
        %v3545 = vmul.f32 %v2694, %v3331
        %v3546 = vmul.f32 %v2696, %v3331
        %v3547 = vmul.f32 %v2698, %v3332
        %v3548 = vmul.f32 %v2700, %v3332
        %v3549 = vmul.f32 %v2702, %v3333
        %v3550 = vmul.f32 %v2704, %v3333
        %v3551 = vmul.f32 %v2706, %v3334
        %v3552 = vmul.f32 %v2708, %v3334
        %v3553 = vmul.f32 %v2710, %v3335
        %v3554 = vmul.f32 %v2712, %v3335
        %v3555 = vmul.f32 %v2714, %v3336
        %v3556 = vmul.f32 %v2716, %v3336
        %v3557 = vmul.f32 %v2718, %v3337
        %v3558 = vmul.f32 %v2720, %v3337
        %v3559 = vmul.f32 %v2722, %v3338
        %v3560 = vmul.f32 %v2724, %v3338
        %v3561 = vmul.f32 %v2726, %v3339
        %v3562 = vmul.f32 %v2728, %v3339
        %v3563 = vmul.f32 %v2730, %v3340
        %v3564 = vmul.f32 %v2732, %v3340
        %v3565 = vmul.f32 %v2734, %v3341
        %v3566 = vmul.f32 %v2736, %v3341
        %v3567 = vmul.f32 %v2738, %v3342
        %v3568 = vmul.f32 %v2740, %v3342
        %v3569 = vmul.f32 %v2742, %v3343
        %v3570 = vmul.f32 %v2744, %v3343
        %v3571 = vmul.f32 %v2746, %v3344
        %v3572 = vmul.f32 %v2748, %v3344
        %v3573 = vmul.f32 %v2750, %v3345
        %v3574 = vmul.f32 %v2752, %v3345
        %v3575 = vmul.f32 %v2754, %v3346
        %v3576 = vmul.f32 %v2756, %v3346
        %v3577 = vmul.f32 %v2758, %v3347
        %v3578 = vmul.f32 %v2760, %v3347
        %v3579 = vmul.f32 %v2762, %v3348
        %v3580 = vmul.f32 %v2764, %v3348
        %v3581 = vmul.f32 %v2766, %v3349
        %v3582 = vmul.f32 %v2768, %v3349
        %v3583 = vmul.f32 %v2770, %v3350
        %v3584 = vmul.f32 %v2772, %v3350
        %v3585 = vmul.f32 %v2774, %v3351
        %v3586 = vmul.f32 %v2776, %v3351
        %v3587 = vmul.f32 %v2778, %v3352
        %v3588 = vmul.f32 %v2780, %v3352
        %v3589 = vmul.f32 %v2782, %v3353
        %v3590 = vmul.f32 %v2784, %v3353
        %v3591 = vmul.f32 %v2786, %v3354
        %v3592 = vmul.f32 %v2788, %v3354
        %v3593 = vmul.f32 %v2790, %v3355
        %v3594 = vmul.f32 %v2792, %v3355
        %v3595 = vmul.f32 %v2794, %v3356
        %v3596 = vmul.f32 %v2796, %v3356
        %v3597 = vmul.f32 %v2798, %v3357
        %v3598 = vmul.f32 %v2800, %v3357
        %v3599 = vmul.f32 %v2802, %v3358
        %v3600 = vmul.f32 %v2804, %v3358
        %v3601 = vmul.f32 %v2806, %v3359
        %v3602 = vmul.f32 %v2808, %v3359
        %v3603 = vmul.f32 %v2810, %v3360
        %v3604 = vmul.f32 %v2812, %v3360
        %v3605 = vmul.f32 %v2814, %v3361
        %v3606 = vmul.f32 %v2816, %v3361
        %v3607 = vmul.f32 %v2818, %v3362
        %v3608 = vmul.f32 %v2820, %v3362
        %v3609 = vmul.f32 %v2822, %v3363
        %v3610 = vmul.f32 %v2824, %v3363
        %v3611 = vmul.f32 %v2826, %v3364
        %v3612 = vmul.f32 %v2828, %v3364
        %v3613 = vmul.f32 %v2830, %v3365
        %v3614 = vmul.f32 %v2832, %v3365
        %v3615 = vmul.f32 %v2834, %v3366
        %v3616 = vmul.f32 %v2836, %v3366
        %v3617 = vmul.f32 %v2838, %v3367
        %v3618 = vmul.f32 %v2840, %v3367
        %v3619 = vmul.f32 %v2842, %v3368
        %v3620 = vmul.f32 %v2844, %v3368
        %v3621 = vmul.f32 %v2846, %v3369
        %v3622 = vmul.f32 %v2848, %v3369
        %v3623 = vmul.f32 %v2850, %v3370
        %v3624 = vmul.f32 %v2852, %v3370
        %v3625 = vmul.f32 %v2854, %v3371
        %v3626 = vmul.f32 %v2856, %v3371
        %v3627 = vmul.f32 %v2858, %v3372
        %v3628 = vmul.f32 %v2860, %v3372
        %v3629 = vpack.c.bf16 %v3375, %v3373
        %v3630 = vpack.c.bf16 %v3376, %v3374
        %v3631 = vpack.c.bf16 %v3379, %v3377
        %v3632 = vpack.c.bf16 %v3380, %v3378
        %v3633 = vpack.c.bf16 %v3383, %v3381
        %v3634 = vpack.c.bf16 %v3384, %v3382
        %v3635 = vpack.c.bf16 %v3387, %v3385
        %v3636 = vpack.c.bf16 %v3388, %v3386
        %v3637 = vpack.c.bf16 %v3391, %v3389
        %v3638 = vpack.c.bf16 %v3392, %v3390
        %v3639 = vpack.c.bf16 %v3395, %v3393
        %v3640 = vpack.c.bf16 %v3396, %v3394
        %v3641 = vpack.c.bf16 %v3399, %v3397
        %v3642 = vpack.c.bf16 %v3400, %v3398
        %v3643 = vpack.c.bf16 %v3403, %v3401
        %v3644 = vpack.c.bf16 %v3404, %v3402
        %v3645 = vpack.c.bf16 %v3407, %v3405
        %v3646 = vpack.c.bf16 %v3408, %v3406
        %v3647 = vpack.c.bf16 %v3411, %v3409
        %v3648 = vpack.c.bf16 %v3412, %v3410
        %v3649 = vpack.c.bf16 %v3415, %v3413
        %v3650 = vpack.c.bf16 %v3416, %v3414
        %v3651 = vpack.c.bf16 %v3419, %v3417
        %v3652 = vpack.c.bf16 %v3420, %v3418
        %v3653 = vpack.c.bf16 %v3423, %v3421
        %v3654 = vpack.c.bf16 %v3424, %v3422
        %v3655 = vpack.c.bf16 %v3427, %v3425
        %v3656 = vpack.c.bf16 %v3428, %v3426
        %v3657 = vpack.c.bf16 %v3431, %v3429
        %v3658 = vpack.c.bf16 %v3432, %v3430
        %v3659 = vpack.c.bf16 %v3435, %v3433
        %v3660 = vpack.c.bf16 %v3436, %v3434
        %v3661 = vpack.c.bf16 %v3439, %v3437
        %v3662 = vpack.c.bf16 %v3440, %v3438
        %v3663 = vpack.c.bf16 %v3443, %v3441
        %v3664 = vpack.c.bf16 %v3444, %v3442
        %v3665 = vpack.c.bf16 %v3447, %v3445
        %v3666 = vpack.c.bf16 %v3448, %v3446
        %v3667 = vpack.c.bf16 %v3451, %v3449
        %v3668 = vpack.c.bf16 %v3452, %v3450
        %v3669 = vpack.c.bf16 %v3455, %v3453
        %v3670 = vpack.c.bf16 %v3456, %v3454
        %v3671 = vpack.c.bf16 %v3459, %v3457
        %v3672 = vpack.c.bf16 %v3460, %v3458
        %v3673 = vpack.c.bf16 %v3463, %v3461
        %v3674 = vpack.c.bf16 %v3464, %v3462
        %v3675 = vpack.c.bf16 %v3467, %v3465
        %v3676 = vpack.c.bf16 %v3468, %v3466
        %v3677 = vpack.c.bf16 %v3471, %v3469
        %v3678 = vpack.c.bf16 %v3472, %v3470
        %v3679 = vpack.c.bf16 %v3475, %v3473
        %v3680 = vpack.c.bf16 %v3476, %v3474
        %v3681 = vpack.c.bf16 %v3479, %v3477
        %v3682 = vpack.c.bf16 %v3480, %v3478
        %v3683 = vpack.c.bf16 %v3483, %v3481
        %v3684 = vpack.c.bf16 %v3484, %v3482
        %v3685 = vpack.c.bf16 %v3487, %v3485
        %v3686 = vpack.c.bf16 %v3488, %v3486
        %v3687 = vpack.c.bf16 %v3491, %v3489
        %v3688 = vpack.c.bf16 %v3492, %v3490
        %v3689 = vpack.c.bf16 %v3495, %v3493
        %v3690 = vpack.c.bf16 %v3496, %v3494
        %v3691 = vpack.c.bf16 %v3499, %v3497
        %v3692 = vpack.c.bf16 %v3500, %v3498
        %v3693 = vpack.c.bf16 %v3503, %v3501
        %v3694 = vpack.c.bf16 %v3504, %v3502
        %v3695 = vpack.c.bf16 %v3507, %v3505
        %v3696 = vpack.c.bf16 %v3508, %v3506
        %v3697 = vpack.c.bf16 %v3511, %v3509
        %v3698 = vpack.c.bf16 %v3512, %v3510
        %v3699 = vpack.c.bf16 %v3515, %v3513
        %v3700 = vpack.c.bf16 %v3516, %v3514
        %v3701 = vpack.c.bf16 %v3519, %v3517
        %v3702 = vpack.c.bf16 %v3520, %v3518
        %v3703 = vpack.c.bf16 %v3523, %v3521
        %v3704 = vpack.c.bf16 %v3524, %v3522
        %v3705 = vpack.c.bf16 %v3527, %v3525
        %v3706 = vpack.c.bf16 %v3528, %v3526
        %v3707 = vpack.c.bf16 %v3531, %v3529
        %v3708 = vpack.c.bf16 %v3532, %v3530
        %v3709 = vpack.c.bf16 %v3535, %v3533
        %v3710 = vpack.c.bf16 %v3536, %v3534
        %v3711 = vpack.c.bf16 %v3539, %v3537
        %v3712 = vpack.c.bf16 %v3540, %v3538
        %v3713 = vpack.c.bf16 %v3543, %v3541
        %v3714 = vpack.c.bf16 %v3544, %v3542
        %v3715 = vpack.c.bf16 %v3547, %v3545
        %v3716 = vpack.c.bf16 %v3548, %v3546
        %v3717 = vpack.c.bf16 %v3551, %v3549
        %v3718 = vpack.c.bf16 %v3552, %v3550
        %v3719 = vpack.c.bf16 %v3555, %v3553
        %v3720 = vpack.c.bf16 %v3556, %v3554
        %v3721 = vpack.c.bf16 %v3559, %v3557
        %v3722 = vpack.c.bf16 %v3560, %v3558
        %v3723 = vpack.c.bf16 %v3563, %v3561
        %v3724 = vpack.c.bf16 %v3564, %v3562
        %v3725 = vpack.c.bf16 %v3567, %v3565
        %v3726 = vpack.c.bf16 %v3568, %v3566
        %v3727 = vpack.c.bf16 %v3571, %v3569
        %v3728 = vpack.c.bf16 %v3572, %v3570
        %v3729 = vpack.c.bf16 %v3575, %v3573
        %v3730 = vpack.c.bf16 %v3576, %v3574
        %v3731 = vpack.c.bf16 %v3579, %v3577
        %v3732 = vpack.c.bf16 %v3580, %v3578
        %v3733 = vpack.c.bf16 %v3583, %v3581
        %v3734 = vpack.c.bf16 %v3584, %v3582
        %v3735 = vpack.c.bf16 %v3587, %v3585
        %v3736 = vpack.c.bf16 %v3588, %v3586
        %v3737 = vpack.c.bf16 %v3591, %v3589
        %v3738 = vpack.c.bf16 %v3592, %v3590
        %v3739 = vpack.c.bf16 %v3595, %v3593
        %v3740 = vpack.c.bf16 %v3596, %v3594
        %v3741 = vpack.c.bf16 %v3599, %v3597
        %v3742 = vpack.c.bf16 %v3600, %v3598
        %v3743 = vpack.c.bf16 %v3603, %v3601
        %v3744 = vpack.c.bf16 %v3604, %v3602
        %v3745 = vpack.c.bf16 %v3607, %v3605
        %v3746 = vpack.c.bf16 %v3608, %v3606
        %v3747 = vpack.c.bf16 %v3611, %v3609
        %v3748 = vpack.c.bf16 %v3612, %v3610
        %v3749 = vpack.c.bf16 %v3615, %v3613
        %v3750 = vpack.c.bf16 %v3616, %v3614
        %v3751 = vpack.c.bf16 %v3619, %v3617
        %v3752 = vpack.c.bf16 %v3620, %v3618
        %v3753 = vpack.c.bf16 %v3623, %v3621
        %v3754 = vpack.c.bf16 %v3624, %v3622
        %v3755 = vpack.c.bf16 %v3627, %v3625
        %v3756 = vpack.c.bf16 %v3628, %v3626
        %3757 = vmatprep.subr.bf16.mxu0 %v3644
        %3758 = vmatpush1.bf16.xpose.msra.mxu0 %v3643
        %3759 = vmatprep.subr.bf16.mxu0 %v3642
        %3760 = vmatpush1.bf16.xpose.msra.mxu0 %v3641
        %3761 = vmatprep.subr.bf16.mxu0 %v3640
        %3762 = vmatpush1.bf16.xpose.msra.mxu0 %v3639
        %3763 = vmatprep.subr.bf16.mxu0 %v3638
        %3764 = vmatpush1.bf16.xpose.msra.mxu0 %v3637
        %3765 = vmatprep.subr.bf16.mxu0 %v3636
        %3766 = vmatpush1.bf16.xpose.msra.mxu0 %v3635
        %3767 = vmatprep.subr.bf16.mxu0 %v3634
        %3768 = vmatpush1.bf16.xpose.msra.mxu0 %v3633
        %3769 = vmatprep.subr.bf16.mxu0 %v3632
        %3770 = vmatpush1.bf16.xpose.msra.mxu0 %v3631
        %3771 = vmatprep.subr.bf16.mxu0 %v3630
        %3772 = vmatpush1.bf16.xpose.msra.mxu0 %v3629
        %3773 = vmatprep.subr.bf16.mxu0 %v3660
        %3774 = vmatpush2.bf16.xpose.msra.mxu0 %v3659
        %3775 = vmatprep.subr.bf16.mxu0 %v3658
        %3776 = vmatpush2.bf16.xpose.msra.mxu0 %v3657
        %3777 = vmatprep.subr.bf16.mxu0 %v3656
        %3778 = vmatpush2.bf16.xpose.msra.mxu0 %v3655
        %3779 = vmatprep.subr.bf16.mxu0 %v3654
        %3780 = vmatpush2.bf16.xpose.msra.mxu0 %v3653
        %3781 = vmatprep.subr.bf16.mxu0 %v3652
        %3782 = vmatpush2.bf16.xpose.msra.mxu0 %v3651
        %3783 = vmatprep.subr.bf16.mxu0 %v3650
        %3784 = vmatpush2.bf16.xpose.msra.mxu0 %v3649
        %3785 = vmatprep.subr.bf16.mxu0 %v3648
        %3786 = vmatpush2.bf16.xpose.msra.mxu0 %v3647
        %3787 = vmatprep.subr.bf16.mxu0 %v3646
        %3788 = vmatpush2.bf16.xpose.msra.mxu0 %v3645
        %3789 = vmatprep.mubr.bf16.mxu0 %v392
        %3790 = vmatmul.mubr.bf16.gmra.mxu0 %v391
        %v3791 = vpop.f32.mrf.mxu0
        %v3792 = vadd.f32 0.0, %v3791
        %v3793 = vpop.f32.mrf.mxu0
        %v3794 = vadd.f32 0.0, %v3793
        %v3795 = vpop.f32.mrf.mxu0
        %v3796 = vpop.f32.mrf.mxu0
        %3797 = vdwg.mxu0
        %3798 = vmatprep.subr.bf16.mxu0 %v3676
        %3799 = vmatpush1.bf16.xpose.msra.mxu0 %v3675
        %3800 = vmatprep.subr.bf16.mxu0 %v3674
        %3801 = vmatpush1.bf16.xpose.msra.mxu0 %v3673
        %3802 = vmatprep.subr.bf16.mxu0 %v3672
        %3803 = vmatpush1.bf16.xpose.msra.mxu0 %v3671
        %3804 = vmatprep.subr.bf16.mxu0 %v3670
        %3805 = vmatpush1.bf16.xpose.msra.mxu0 %v3669
        %3806 = vmatprep.subr.bf16.mxu0 %v3668
        %3807 = vmatpush1.bf16.xpose.msra.mxu0 %v3667
        %3808 = vmatprep.subr.bf16.mxu0 %v3666
        %3809 = vmatpush1.bf16.xpose.msra.mxu0 %v3665
        %3810 = vmatprep.subr.bf16.mxu0 %v3664
        %3811 = vmatpush1.bf16.xpose.msra.mxu0 %v3663
        %3812 = vmatprep.subr.bf16.mxu0 %v3662
        %3813 = vmatpush1.bf16.xpose.msra.mxu0 %v3661
        %3814 = vmatprep.subr.bf16.mxu0 %v3692
        %3815 = vmatpush2.bf16.xpose.msra.mxu0 %v3691
        %3816 = vmatprep.subr.bf16.mxu0 %v3690
        %3817 = vmatpush2.bf16.xpose.msra.mxu0 %v3689
        %3818 = vmatprep.subr.bf16.mxu0 %v3688
        %3819 = vmatpush2.bf16.xpose.msra.mxu0 %v3687
        %3820 = vmatprep.subr.bf16.mxu0 %v3686
        %3821 = vmatpush2.bf16.xpose.msra.mxu0 %v3685
        %3822 = vmatprep.subr.bf16.mxu0 %v3684
        %3823 = vmatpush2.bf16.xpose.msra.mxu0 %v3683
        %3824 = vmatprep.subr.bf16.mxu0 %v3682
        %3825 = vmatpush2.bf16.xpose.msra.mxu0 %v3681
        %3826 = vmatprep.subr.bf16.mxu0 %v3680
        %3827 = vmatpush2.bf16.xpose.msra.mxu0 %v3679
        %3828 = vmatprep.subr.bf16.mxu0 %v3678
        %3829 = vmatpush2.bf16.xpose.msra.mxu0 %v3677
        %3830 = vmatprep.mubr.bf16.mxu0 %v394
        %3831 = vmatmul.mubr.bf16.gmra.mxu0 %v393
        %v3832 = vpop.f32.mrf.mxu0
        %v3833 = vadd.f32 0.0, %v3832
        %v3834 = vpop.f32.mrf.mxu0
        %v3835 = vadd.f32 0.0, %v3834
        %v3836 = vpop.f32.mrf.mxu0
        %v3837 = vpop.f32.mrf.mxu0
        %3838 = vdwg.mxu0
        %3839 = vmatprep.subr.bf16.mxu0 %v3708
        %3840 = vmatpush1.bf16.xpose.msra.mxu0 %v3707
        %3841 = vmatprep.subr.bf16.mxu0 %v3706
        %3842 = vmatpush1.bf16.xpose.msra.mxu0 %v3705
        %3843 = vmatprep.subr.bf16.mxu0 %v3704
        %3844 = vmatpush1.bf16.xpose.msra.mxu0 %v3703
        %3845 = vmatprep.subr.bf16.mxu0 %v3702
        %3846 = vmatpush1.bf16.xpose.msra.mxu0 %v3701
        %3847 = vmatprep.subr.bf16.mxu0 %v3700
        %3848 = vmatpush1.bf16.xpose.msra.mxu0 %v3699
        %3849 = vmatprep.subr.bf16.mxu0 %v3698
        %3850 = vmatpush1.bf16.xpose.msra.mxu0 %v3697
        %3851 = vmatprep.subr.bf16.mxu0 %v3696
        %3852 = vmatpush1.bf16.xpose.msra.mxu0 %v3695
        %3853 = vmatprep.subr.bf16.mxu0 %v3694
        %3854 = vmatpush1.bf16.xpose.msra.mxu0 %v3693
        %3855 = vmatprep.subr.bf16.mxu0 %v3724
        %3856 = vmatpush2.bf16.xpose.msra.mxu0 %v3723
        %3857 = vmatprep.subr.bf16.mxu0 %v3722
        %3858 = vmatpush2.bf16.xpose.msra.mxu0 %v3721
        %3859 = vmatprep.subr.bf16.mxu0 %v3720
        %3860 = vmatpush2.bf16.xpose.msra.mxu0 %v3719
        %3861 = vmatprep.subr.bf16.mxu0 %v3718
        %3862 = vmatpush2.bf16.xpose.msra.mxu0 %v3717
        %3863 = vmatprep.subr.bf16.mxu0 %v3716
        %3864 = vmatpush2.bf16.xpose.msra.mxu0 %v3715
        %3865 = vmatprep.subr.bf16.mxu0 %v3714
        %3866 = vmatpush2.bf16.xpose.msra.mxu0 %v3713
        %3867 = vmatprep.subr.bf16.mxu0 %v3712
        %3868 = vmatpush2.bf16.xpose.msra.mxu0 %v3711
        %3869 = vmatprep.subr.bf16.mxu0 %v3710
        %3870 = vmatpush2.bf16.xpose.msra.mxu0 %v3709
        %3871 = vmatprep.mubr.bf16.mxu0 %v396
        %3872 = vmatmul.mubr.bf16.gmra.mxu0 %v395
        %v3873 = vpop.f32.mrf.mxu0
        %v3874 = vadd.f32 0.0, %v3873
        %v3875 = vpop.f32.mrf.mxu0
        %v3876 = vadd.f32 0.0, %v3875
        %v3877 = vpop.f32.mrf.mxu0
        %v3878 = vpop.f32.mrf.mxu0
        %3879 = vdwg.mxu0
        %3880 = vmatprep.subr.bf16.mxu0 %v3740
        %3881 = vmatpush1.bf16.xpose.msra.mxu0 %v3739
        %3882 = vmatprep.subr.bf16.mxu0 %v3738
        %3883 = vmatpush1.bf16.xpose.msra.mxu0 %v3737
        %3884 = vmatprep.subr.bf16.mxu0 %v3736
        %3885 = vmatpush1.bf16.xpose.msra.mxu0 %v3735
        %3886 = vmatprep.subr.bf16.mxu0 %v3734
        %3887 = vmatpush1.bf16.xpose.msra.mxu0 %v3733
        %3888 = vmatprep.subr.bf16.mxu0 %v3732
        %3889 = vmatpush1.bf16.xpose.msra.mxu0 %v3731
        %3890 = vmatprep.subr.bf16.mxu0 %v3730
        %3891 = vmatpush1.bf16.xpose.msra.mxu0 %v3729
        %3892 = vmatprep.subr.bf16.mxu0 %v3728
        %3893 = vmatpush1.bf16.xpose.msra.mxu0 %v3727
        %3894 = vmatprep.subr.bf16.mxu0 %v3726
        %3895 = vmatpush1.bf16.xpose.msra.mxu0 %v3725
        %3896 = vmatprep.subr.bf16.mxu0 %v3756
        %3897 = vmatpush2.bf16.xpose.msra.mxu0 %v3755
        %3898 = vmatprep.subr.bf16.mxu0 %v3754
        %3899 = vmatpush2.bf16.xpose.msra.mxu0 %v3753
        %3900 = vmatprep.subr.bf16.mxu0 %v3752
        %3901 = vmatpush2.bf16.xpose.msra.mxu0 %v3751
        %3902 = vmatprep.subr.bf16.mxu0 %v3750
        %3903 = vmatpush2.bf16.xpose.msra.mxu0 %v3749
        %3904 = vmatprep.subr.bf16.mxu0 %v3748
        %3905 = vmatpush2.bf16.xpose.msra.mxu0 %v3747
        %3906 = vmatprep.subr.bf16.mxu0 %v3746
        %3907 = vmatpush2.bf16.xpose.msra.mxu0 %v3745
        %3908 = vmatprep.subr.bf16.mxu0 %v3744
        %3909 = vmatpush2.bf16.xpose.msra.mxu0 %v3743
        %3910 = vmatprep.subr.bf16.mxu0 %v3742
        %3911 = vmatpush2.bf16.xpose.msra.mxu0 %v3741
        %3912 = vmatprep.mubr.bf16.mxu0 %v398
        %3913 = vmatmul.mubr.bf16.gmra.mxu0 %v397
        %v3914 = vpop.f32.mrf.mxu0
        %v3915 = vadd.f32 0.0, %v3914
        %v3916 = vpop.f32.mrf.mxu0
        %v3917 = vadd.f32 0.0, %v3916
        %v3918 = vpop.f32.mrf.mxu0
        %v3919 = vpop.f32.mrf.mxu0
        %3920 = vdwg.mxu0
        %v3921 = vpack.c.bf16 %v3833, %v3792
        %v3922 = vpack.c.bf16 %v3835, %v3794
        %v3923 = vpack.c.bf16 %v3915, %v3874
        %v3924 = vpack.c.bf16 %v3917, %v3876
        %v3925 = vld [vmem:[%s2] sm:$0xf]
        %v3926 = vld [vmem:[%s2 + $0x4] sm:$0xf]
        %v3927 = vld [vmem:[%s2 + $0x8] sm:$0xf]
        %v3928 = vld [vmem:[%s2 + $0xc] sm:$0xf]
        %v3929 = vld [vmem:[%s3] sm:$0xff]
        %v3930 = vld [vmem:[%s3 + $0x8] sm:$0xff]
        %v3931 = vld [vmem:[%s3 + $0x10] sm:$0xff]
        %v3932 = vld [vmem:[%s3 + $0x18] sm:$0xff]
        %3934 = vset.pattern.permute.xlu0 0
        %3935 = vperm.xlu0 %3934, %v3929
        %v3936 = vpop.permute.xlu0 %3935
        %3939 = vset.pattern.permute.xlu0 0
        %3940 = vperm.xlu0 %3939, %v3930
        %v3941 = vpop.permute.xlu0 %3940
        %3944 = vset.pattern.permute.xlu0 0
        %3945 = vperm.xlu0 %3944, %v3931
        %v3946 = vpop.permute.xlu0 %3945
        %3949 = vset.pattern.permute.xlu0 0
        %3950 = vperm.xlu0 %3949, %v3932
        %v3951 = vpop.permute.xlu0 %3950
        %v3957 = vunpack.c.l.b16 %v3925
        %v3958 = vunpack.c.l.b16 %v3926
        %v3959 = vunpack.c.l.b16 %v3927
        %v3960 = vunpack.c.l.b16 %v3928
        %v3961 = vpack.c.b16 %v3958, %v3957
        %v3962 = vpack.c.b16 %v3960, %v3959
        %v3964 = vsel %vm271, %v3961, 0
        %v3967 = vsel %vm271, %v3962, 0
        %3969 = vmatprep.subr.bf16.mxu0 0
        %3970 = vmatpush1.bf16.msra.mxu0 0
        %3971 = vmatprep.subr.bf16.mxu0 0
        %3972 = vmatpush1.bf16.msra.mxu0 0
        %3973 = vmatprep.subr.bf16.mxu0 0
        %3974 = vmatpush1.bf16.msra.mxu0 0
        %3975 = vmatprep.subr.bf16.mxu0 0
        %3976 = vmatpush1.bf16.msra.mxu0 0
        %3977 = vmatprep.subr.bf16.mxu0 0
        %3978 = vmatpush1.bf16.msra.mxu0 0
        %3979 = vmatprep.subr.bf16.mxu0 0
        %3980 = vmatpush1.bf16.msra.mxu0 0
        %3981 = vmatprep.subr.bf16.mxu0 %v3924
        %3982 = vmatpush1.bf16.msra.mxu0 %v3923
        %3983 = vmatprep.subr.bf16.mxu0 %v3922
        %3984 = vmatpush1.bf16.msra.mxu0 %v3921
        %3985 = vmatprep.subr.bf16.mxu0 0
        %3986 = vmatpush2.bf16.msra.mxu0 0
        %3987 = vmatprep.subr.bf16.mxu0 0
        %3988 = vmatpush2.bf16.msra.mxu0 0
        %3989 = vmatprep.subr.bf16.mxu0 0
        %3990 = vmatpush2.bf16.msra.mxu0 0
        %3991 = vmatprep.subr.bf16.mxu0 0
        %3992 = vmatpush2.bf16.msra.mxu0 0
        %3993 = vmatprep.subr.bf16.mxu0 0
        %3994 = vmatpush2.bf16.msra.mxu0 0
        %3995 = vmatprep.subr.bf16.mxu0 0
        %3996 = vmatpush2.bf16.msra.mxu0 0
        %3997 = vmatprep.subr.bf16.mxu0 0
        %3998 = vmatpush2.bf16.msra.mxu0 0
        %3999 = vmatprep.subr.bf16.mxu0 0
        %4000 = vmatpush2.bf16.msra.mxu0 0
        %4001 = vmatprep.mubr.bf16.mxu0 0
        %4002 = vmatmul.mubr.bf16.gmra.mxu0 %v3964
        %v4003 = vpop.f32.mrf.mxu0
        %v4004 = vadd.f32 %v3936, %v4003
        %v4005 = vpop.f32.mrf.mxu0
        %v4006 = vadd.f32 %v3936, %v4005
        %v4007 = vpop.f32.mrf.mxu0
        %v4008 = vadd.f32 %v3941, %v4007
        %v4009 = vpop.f32.mrf.mxu0
        %v4010 = vadd.f32 %v3941, %v4009
        %4011 = vmatprep.mubr.bf16.mxu0 0
        %4012 = vmatmul.mubr.bf16.gmra.mxu0 %v3967
        %v4013 = vpop.f32.mrf.mxu0
        %v4014 = vadd.f32 %v3946, %v4013
        %v4015 = vpop.f32.mrf.mxu0
        %v4016 = vadd.f32 %v3946, %v4015
        %v4017 = vpop.f32.mrf.mxu0
        %v4018 = vadd.f32 %v3951, %v4017
        %v4019 = vpop.f32.mrf.mxu0
        %v4020 = vadd.f32 %v3951, %v4019
        %4021 = vdwg.mxu0
        %4022 = vst [vmem:[%s215] sm:$0xff] %v4004
        %4023 = vst [vmem:[%s215 + $0x8] sm:$0xff] %v4006
        %4024 = vst [vmem:[%s215 + $0x10] sm:$0xff] %v4008
        %4025 = vst [vmem:[%s215 + $0x18] sm:$0xff] %v4010
        %4026 = vst [vmem:[%s215 + $0x20] sm:$0xff] %v4014
        %4027 = vst [vmem:[%s215 + $0x28] sm:$0xff] %v4016
        %4028 = vst [vmem:[%s215 + $0x30] sm:$0xff] %v4018
        %4029 = vst [vmem:[%s215 + $0x38] sm:$0xff] %v4020
        %s4030 = sand.u32 %s118, 1
        %s4031 = scalar_lea.sflag [#allocation4], %s4030
        %s4032 = sand.u32 %s118, 1
        %s4033 = smul.addr %s4032, 64
        %s4034 = scalar_lea.vmem [#allocation5], %s4033
        // Predicated region
        $region41: #{tpu_custom_call.1} parent=35 // pred_check
          %p4035 = pneg %p128
        $region42: #{tpu_custom_call.1} parent=35 // pred_check_branch
          %4037 = sbr.rel (%p4035) target = $region44
        $region43: #{tpu_custom_call.1} parent=35 // pred_region
          %s4039 = ssub.s32 1024, 1024
          %4040 = vsyncadd %s4031, %s4039
          %s4041 = smul.addr %s21, 8
          %s4042 = smul.addr %s4041, 128
          %s4043 = scalar_lea.hbm %s4, %s4042
          %s4044 = sshll.u32 %s4034, 4
          %s4045 = int_to_ptr.vmem [resolvable:$true] %s4044
          %4050 = dma.vmem_to_hbm [thread:$0]  %s4045, 1024, %s4043, %s4031, 256, 256, 16
        $region44: #{tpu_custom_call.1} parent=35 // pred_fallthru
          _
      $region36: #{tpu_custom_call.1} parent=5 // pred_fallthru
        _
      %p4051 = scmp.le.s32.totalorder 2, %s16
      // Predicated region
      $region45: #{tpu_custom_call.1} parent=5 // pred_check
        %p4052 = pneg %p4051
      $region46: #{tpu_custom_call.1} parent=5 // pred_check_branch
        %4054 = sbr.rel (%p4052) target = $region48
      $region47: #{tpu_custom_call.1} parent=5 // pred_region
        %s4055 = ssub.s32 %s16, 2
        // Predicated region
        $region49: #{tpu_custom_call.1} parent=47 // pred_check
          %p4056 = pneg %p134
        $region50: #{tpu_custom_call.1} parent=47 // pred_check_branch
          %4058 = sbr.rel (%p4056) target = $region52
        $region51: #{tpu_custom_call.1} parent=47 // pred_region
          %s4059 = sand.u32 %s119, 1
          %s4060 = scalar_lea.sflag [#allocation4], %s4059
          %s4061 = sand.u32 %s119, 1
          %s4062 = smul.addr %s4061, 64
          %s4063 = scalar_lea.vmem [#allocation5], %s4062
          %4064 = dma.done %s4060, 1024
        $region52: #{tpu_custom_call.1} parent=47 // pred_fallthru
          _
      $region48: #{tpu_custom_call.1} parent=5 // pred_fallthru
        _
    $region6: #{tpu_custom_call.1} parent=1 // loop_footer
      %s20 = sadd.s32 1, %s16
    $region7: #{tpu_custom_call.1} parent=1 // loop_footer_branch
      %15 = sbr.rel target = $region3
    $region8: #{tpu_custom_call.1} parent=1 // loop_exit
      _
    %4065 = vsyncpa [#allocation3], 1
    %s4066 = scalar_lea.sflag [#allocation3], 1
    %4067 = vsyncpa %s4066, 1
    %4068 = vsyncpa [#allocation4], 1
    %s4069 = scalar_lea.sflag [#allocation4], 1
    %4070 = vsyncpa %s4069, 1

</llo_original>
